<compile_context>
chip_gen: v6e
topology: v6e:2x2x1
jax: 0.10.0
libtpu: 0.0.40
codegen_flags: <defaults>
</compile_context>

<pallas_src>
import functools

import jax
import jax.numpy as jnp
from jax import lax
from jax.experimental import pallas as pl
from jax.experimental.pallas import tpu as pltpu

N_ACTION = 3
N_CHANNEL = 6


# ----------------------------------------------------------------------------
# Tiling helpers.
# ----------------------------------------------------------------------------
def _round_up(x, m):
    return pl.cdiv(x, m) * m


def _choose_m_tiling(M, cap=256):
    """Return (tm, Mp).  Small M -> one full-dim block; large M -> capped tile
    with M zero-padded up to a multiple of tm (cdiv grid)."""
    if M <= cap:
        return M, M
    tm = cap
    return tm, _round_up(M, tm)


def _choose_k_tiling(K, cap=2048):
    """Return (tk, Kp).  Small K -> one full-dim block; large K -> capped tile
    with K zero-padded up to a multiple of tk (zeros contribute nothing)."""
    if K <= cap:
        return K, K
    tk = cap
    return tk, _round_up(K, tk)


# ----------------------------------------------------------------------------
# Pallas kernel 1: y = act(x @ w + b), K-axis accumulation (used by the convs).
# ----------------------------------------------------------------------------
def _matmul_bias_act_kernel(x_ref, w_ref, b_ref, o_ref, acc_ref, *, activation):
    k = pl.program_id(1)

    @pl.when(k == 0)
    def _():
        acc_ref[...] = jnp.zeros_like(acc_ref)

    acc_ref[...] += jnp.dot(
        x_ref[...], w_ref[...], preferred_element_type=jnp.float32
    )

    @pl.when(k == pl.num_programs(1) - 1)
    def _():
        y = acc_ref[...] + b_ref[...]
        if activation == "relu":
            y = jnp.maximum(y, 0.0)
        elif activation == "tanh":
            y = jnp.tanh(y)
        o_ref[...] = y.astype(o_ref.dtype)


def matmul_bias_act(x, w, b, activation, out_dtype=jnp.bfloat16):
    """act(x @ w + b).  x: (M, K), w: (K, N), b: (N,).  bf16 in, f32 acc."""
    M, K = x.shape
    Kw, N = w.shape
    assert K == Kw
    tm, Mp = _choose_m_tiling(M)
    tk, Kp = _choose_k_tiling(K)

    x = x.astype(jnp.bfloat16)
    w = w.astype(jnp.bfloat16)
    if Mp != M:
        x = jnp.pad(x, ((0, Mp - M), (0, 0)))
    if Kp != K:
        x = jnp.pad(x, ((0, 0), (0, Kp - K)))
        w = jnp.pad(w, ((0, Kp - K), (0, 0)))
    b2 = b.reshape(1, N).astype(jnp.float32)

    kernel = functools.partial(_matmul_bias_act_kernel, activation=activation)
    cost = pl.CostEstimate(
        flops=2 * Mp * Kp * N,
        transcendentals=0,
        bytes_accessed=x.size * 2 + w.size * 2 + b2.size * 4
        + Mp * N * jnp.dtype(out_dtype).itemsize,
    )
    out = pl.pallas_call(
        kernel,
        out_shape=jax.ShapeDtypeStruct((Mp, N), out_dtype),
        grid_spec=pltpu.PrefetchScalarGridSpec(
            num_scalar_prefetch=0,
            grid=(Mp // tm, Kp // tk),
            in_specs=[
                pl.BlockSpec((tm, tk), lambda i, k: (i, k)),
                pl.BlockSpec((tk, N), lambda i, k: (k, 0)),
                pl.BlockSpec((1, N), lambda i, k: (0, 0)),
            ],
            out_specs=pl.BlockSpec((tm, N), lambda i, k: (i, 0)),
            scratch_shapes=[pltpu.VMEM((tm, N), jnp.float32)],
        ),
        compiler_params=pltpu.CompilerParams(
            dimension_semantics=("parallel", "arbitrary"),
        ),
        cost_estimate=cost,
    )(x, w, b2)
    return out[:M] if Mp != M else out


# ----------------------------------------------------------------------------
# Pallas kernel 2: fused fc1(+ReLU) -> fc2(+tanh).
#   out = tanh(relu(x @ W1 + b1) @ W2 + b2), W2 lane-padded to 128 columns.
# ----------------------------------------------------------------------------
def _fused_fc_kernel(x_ref, w1_ref, b1_ref, w2_ref, b2_ref, o_ref, acc_ref):
    k = pl.program_id(1)

    @pl.when(k == 0)
    def _():
        acc_ref[...] = jnp.zeros_like(acc_ref)

    acc_ref[...] += jnp.dot(
        x_ref[...], w1_ref[...], preferred_element_type=jnp.float32
    )

    @pl.when(k == pl.num_programs(1) - 1)
    def _():
        h = jnp.maximum(acc_ref[...] + b1_ref[...], 0.0)          # fc1 + ReLU (f32)
        y = jnp.dot(h.astype(w2_ref.dtype), w2_ref[...],
                    preferred_element_type=jnp.float32)            # fc2 on MXU
        o_ref[...] = jnp.tanh(y + b2_ref[...]).astype(o_ref.dtype)


def fused_fc_forward(x, w1, b1, w2, b2):
    """tanh(relu(x @ w1 + b1) @ w2 + b2).
    x: (M, K), w1: (K, Nh), b1: (Nh,), w2: (Nh, N), b2: (N,)."""
    M, K = x.shape
    Kw, Nh = w1.shape
    assert K == Kw
    N = w2.shape[1]
    Np = max(128, _round_up(N, 128))      # lane-dense output block
    tm, Mp = _choose_m_tiling(M)
    tk, Kp = _choose_k_tiling(K)

    x = x.astype(jnp.bfloat16)
    w1 = w1.astype(jnp.bfloat16)
    w2 = w2.astype(jnp.bfloat16)
    if Mp != M:
        x = jnp.pad(x, ((0, Mp - M), (0, 0)))
    if Kp != K:
        x = jnp.pad(x, ((0, 0), (0, Kp - K)))
        w1 = jnp.pad(w1, ((0, Kp - K), (0, 0)))
    if Np != N:
        w2 = jnp.pad(w2, ((0, 0), (0, Np - N)))
        b2 = jnp.pad(b2, ((0, Np - N),))
    b1v = b1.reshape(1, Nh).astype(jnp.float32)
    b2v = b2.reshape(1, Np).astype(jnp.float32)

    cost = pl.CostEstimate(
        flops=2 * Mp * Kp * Nh + 2 * Mp * Nh * Np,
        transcendentals=Mp * Np,
        bytes_accessed=x.size * 2 + w1.size * 2 + w2.size * 2
        + (Nh + Np) * 4 + Mp * Np * 4,
    )
    # TODO(synk): for v7x with tiny batch, split the hidden dim (Nh=256) across
    # a second "parallel" grid axis (unfused fc2) so both TensorCores stream
    # disjoint halves of the big fc1 weight.
    out = pl.pallas_call(
        _fused_fc_kernel,
        out_shape=jax.ShapeDtypeStruct((Mp, Np), jnp.float32),
        grid_spec=pltpu.PrefetchScalarGridSpec(
            num_scalar_prefetch=0,
            grid=(Mp // tm, Kp // tk),
            in_specs=[
                pl.BlockSpec((tm, tk), lambda i, k: (i, k)),
                pl.BlockSpec((tk, Nh), lambda i, k: (k, 0)),
                pl.BlockSpec((1, Nh), lambda i, k: (0, 0)),
                pl.BlockSpec((Nh, Np), lambda i, k: (0, 0)),
                pl.BlockSpec((1, Np), lambda i, k: (0, 0)),
            ],
            out_specs=pl.BlockSpec((tm, Np), lambda i, k: (i, 0)),
            scratch_shapes=[pltpu.VMEM((tm, Nh), jnp.float32)],
        ),
        compiler_params=pltpu.CompilerParams(
            dimension_semantics=("parallel", "arbitrary"),
        ),
        cost_estimate=cost,
    )(x, w1, b1v, w2, b2v)
    return out[:M, :N]


# ----------------------------------------------------------------------------
# NHWC im2col glue (plain JAX) + conv wrapper.
# ----------------------------------------------------------------------------
def _im2col_nhwc(x, kh, kw, stride, pad):
    # x: (B, H, W, C) -> (B*Ho*Wo, kh*kw*C); feature dim ordered (kh, kw, C)
    # to match the pre-reshaped conv weight (kh, kw, C, O).
    B, H, W, C = x.shape
    xp = jnp.pad(x, ((0, 0), (pad, pad), (pad, pad), (0, 0)))
    Ho = (H + 2 * pad - kh) // stride + 1
    Wo = (W + 2 * pad - kw) // stride + 1
    cols = []
    for i in range(kh):
        for j in range(kw):
            cols.append(
                xp[:, i:i + stride * (Ho - 1) + 1:stride,
                      j:j + stride * (Wo - 1) + 1:stride, :]
            )
    col = jnp.stack(cols, axis=3)                  # (B, Ho, Wo, kh*kw, C)
    return col.reshape(B * Ho * Wo, kh * kw * C), Ho, Wo


def conv2d_relu(x, wmat, b, stride, pad, kh=3, kw=3):
    # x: (B, H, W, C) NHWC; wmat: (kh*kw*C, O) pre-reshaped bf16; b: (O,) f32.
    B = x.shape[0]
    col, Ho, Wo = _im2col_nhwc(x, kh, kw, stride, pad)
    y = matmul_bias_act(col, wmat, b, "relu", out_dtype=jnp.bfloat16)
    return y.reshape(B, Ho, Wo, -1)                # stays NHWC


# ----------------------------------------------------------------------------
# Parameters: torch-layout init + one-time kernel-layout preparation.
# ----------------------------------------------------------------------------
def init_cnn_params(key, n_channel, out_channel, fc1_in):
    """Torch-layout params (Conv2d: (O,C,kh,kw); Linear: (out,in))."""
    def uni(k, shape, fan_in):
        bound = 1.0 / float(fan_in) ** 0.5
        return jax.random.uniform(k, shape, jnp.float32, -bound, bound)

    ks = jax.random.split(key, 10)
    return {
        "conv1_w": uni(ks[0], (16, n_channel, 3, 3), n_channel * 9),
        "conv1_b": uni(ks[1], (16,), n_channel * 9),
        "conv2_w": uni(ks[2], (32, 16, 3, 3), 16 * 9),
        "conv2_b": uni(ks[3], (32,), 16 * 9),
        "conv3_w": uni(ks[4], (64, 32, 3, 3), 32 * 9),
        "conv3_b": uni(ks[5], (64,), 32 * 9),
        "fc1_w": uni(ks[6], (256, fc1_in), fc1_in),
        "fc1_b": uni(ks[7], (256,), fc1_in),
        "fc2_w": uni(ks[8], (out_channel, 256), 256),
        "fc2_b": uni(ks[9], (256 and out_channel,), 256),
    }


def prepare_params(p, h3, w3):
    """One-time: bf16 cast, pre-transpose/reshape, and fold torch's NCHW
    flatten order into fc1_w's rows so the forward can stay NHWC."""
    def conv_w(w):   # (O, C, kh, kw) -> (kh*kw*C, O)
        O, C, kh, kw = w.shape
        return jnp.transpose(w, (2, 3, 1, 0)).reshape(kh * kw * C, O).astype(jnp.bfloat16)

    c3 = p["conv3_w"].shape[0]                      # 64 output channels
    fc1 = p["fc1_w"]                                # (256, c3*h3*w3), cols in (c,h,w) order
    fc1 = fc1.reshape(256, c3, h3, w3).transpose(0, 2, 3, 1).reshape(256, h3 * w3 * c3)
    return {
        "conv1_w": conv_w(p["conv1_w"]), "conv1_b": p["conv1_b"].astype(jnp.float32),
        "conv2_w": conv_w(p["conv2_w"]), "conv2_b": p["conv2_b"].astype(jnp.float32),
        "conv3_w": conv_w(p["conv3_w"]), "conv3_b": p["conv3_b"].astype(jnp.float32),
        "fc1_w": fc1.T.astype(jnp.bfloat16),        # (K, 256), NHWC-ordered rows
        "fc1_b": p["fc1_b"].astype(jnp.float32),
        "fc2_w": p["fc2_w"].T.astype(jnp.bfloat16), # (256, n_action)
        "fc2_b": p["fc2_b"].astype(jnp.float32),
    }


# ----------------------------------------------------------------------------
# Full CNN forward (mirrors the torch module's forward(), NHWC internally).
# ----------------------------------------------------------------------------
def cnn_forward(prep, x):
    # x: (B, H, W, C) NHWC, exactly what the torch module receives.
    x = x.astype(jnp.bfloat16)
    x = conv2d_relu(x, prep["conv1_w"], prep["conv1_b"], stride=4, pad=1)
    x = conv2d_relu(x, prep["conv2_w"], prep["conv2_b"], stride=2, pad=1)
    x = conv2d_relu(x, prep["conv3_w"], prep["conv3_b"], stride=1, pad=1)
    B = x.shape[0]
    flat = x.reshape(B, -1)     # NHWC flatten; order folded into fc1_w rows
    return fused_fc_forward(flat, prep["fc1_w"], prep["fc1_b"],
                            prep["fc2_w"], prep["fc2_b"])


# ----------------------------------------------------------------------------
# Pure-JAX f32 reference (emulates the torch module) for a sanity check.
# ----------------------------------------------------------------------------
def cnn_reference(p, x):
    x = jnp.transpose(x, (0, 3, 1, 2)).astype(jnp.float32)      # NCHW
    def conv(x, w, b, s):
        y = lax.conv_general_dilated(x, w, (s, s), ((1, 1), (1, 1)),
                                     dimension_numbers=("NCHW", "OIHW", "NCHW"))
        return jnp.maximum(y + b[None, :, None, None], 0.0)
    x = conv(x, p["conv1_w"], p["conv1_b"], 4)
    x = conv(x, p["conv2_w"], p["conv2_b"], 2)
    x = conv(x, p["conv3_w"], p["conv3_b"], 1)
    flat = x.reshape(x.shape[0], -1)                             # (C,H,W) order
    h = jnp.maximum(flat @ p["fc1_w"].T + p["fc1_b"], 0.0)
    return jnp.tanh(h @ p["fc2_w"].T + p["fc2_b"])


if __name__ == "__main__":
    key = jax.random.PRNGKey(0)
    kx, kp = jax.random.split(key)

    B, H, W = 2, 64, 64
    x = jax.random.normal(kx, (B, H, W, N_CHANNEL), jnp.float32)

    # Derive fc1 in-features from the actual spatial size (original module:
    # 400x400 -> 50*50*64 = 160000; here 64x64 -> 8*8*64 = 4096).
    H1 = (H + 2 - 3) // 4 + 1
    H2 = (H1 + 2 - 3) // 2 + 1
    H3 = (H2 + 2 - 3) // 1 + 1
    fc1_in = 64 * H3 * H3

    params = init_cnn_params(kp, N_CHANNEL, N_ACTION, fc1_in)
    prep = prepare_params(params, H3, H3)           # one-time, outside forward

    fwd = jax.jit(cnn_forward)
    out = jax.block_until_ready(fwd(prep, x))

    assert out.shape == (B, N_ACTION), out.shape
    assert out.dtype == jnp.float32
    assert bool(jnp.all(jnp.isfinite(out)))
    assert bool(jnp.all(jnp.abs(out) <= 1.0))       # tanh output range

    ref = jax.block_until_ready(cnn_reference(params, x))
    err = float(jnp.max(jnp.abs(out - ref)))
    assert err < 1e-1, f"max |pallas - ref| = {err}"  # bf16 inputs, f32 acc

    print("KERNEL_OK")
</pallas_src>

<mosaic_0001>
module attributes {stable_mosaic.version = 11 : i64} {
  func.func @_matmul_bias_act_kernel(%arg0: i32, %arg1: i32, %arg2: memref<256x54xbf16, #tpu.memory_space<vmem>>, %arg3: memref<54x16xbf16, #tpu.memory_space<vmem>>, %arg4: memref<1x16xf32, #tpu.memory_space<vmem>>, %arg5: memref<256x16xbf16, #tpu.memory_space<vmem>>, %arg6: memref<256x16xf32, #tpu.memory_space<vmem>>) attributes {dimension_semantics = [#tpu.dimension_semantics<parallel>, #tpu.dimension_semantics<arbitrary>], iteration_bounds = array<i64: 2, 1>, scalar_prefetch = 0 : i64, scratch_operands = 1 : i64, tpu.core_type = #tpu.core_type<tc>, window_params = [{transform_indices = @transform_0, window_bounds = array<i64: 256, 54>}, {transform_indices = @transform_1, window_bounds = array<i64: 54, 16>}, {pipeline_mode = #tpu.pipeline_mode<synchronous>, transform_indices = @transform_2, window_bounds = array<i64: 1, 16>}, {transform_indices = @transform_3, window_bounds = array<i64: 256, 16>}]} {
    %c0_i32 = arith.constant 0 : i32
    %0 = arith.cmpi eq, %arg1, %c0_i32 : i32
    %1 = arith.extui %0 : i1 to i32
    %c0_i32_0 = arith.constant 0 : i32
    %2 = arith.cmpi ne, %1, %c0_i32_0 : i32
    scf.if %2 {
      %cst_10 = arith.constant 0.000000e+00 : f32
      %12 = vector.broadcast %cst_10 : f32 to vector<256x16xf32>
      %c0_11 = arith.constant 0 : index
      %c0_12 = arith.constant 0 : index
      %13 = vector.load %arg6[%c0_11, %c0_12] : memref<256x16xf32, #tpu.memory_space<vmem>>, vector<256x16xf32>
      tpu.vector_store %arg6[%c0_11, %c0_12], %12 {strides = array<i32>} : memref<256x16xf32, #tpu.memory_space<vmem>>, vector<256x16xf32>,
    } else {
    }
    %c0 = arith.constant 0 : index
    %c0_1 = arith.constant 0 : index
    %3 = vector.load %arg6[%c0, %c0_1] : memref<256x16xf32, #tpu.memory_space<vmem>>, vector<256x16xf32>
    %c0_2 = arith.constant 0 : index
    %c0_3 = arith.constant 0 : index
    %4 = vector.load %arg2[%c0_2, %c0_3] : memref<256x54xbf16, #tpu.memory_space<vmem>>, vector<256x54xbf16>
    %c0_4 = arith.constant 0 : index
    %c0_5 = arith.constant 0 : index
    %5 = vector.load %arg3[%c0_4, %c0_5] : memref<54x16xbf16, #tpu.memory_space<vmem>>, vector<54x16xbf16>
    %cst = arith.constant dense<0.000000e+00> : vector<256x16xf32>
    %6 = tpu.matmul %4, %5, %cst {dimension_numbers = #tpu.dot_dimension_numbers<[1], [0], [0], [1], [0, 0, 1, 1], [], []>} : vector<256x54xbf16>, vector<54x16xbf16>, vector<256x16xf32> -> vector<256x16xf32>
    %7 = arith.addf %3, %6 : vector<256x16xf32>
    %c0_6 = arith.constant 0 : index
    %c0_7 = arith.constant 0 : index
    %8 = vector.load %arg6[%c0_6, %c0_7] : memref<256x16xf32, #tpu.memory_space<vmem>>, vector<256x16xf32>
    tpu.vector_store %arg6[%c0_6, %c0_7], %7 {strides = array<i32>} : memref<256x16xf32, #tpu.memory_space<vmem>>, vector<256x16xf32>,
    %c0_i32_8 = arith.constant 0 : i32
    %9 = arith.cmpi eq, %arg1, %c0_i32_8 : i32
    %10 = arith.extui %9 : i1 to i32
    %c0_i32_9 = arith.constant 0 : i32
    %11 = arith.cmpi ne, %10, %c0_i32_9 : i32
    scf.if %11 {
      %c0_10 = arith.constant 0 : index
      %c0_11 = arith.constant 0 : index
      %12 = vector.load %arg6[%c0_10, %c0_11] : memref<256x16xf32, #tpu.memory_space<vmem>>, vector<256x16xf32>
      %c0_12 = arith.constant 0 : index
      %c0_13 = arith.constant 0 : index
      %13 = vector.load %arg4[%c0_12, %c0_13] : memref<1x16xf32, #tpu.memory_space<vmem>>, vector<1x16xf32>
      %14 = vector.broadcast %13 : vector<1x16xf32> to vector<256x16xf32>
      %15 = arith.addf %12, %14 : vector<256x16xf32>
      %cst_14 = arith.constant 0.000000e+00 : f32
      %16 = vector.broadcast %cst_14 : f32 to vector<256x16xf32>
      %17 = arith.maximumf %15, %16 : vector<256x16xf32>
      %18 = arith.truncf %17 : vector<256x16xf32> to vector<256x16xbf16>
      %c0_15 = arith.constant 0 : index
      %c0_16 = arith.constant 0 : index
      %19 = vector.load %arg5[%c0_15, %c0_16] : memref<256x16xbf16, #tpu.memory_space<vmem>>, vector<256x16xbf16>
      tpu.vector_store %arg5[%c0_15, %c0_16], %18 {strides = array<i32>} : memref<256x16xbf16, #tpu.memory_space<vmem>>, vector<256x16xbf16>,
    } else {
    }
    return
  }
  func.func @transform_0(%arg0: i32, %arg1: i32) -> (i32, i32) {
    %c0_i32 = arith.constant 0 : i32
    return %arg0, %arg1 : i32, i32
  }
  func.func @transform_1(%arg0: i32, %arg1: i32) -> (i32, i32) {
    %c0_i32 = arith.constant 0 : i32
    %c0_i32_0 = arith.constant 0 : i32
    return %arg1, %c0_i32 : i32, i32
  }
  func.func @transform_2(%arg0: i32, %arg1: i32) -> (i32, i32) {
    %c0_i32 = arith.constant 0 : i32
    %c0_i32_0 = arith.constant 0 : i32
    %c0_i32_1 = arith.constant 0 : i32
    return %c0_i32, %c0_i32_0 : i32, i32
  }
  func.func @transform_3(%arg0: i32, %arg1: i32) -> (i32, i32) {
    %c0_i32 = arith.constant 0 : i32
    %c0_i32_0 = arith.constant 0 : i32
    return %arg0, %c0_i32 : i32, i32
  }
}

module attributes {stable_mosaic.version = 11 : i64} {
  func.func @_matmul_bias_act_kernel(%arg0: i32, %arg1: i32, %arg2: memref<128x144xbf16, #tpu.memory_space<vmem>>, %arg3: memref<144x32xbf16, #tpu.memory_space<vmem>>, %arg4: memref<1x32xf32, #tpu.memory_space<vmem>>, %arg5: memref<128x32xbf16, #tpu.memory_space<vmem>>, %arg6: memref<128x32xf32, #tpu.memory_space<vmem>>) attributes {dimension_semantics = [#tpu.dimension_semantics<parallel>, #tpu.dimension_semantics<arbitrary>], iteration_bounds = array<i64: 1, 1>, scalar_prefetch = 0 : i64, scratch_operands = 1 : i64, tpu.core_type = #tpu.core_type<tc>, window_params = [{transform_indices = @transform_0, window_bounds = array<i64: 128, 144>}, {transform_indices = @transform_1, window_bounds = array<i64: 144, 32>}, {pipeline_mode = #tpu.pipeline_mode<synchronous>, transform_indices = @transform_2, window_bounds = array<i64: 1, 32>}, {transform_indices = @transform_3, window_bounds = array<i64: 128, 32>}]} {
    %c0_i32 = arith.constant 0 : i32
    %0 = arith.cmpi eq, %arg1, %c0_i32 : i32
    %1 = arith.extui %0 : i1 to i32
    %c0_i32_0 = arith.constant 0 : i32
    %2 = arith.cmpi ne, %1, %c0_i32_0 : i32
    scf.if %2 {
      %cst_10 = arith.constant 0.000000e+00 : f32
      %12 = vector.broadcast %cst_10 : f32 to vector<128x32xf32>
      %c0_11 = arith.constant 0 : index
      %c0_12 = arith.constant 0 : index
      %13 = vector.load %arg6[%c0_11, %c0_12] : memref<128x32xf32, #tpu.memory_space<vmem>>, vector<128x32xf32>
      tpu.vector_store %arg6[%c0_11, %c0_12], %12 {strides = array<i32>} : memref<128x32xf32, #tpu.memory_space<vmem>>, vector<128x32xf32>,
    } else {
    }
    %c0 = arith.constant 0 : index
    %c0_1 = arith.constant 0 : index
    %3 = vector.load %arg6[%c0, %c0_1] : memref<128x32xf32, #tpu.memory_space<vmem>>, vector<128x32xf32>
    %c0_2 = arith.constant 0 : index
    %c0_3 = arith.constant 0 : index
    %4 = vector.load %arg2[%c0_2, %c0_3] : memref<128x144xbf16, #tpu.memory_space<vmem>>, vector<128x144xbf16>
    %c0_4 = arith.constant 0 : index
    %c0_5 = arith.constant 0 : index
    %5 = vector.load %arg3[%c0_4, %c0_5] : memref<144x32xbf16, #tpu.memory_space<vmem>>, vector<144x32xbf16>
    %cst = arith.constant dense<0.000000e+00> : vector<128x32xf32>
    %6 = tpu.matmul %4, %5, %cst {dimension_numbers = #tpu.dot_dimension_numbers<[1], [0], [0], [1], [0, 0, 1, 1], [], []>} : vector<128x144xbf16>, vector<144x32xbf16>, vector<128x32xf32> -> vector<128x32xf32>
    %7 = arith.addf %3, %6 : vector<128x32xf32>
    %c0_6 = arith.constant 0 : index
    %c0_7 = arith.constant 0 : index
    %8 = vector.load %arg6[%c0_6, %c0_7] : memref<128x32xf32, #tpu.memory_space<vmem>>, vector<128x32xf32>
    tpu.vector_store %arg6[%c0_6, %c0_7], %7 {strides = array<i32>} : memref<128x32xf32, #tpu.memory_space<vmem>>, vector<128x32xf32>,
    %c0_i32_8 = arith.constant 0 : i32
    %9 = arith.cmpi eq, %arg1, %c0_i32_8 : i32
    %10 = arith.extui %9 : i1 to i32
    %c0_i32_9 = arith.constant 0 : i32
    %11 = arith.cmpi ne, %10, %c0_i32_9 : i32
    scf.if %11 {
      %c0_10 = arith.constant 0 : index
      %c0_11 = arith.constant 0 : index
      %12 = vector.load %arg6[%c0_10, %c0_11] : memref<128x32xf32, #tpu.memory_space<vmem>>, vector<128x32xf32>
      %c0_12 = arith.constant 0 : index
      %c0_13 = arith.constant 0 : index
      %13 = vector.load %arg4[%c0_12, %c0_13] : memref<1x32xf32, #tpu.memory_space<vmem>>, vector<1x32xf32>
      %14 = vector.broadcast %13 : vector<1x32xf32> to vector<128x32xf32>
      %15 = arith.addf %12, %14 : vector<128x32xf32>
      %cst_14 = arith.constant 0.000000e+00 : f32
      %16 = vector.broadcast %cst_14 : f32 to vector<128x32xf32>
      %17 = arith.maximumf %15, %16 : vector<128x32xf32>
      %18 = arith.truncf %17 : vector<128x32xf32> to vector<128x32xbf16>
      %c0_15 = arith.constant 0 : index
      %c0_16 = arith.constant 0 : index
      %19 = vector.load %arg5[%c0_15, %c0_16] : memref<128x32xbf16, #tpu.memory_space<vmem>>, vector<128x32xbf16>
      tpu.vector_store %arg5[%c0_15, %c0_16], %18 {strides = array<i32>} : memref<128x32xbf16, #tpu.memory_space<vmem>>, vector<128x32xbf16>,
    } else {
    }
    return
  }
  func.func @transform_0(%arg0: i32, %arg1: i32) -> (i32, i32) {
    %c0_i32 = arith.constant 0 : i32
    return %arg0, %arg1 : i32, i32
  }
  func.func @transform_1(%arg0: i32, %arg1: i32) -> (i32, i32) {
    %c0_i32 = arith.constant 0 : i32
    %c0_i32_0 = arith.constant 0 : i32
    return %arg1, %c0_i32 : i32, i32
  }
  func.func @transform_2(%arg0: i32, %arg1: i32) -> (i32, i32) {
    %c0_i32 = arith.constant 0 : i32
    %c0_i32_0 = arith.constant 0 : i32
    %c0_i32_1 = arith.constant 0 : i32
    return %c0_i32, %c0_i32_0 : i32, i32
  }
  func.func @transform_3(%arg0: i32, %arg1: i32) -> (i32, i32) {
    %c0_i32 = arith.constant 0 : i32
    %c0_i32_0 = arith.constant 0 : i32
    return %arg0, %c0_i32 : i32, i32
  }
}

module attributes {stable_mosaic.version = 11 : i64} {
  func.func @_matmul_bias_act_kernel(%arg0: i32, %arg1: i32, %arg2: memref<128x288xbf16, #tpu.memory_space<vmem>>, %arg3: memref<288x64xbf16, #tpu.memory_space<vmem>>, %arg4: memref<1x64xf32, #tpu.memory_space<vmem>>, %arg5: memref<128x64xbf16, #tpu.memory_space<vmem>>, %arg6: memref<128x64xf32, #tpu.memory_space<vmem>>) attributes {dimension_semantics = [#tpu.dimension_semantics<parallel>, #tpu.dimension_semantics<arbitrary>], iteration_bounds = array<i64: 1, 1>, scalar_prefetch = 0 : i64, scratch_operands = 1 : i64, tpu.core_type = #tpu.core_type<tc>, window_params = [{transform_indices = @transform_0, window_bounds = array<i64: 128, 288>}, {transform_indices = @transform_1, window_bounds = array<i64: 288, 64>}, {pipeline_mode = #tpu.pipeline_mode<synchronous>, transform_indices = @transform_2, window_bounds = array<i64: 1, 64>}, {transform_indices = @transform_3, window_bounds = array<i64: 128, 64>}]} {
    %c0_i32 = arith.constant 0 : i32
    %0 = arith.cmpi eq, %arg1, %c0_i32 : i32
    %1 = arith.extui %0 : i1 to i32
    %c0_i32_0 = arith.constant 0 : i32
    %2 = arith.cmpi ne, %1, %c0_i32_0 : i32
    scf.if %2 {
      %cst_10 = arith.constant 0.000000e+00 : f32
      %12 = vector.broadcast %cst_10 : f32 to vector<128x64xf32>
      %c0_11 = arith.constant 0 : index
      %c0_12 = arith.constant 0 : index
      %13 = vector.load %arg6[%c0_11, %c0_12] : memref<128x64xf32, #tpu.memory_space<vmem>>, vector<128x64xf32>
      tpu.vector_store %arg6[%c0_11, %c0_12], %12 {strides = array<i32>} : memref<128x64xf32, #tpu.memory_space<vmem>>, vector<128x64xf32>,
    } else {
    }
    %c0 = arith.constant 0 : index
    %c0_1 = arith.constant 0 : index
    %3 = vector.load %arg6[%c0, %c0_1] : memref<128x64xf32, #tpu.memory_space<vmem>>, vector<128x64xf32>
    %c0_2 = arith.constant 0 : index
    %c0_3 = arith.constant 0 : index
    %4 = vector.load %arg2[%c0_2, %c0_3] : memref<128x288xbf16, #tpu.memory_space<vmem>>, vector<128x288xbf16>
    %c0_4 = arith.constant 0 : index
    %c0_5 = arith.constant 0 : index
    %5 = vector.load %arg3[%c0_4, %c0_5] : memref<288x64xbf16, #tpu.memory_space<vmem>>, vector<288x64xbf16>
    %cst = arith.constant dense<0.000000e+00> : vector<128x64xf32>
    %6 = tpu.matmul %4, %5, %cst {dimension_numbers = #tpu.dot_dimension_numbers<[1], [0], [0], [1], [0, 0, 1, 1], [], []>} : vector<128x288xbf16>, vector<288x64xbf16>, vector<128x64xf32> -> vector<128x64xf32>
    %7 = arith.addf %3, %6 : vector<128x64xf32>
    %c0_6 = arith.constant 0 : index
    %c0_7 = arith.constant 0 : index
    %8 = vector.load %arg6[%c0_6, %c0_7] : memref<128x64xf32, #tpu.memory_space<vmem>>, vector<128x64xf32>
    tpu.vector_store %arg6[%c0_6, %c0_7], %7 {strides = array<i32>} : memref<128x64xf32, #tpu.memory_space<vmem>>, vector<128x64xf32>,
    %c0_i32_8 = arith.constant 0 : i32
    %9 = arith.cmpi eq, %arg1, %c0_i32_8 : i32
    %10 = arith.extui %9 : i1 to i32
    %c0_i32_9 = arith.constant 0 : i32
    %11 = arith.cmpi ne, %10, %c0_i32_9 : i32
    scf.if %11 {
      %c0_10 = arith.constant 0 : index
      %c0_11 = arith.constant 0 : index
      %12 = vector.load %arg6[%c0_10, %c0_11] : memref<128x64xf32, #tpu.memory_space<vmem>>, vector<128x64xf32>
      %c0_12 = arith.constant 0 : index
      %c0_13 = arith.constant 0 : index
      %13 = vector.load %arg4[%c0_12, %c0_13] : memref<1x64xf32, #tpu.memory_space<vmem>>, vector<1x64xf32>
      %14 = vector.broadcast %13 : vector<1x64xf32> to vector<128x64xf32>
      %15 = arith.addf %12, %14 : vector<128x64xf32>
      %cst_14 = arith.constant 0.000000e+00 : f32
      %16 = vector.broadcast %cst_14 : f32 to vector<128x64xf32>
      %17 = arith.maximumf %15, %16 : vector<128x64xf32>
      %18 = arith.truncf %17 : vector<128x64xf32> to vector<128x64xbf16>
      %c0_15 = arith.constant 0 : index
      %c0_16 = arith.constant 0 : index
      %19 = vector.load %arg5[%c0_15, %c0_16] : memref<128x64xbf16, #tpu.memory_space<vmem>>, vector<128x64xbf16>
      tpu.vector_store %arg5[%c0_15, %c0_16], %18 {strides = array<i32>} : memref<128x64xbf16, #tpu.memory_space<vmem>>, vector<128x64xbf16>,
    } else {
    }
    return
  }
  func.func @transform_0(%arg0: i32, %arg1: i32) -> (i32, i32) {
    %c0_i32 = arith.constant 0 : i32
    return %arg0, %arg1 : i32, i32
  }
  func.func @transform_1(%arg0: i32, %arg1: i32) -> (i32, i32) {
    %c0_i32 = arith.constant 0 : i32
    %c0_i32_0 = arith.constant 0 : i32
    return %arg1, %c0_i32 : i32, i32
  }
  func.func @transform_2(%arg0: i32, %arg1: i32) -> (i32, i32) {
    %c0_i32 = arith.constant 0 : i32
    %c0_i32_0 = arith.constant 0 : i32
    %c0_i32_1 = arith.constant 0 : i32
    return %c0_i32, %c0_i32_0 : i32, i32
  }
  func.func @transform_3(%arg0: i32, %arg1: i32) -> (i32, i32) {
    %c0_i32 = arith.constant 0 : i32
    %c0_i32_0 = arith.constant 0 : i32
    return %arg0, %c0_i32 : i32, i32
  }
}

module attributes {stable_mosaic.version = 11 : i64} {
  func.func @_fused_fc_kernel(%arg0: i32, %arg1: i32, %arg2: memref<2x2048xbf16, #tpu.memory_space<vmem>>, %arg3: memref<2048x256xbf16, #tpu.memory_space<vmem>>, %arg4: memref<1x256xf32, #tpu.memory_space<vmem>>, %arg5: memref<256x128xbf16, #tpu.memory_space<vmem>>, %arg6: memref<1x128xf32, #tpu.memory_space<vmem>>, %arg7: memref<2x128xf32, #tpu.memory_space<vmem>>, %arg8: memref<2x256xf32, #tpu.memory_space<vmem>>) attributes {dimension_semantics = [#tpu.dimension_semantics<parallel>, #tpu.dimension_semantics<arbitrary>], iteration_bounds = array<i64: 1, 2>, scalar_prefetch = 0 : i64, scratch_operands = 1 : i64, tpu.core_type = #tpu.core_type<tc>, window_params = [{transform_indices = @transform_0, window_bounds = array<i64: 2, 2048>}, {transform_indices = @transform_1, window_bounds = array<i64: 2048, 256>}, {pipeline_mode = #tpu.pipeline_mode<synchronous>, transform_indices = @transform_2, window_bounds = array<i64: 1, 256>}, {pipeline_mode = #tpu.pipeline_mode<synchronous>, transform_indices = @transform_3, window_bounds = array<i64: 256, 128>}, {pipeline_mode = #tpu.pipeline_mode<synchronous>, transform_indices = @transform_4, window_bounds = array<i64: 1, 128>}, {transform_indices = @transform_5, window_bounds = array<i64: 2, 128>}]} {
    %c0_i32 = arith.constant 0 : i32
    %0 = arith.cmpi eq, %arg1, %c0_i32 : i32
    %1 = arith.extui %0 : i1 to i32
    %c0_i32_0 = arith.constant 0 : i32
    %2 = arith.cmpi ne, %1, %c0_i32_0 : i32
    scf.if %2 {
      %cst_9 = arith.constant 0.000000e+00 : f32
      %12 = vector.broadcast %cst_9 : f32 to vector<2x256xf32>
      %c0_10 = arith.constant 0 : index
      %c0_11 = arith.constant 0 : index
      %13 = vector.load %arg8[%c0_10, %c0_11] : memref<2x256xf32, #tpu.memory_space<vmem>>, vector<2x256xf32>
      tpu.vector_store %arg8[%c0_10, %c0_11], %12 {strides = array<i32>} : memref<2x256xf32, #tpu.memory_space<vmem>>, vector<2x256xf32>,
    } else {
    }
    %c0 = arith.constant 0 : index
    %c0_1 = arith.constant 0 : index
    %3 = vector.load %arg8[%c0, %c0_1] : memref<2x256xf32, #tpu.memory_space<vmem>>, vector<2x256xf32>
    %c0_2 = arith.constant 0 : index
    %c0_3 = arith.constant 0 : index
    %4 = vector.load %arg2[%c0_2, %c0_3] : memref<2x2048xbf16, #tpu.memory_space<vmem>>, vector<2x2048xbf16>
    %c0_4 = arith.constant 0 : index
    %c0_5 = arith.constant 0 : index
    %5 = vector.load %arg3[%c0_4, %c0_5] : memref<2048x256xbf16, #tpu.memory_space<vmem>>, vector<2048x256xbf16>
    %cst = arith.constant dense<0.000000e+00> : vector<2x256xf32>
    %6 = tpu.matmul %4, %5, %cst {dimension_numbers = #tpu.dot_dimension_numbers<[1], [0], [0], [1], [0, 0, 1, 1], [], []>} : vector<2x2048xbf16>, vector<2048x256xbf16>, vector<2x256xf32> -> vector<2x256xf32>
    %7 = arith.addf %3, %6 : vector<2x256xf32>
    %c0_6 = arith.constant 0 : index
    %c0_7 = arith.constant 0 : index
    %8 = vector.load %arg8[%c0_6, %c0_7] : memref<2x256xf32, #tpu.memory_space<vmem>>, vector<2x256xf32>
    tpu.vector_store %arg8[%c0_6, %c0_7], %7 {strides = array<i32>} : memref<2x256xf32, #tpu.memory_space<vmem>>, vector<2x256xf32>,
    %c1_i32 = arith.constant 1 : i32
    %9 = arith.cmpi eq, %arg1, %c1_i32 : i32
    %10 = arith.extui %9 : i1 to i32
    %c0_i32_8 = arith.constant 0 : i32
    %11 = arith.cmpi ne, %10, %c0_i32_8 : i32
    scf.if %11 {
      %c0_9 = arith.constant 0 : index
      %c0_10 = arith.constant 0 : index
      %12 = vector.load %arg8[%c0_9, %c0_10] : memref<2x256xf32, #tpu.memory_space<vmem>>, vector<2x256xf32>
      %c0_11 = arith.constant 0 : index
      %c0_12 = arith.constant 0 : index
      %13 = vector.load %arg4[%c0_11, %c0_12] : memref<1x256xf32, #tpu.memory_space<vmem>>, vector<1x256xf32>
      %14 = vector.broadcast %13 : vector<1x256xf32> to vector<2x256xf32>
      %15 = arith.addf %12, %14 : vector<2x256xf32>
      %cst_13 = arith.constant 0.000000e+00 : f32
      %16 = vector.broadcast %cst_13 : f32 to vector<2x256xf32>
      %17 = arith.maximumf %15, %16 : vector<2x256xf32>
      %18 = arith.truncf %17 : vector<2x256xf32> to vector<2x256xbf16>
      %c0_14 = arith.constant 0 : index
      %c0_15 = arith.constant 0 : index
      %19 = vector.load %arg5[%c0_14, %c0_15] : memref<256x128xbf16, #tpu.memory_space<vmem>>, vector<256x128xbf16>
      %cst_16 = arith.constant dense<0.000000e+00> : vector<2x128xf32>
      %20 = tpu.matmul %18, %19, %cst_16 {dimension_numbers = #tpu.dot_dimension_numbers<[1], [0], [0], [1], [0, 0, 1, 1], [], []>} : vector<2x256xbf16>, vector<256x128xbf16>, vector<2x128xf32> -> vector<2x128xf32>
      %c0_17 = arith.constant 0 : index
      %c0_18 = arith.constant 0 : index
      %21 = vector.load %arg6[%c0_17, %c0_18] : memref<1x128xf32, #tpu.memory_space<vmem>>, vector<1x128xf32>
      %22 = vector.broadcast %21 : vector<1x128xf32> to vector<2x128xf32>
      %23 = arith.addf %20, %22 : vector<2x128xf32>
      %24 = math.tanh %23 : vector<2x128xf32>
      %c0_19 = arith.constant 0 : index
      %c0_20 = arith.constant 0 : index
      %25 = vector.load %arg7[%c0_19, %c0_20] : memref<2x128xf32, #tpu.memory_space<vmem>>, vector<2x128xf32>
      tpu.vector_store %arg7[%c0_19, %c0_20], %24 {strides = array<i32>} : memref<2x128xf32, #tpu.memory_space<vmem>>, vector<2x128xf32>,
    } else {
    }
    return
  }
  func.func @transform_0(%arg0: i32, %arg1: i32) -> (i32, i32) {
    %c0_i32 = arith.constant 0 : i32
    return %arg0, %arg1 : i32, i32
  }
  func.func @transform_1(%arg0: i32, %arg1: i32) -> (i32, i32) {
    %c0_i32 = arith.constant 0 : i32
    %c0_i32_0 = arith.constant 0 : i32
    return %arg1, %c0_i32 : i32, i32
  }
  func.func @transform_2(%arg0: i32, %arg1: i32) -> (i32, i32) {
    %c0_i32 = arith.constant 0 : i32
    %c0_i32_0 = arith.constant 0 : i32
    %c0_i32_1 = arith.constant 0 : i32
    return %c0_i32, %c0_i32_0 : i32, i32
  }
  func.func @transform_3(%arg0: i32, %arg1: i32) -> (i32, i32) {
    %c0_i32 = arith.constant 0 : i32
    %c0_i32_0 = arith.constant 0 : i32
    %c0_i32_1 = arith.constant 0 : i32
    return %c0_i32, %c0_i32_0 : i32, i32
  }
  func.func @transform_4(%arg0: i32, %arg1: i32) -> (i32, i32) {
    %c0_i32 = arith.constant 0 : i32
    %c0_i32_0 = arith.constant 0 : i32
    %c0_i32_1 = arith.constant 0 : i32
    return %c0_i32, %c0_i32_0 : i32, i32
  }
  func.func @transform_5(%arg0: i32, %arg1: i32) -> (i32, i32) {
    %c0_i32 = arith.constant 0 : i32
    %c0_i32_0 = arith.constant 0 : i32
    return %arg0, %c0_i32 : i32, i32
  }
}

</mosaic_0001>

<llo_original>
// kernel: cnn_forward.4
$region0: #{cnn_forward.4}
  #allocation0 [shape = 'u32[]', space=smem, size = 0x4, offset = 0x4, fixed_abs, tag = 'smem constant byte address 0x4 - core index']
  #allocation1 [shape = 'u32[144,128]{1,0:T(1,128)}', space=vmem, size = 0x12000, scoped, tag = 'internal scratch']
  #allocation2 [shape = 'f32[256,16]{1,0:T(8,128)}', space=vmem, size = 0x20000, scoped, tag = 'scratch operand']
  %s0 = inlined_call_operand.vmem [shape: bf16[512,54], index: 0, kind: input, shape index: {}]
  %s1 = inlined_call_operand.vmem [shape: bf16[54,16], index: 1, kind: input, shape index: {}]
  %s2 = inlined_call_operand.vmem [shape: f32[1,16], index: 2, kind: input, shape index: {}]
  %s3 = inlined_call_operand.vmem [shape: bf16[512,16], index: 3, kind: output, shape index: {}]
  %s4 = sld [smem:[#allocation0]]
  $region53: #{cnn_forward.4} parent=0
    _
  %s6 = ssub.s32 1, %s4
  %s7 = scalar_select 0, %s6, %s4
  loop: start=0, step=1, limit=4
  $region2: #{cnn_forward.4} parent=0 // loop_pre_header
    _
  $region3: #{cnn_forward.4} parent=0 // loop_header
    %s9 = sphi 0, %s13
    %p10 = scmp.ge.s32.totalorder %s9, 4
    %s16 = sphi 0, %s28
    %s17 = sphi 0, %s24
    %s18 = sphi 0, %s16
    %s19 = sphi 0, %s17
    %s20 = sphi 0, %s18
    %s21 = sphi 0, %s19
    %s33 = sphi 0, %s35
    %s36 = sphi 0, %s33
    %s37 = sphi 0, %s36
    %s53 = sphi 0, %s37
    %s59 = sphi 0, %s61
    %s62 = sphi 0, %s59
    %s63 = sphi 0, %s62
    %s79 = sphi 0, %s63
    %s83 = sphi 0, %s83
    %s85 = sphi 0, %s83
    %s86 = sphi 0, %s85
    %s100 = sphi 0, %s86
    %s106 = sphi 0, %s108
    %s109 = sphi 0, %s106
    %s110 = sphi 0, %s109
    %s126 = sphi 0, %s110
  $region4: #{cnn_forward.4} parent=0 // loop_header_branch
    %12 = sbr.rel (%p10) target = $region8
  $region5: #{cnn_forward.4} parent=0 // loop_body
    %s14 = ssub.s32 %s9, 1
    %s15 = ssub.s32 %s9, 2
    %s22 = sadd.s32 1, %s17
    %p23 = scmp.ge.s32.totalorder %s22, 1
    %s24 = scalar_select %p23, 0, %s22
    %s25 = sadd.s32 1, %s16
    %s26 = scalar_select %p23, %s25, %s16
    %p27 = scmp.ge.s32.totalorder %s26, 2
    %s28 = scalar_select %p27, 0, %s26
    %s29 = ssub.s32 %s16, %s28
    %s30 = ssub.s32 %s17, %s24
    %s31 = sor.u32 %s29, %s30
    %p32 = scmp.eq.s32.totalorder %s31, 0
    %s34 = sadd.s32 %s33, 1
    %s35 = scalar_select %p32, %s33, %s34
    %p38 = pneg %p32
    %p39 = scmp.eq.s32.totalorder %s9, 1
    %p40 = por %p38, %p39
    %p41 = scmp.ne.s32.totalorder %s33, %s36
    %p42 = scmp.eq.s32.totalorder %s9, 0
    %p43 = por %p41, %p42
    %p44 = scmp.ne.s32.totalorder %s33, %s36
    %p45 = scmp.eq.s32.totalorder %s14, 1
    %p46 = por %p44, %p45
    %p47 = scmp.ne.s32.totalorder %s36, %s37
    %p48 = scmp.eq.s32.totalorder %s14, 0
    %p49 = por %p47, %p48
    %p50 = scmp.ne.s32.totalorder %s36, %s37
    %p51 = scmp.eq.s32.totalorder %s15, 1
    %p52 = por %p50, %p51
    %p54 = scmp.ne.s32.totalorder %s37, %s53
    %p55 = scmp.eq.s32.totalorder %s15, 0
    %p56 = por %p54, %p55
    %s57 = ssub.s32 %s17, %s24
    %p58 = scmp.eq.s32.totalorder %s57, 0
    %s60 = sadd.s32 %s59, 1
    %s61 = scalar_select %p58, %s59, %s60
    %p64 = pneg %p58
    %p65 = scmp.eq.s32.totalorder %s9, 1
    %p66 = por %p64, %p65
    %p67 = scmp.ne.s32.totalorder %s59, %s62
    %p68 = scmp.eq.s32.totalorder %s9, 0
    %p69 = por %p67, %p68
    %p70 = scmp.ne.s32.totalorder %s59, %s62
    %p71 = scmp.eq.s32.totalorder %s14, 1
    %p72 = por %p70, %p71
    %p73 = scmp.ne.s32.totalorder %s62, %s63
    %p74 = scmp.eq.s32.totalorder %s14, 0
    %p75 = por %p73, %p74
    %p76 = scmp.ne.s32.totalorder %s62, %s63
    %p77 = scmp.eq.s32.totalorder %s15, 1
    %p78 = por %p76, %p77
    %p80 = scmp.ne.s32.totalorder %s63, %s79
    %p81 = scmp.eq.s32.totalorder %s15, 0
    %p82 = por %p80, %p81
    %s84 = sadd.s32 %s83, 1
    %p87 = scmp.eq.s32.totalorder %s9, 1
    %p88 = scmp.ne.s32.totalorder %s83, %s85
    %p89 = scmp.eq.s32.totalorder %s9, 0
    %p90 = por %p88, %p89
    %p91 = scmp.ne.s32.totalorder %s83, %s85
    %p92 = scmp.eq.s32.totalorder %s14, 1
    %p93 = por %p91, %p92
    %p94 = scmp.ne.s32.totalorder %s85, %s86
    %p95 = scmp.eq.s32.totalorder %s14, 0
    %p96 = por %p94, %p95
    %p97 = scmp.ne.s32.totalorder %s85, %s86
    %p98 = scmp.eq.s32.totalorder %s15, 1
    %p99 = por %p97, %p98
    %p101 = scmp.ne.s32.totalorder %s86, %s100
    %p102 = scmp.eq.s32.totalorder %s15, 0
    %p103 = por %p101, %p102
    %s104 = ssub.s32 %s16, %s28
    %p105 = scmp.eq.s32.totalorder %s104, 0
    %s107 = sadd.s32 %s106, 1
    %s108 = scalar_select %p105, %s106, %s107
    %p111 = pneg %p105
    %p112 = scmp.eq.s32.totalorder %s9, 1
    %p113 = por %p111, %p112
    %p114 = scmp.ne.s32.totalorder %s106, %s109
    %p115 = scmp.eq.s32.totalorder %s9, 0
    %p116 = por %p114, %p115
    %p117 = scmp.ne.s32.totalorder %s106, %s109
    %p118 = scmp.eq.s32.totalorder %s14, 1
    %p119 = por %p117, %p118
    %p120 = scmp.ne.s32.totalorder %s109, %s110
    %p121 = scmp.eq.s32.totalorder %s14, 0
    %p122 = por %p120, %p121
    %p123 = scmp.ne.s32.totalorder %s109, %s110
    %p124 = scmp.eq.s32.totalorder %s15, 1
    %p125 = por %p123, %p124
    %p127 = scmp.ne.s32.totalorder %s110, %s126
    %p128 = scmp.eq.s32.totalorder %s15, 0
    %p129 = por %p127, %p128
    %p130 = scmp.le.s32.totalorder 1, %s9
    %p131 = scmp.lt.s32.totalorder %s9, 3
    %p132 = pnand %p130, %p131
    %p133 = pneg %p132
    // Predicated region
    $region9: #{cnn_forward.4} parent=5 // pred_check
      _
    $region10: #{cnn_forward.4} parent=5 // pred_check_branch
      %135 = sbr.rel (%p132) target = $region12
    $region11: #{cnn_forward.4} parent=5 // pred_region
      %s136 = ssub.s32 %s9, 1
      // Predicated region
      $region13: #{cnn_forward.4} parent=11 // pred_check
        %p137 = pneg %p75
      $region14: #{cnn_forward.4} parent=11 // pred_check_branch
        %139 = sbr.rel (%p137) target = $region16
      $region15: #{cnn_forward.4} parent=11 // pred_region
        %s140 = smul.u32 7, %s19
        %p141 = scmp.lt.s32.totalorder %s140, 6
        %s142 = scalar_select %p141, %s140, 6
        %s143 = smul.addr %s142, 4
        %s144 = scalar_lea.vmem %s1, %s143
        %s145 = smul.u32 7, %s19
      $region16: #{cnn_forward.4} parent=11 // pred_fallthru
        _
      // Predicated region
      $region17: #{cnn_forward.4} parent=11 // pred_check
        %p146 = pneg %p96
      $region18: #{cnn_forward.4} parent=11 // pred_check_branch
        %148 = sbr.rel (%p146) target = $region20
      $region19: #{cnn_forward.4} parent=11 // pred_region
        _
      $region20: #{cnn_forward.4} parent=11 // pred_fallthru
        _
    $region12: #{cnn_forward.4} parent=5 // pred_fallthru
      _
    %p149 = scmp.lt.s32.totalorder %s9, 2
    // Predicated region
    $region21: #{cnn_forward.4} parent=5 // pred_check
      %p150 = pneg %p149
    $region22: #{cnn_forward.4} parent=5 // pred_check_branch
      %152 = sbr.rel (%p150) target = $region24
    $region23: #{cnn_forward.4} parent=5 // pred_region
      // Predicated region
      $region25: #{cnn_forward.4} parent=23 // pred_check
        %p153 = pneg %p43
      $region26: #{cnn_forward.4} parent=23 // pred_check_branch
        %155 = sbr.rel (%p153) target = $region28
      $region27: #{cnn_forward.4} parent=23 // pred_region
        %s156 = smul.u32 32, %s16
        %p157 = scmp.lt.s32.totalorder %s156, 63
        %s158 = scalar_select %p157, %s156, 63
        %p159 = scmp.lt.s32.totalorder %s17, 0
        %s160 = scalar_select %p159, %s17, 0
        %s161 = sadd.s32 %s160, %s158
        %s162 = smul.addr %s161, 4
        %s163 = scalar_lea.vmem %s0, %s162
        %s164 = smul.u32 32, %s16
      $region28: #{cnn_forward.4} parent=23 // pred_fallthru
        _
    $region24: #{cnn_forward.4} parent=5 // pred_fallthru
      _
    %p165 = scmp.le.s32.totalorder 1, %s9
    %p166 = scmp.lt.s32.totalorder %s9, 3
    %p167 = pnand %p165, %p166
    %p168 = pneg %p167
    // Predicated region
    $region29: #{cnn_forward.4} parent=5 // pred_check
      _
    $region30: #{cnn_forward.4} parent=5 // pred_check_branch
      %170 = sbr.rel (%p167) target = $region32
    $region31: #{cnn_forward.4} parent=5 // pred_region
      %s171 = ssub.s32 %s9, 1
      %s172 = smul.u32 32, %s18
      %p173 = scmp.lt.s32.totalorder %s172, 63
      %s174 = scalar_select %p173, %s172, 63
      %p175 = scmp.lt.s32.totalorder %s19, 0
      %s176 = scalar_select %p175, %s19, 0
      %s177 = sadd.s32 %s176, %s174
      %s178 = smul.addr %s177, 4
      %s179 = scalar_lea.vmem %s0, %s178
      %p180 = pneg %p49
      %p181 = pneg %p46
      %s182 = smul.u32 7, %s19
      %p183 = scmp.lt.s32.totalorder %s182, 6
      %s184 = scalar_select %p183, %s182, 6
      %s185 = smul.addr %s184, 4
      %s186 = scalar_lea.vmem %s1, %s185
      %p187 = pneg %p75
      %p188 = pneg %p72
      %p189 = pneg %p96
      %p190 = pneg %p93
      %p191 = pneg %p122
      %p192 = pneg %p119
      %s193 = smul.u32 32, %s18
      %p194 = scmp.lt.s32.totalorder %s193, 63
      %s195 = scalar_select %p194, %s193, 63
      %s196 = smul.addr %s195, 4
      %s197 = scalar_lea.vmem %s3, %s196
      %s198 = smul.u32 32, %s18
      %p199 = scmp.lt.s32.totalorder %s198, 63
      %s200 = scalar_select %p199, %s198, 63
      %p201 = scmp.lt.s32.totalorder %s19, 0
      %s202 = scalar_select %p201, %s19, 0
      %s203 = sadd.s32 %s202, %s200
      %s204 = smul.addr %s203, 4
      %s205 = scalar_lea.vmem %s0, %s204
      %s206 = smul.u32 32, %s18
      %s207 = smul.u32 7, %s19
      %p208 = scmp.lt.s32.totalorder %s207, 6
      %s209 = scalar_select %p208, %s207, 6
      %s210 = smul.addr %s209, 4
      %s211 = scalar_lea.vmem %s1, %s210
      %s212 = smul.u32 7, %s19
      %s213 = smul.u32 32, %s18
      %p214 = scmp.lt.s32.totalorder %s213, 63
      %s215 = scalar_select %p214, %s213, 63
      %s216 = smul.addr %s215, 4
      %s217 = scalar_lea.vmem %s3, %s216
      %s218 = smul.u32 32, %s18
      %p220 = scmp.eq.s32.totalorder %s19, 0
      // Predicated region
      $region33: #{cnn_forward.4} parent=31 // pred_check
        %p221 = pneg %p220
      $region34: #{cnn_forward.4} parent=31 // pred_check_branch
        %223 = sbr.rel (%p221) target = $region36
      $region35: #{cnn_forward.4} parent=31 // pred_region
        %vm224 = vcmask 130048
        %225 = vst.msk [vmem:[#allocation2] sm:$0xff] %vm224, 0.0
        %226 = vst.msk [vmem:[#allocation2 + $0x8] sm:$0xff] %vm224, 0.0
        %227 = vst.msk [vmem:[#allocation2 + $0x10] sm:$0xff] %vm224, 0.0
        %228 = vst.msk [vmem:[#allocation2 + $0x18] sm:$0xff] %vm224, 0.0
        %229 = vst.msk [vmem:[#allocation2 + $0x20] sm:$0xff] %vm224, 0.0
        %230 = vst.msk [vmem:[#allocation2 + $0x28] sm:$0xff] %vm224, 0.0
        %231 = vst.msk [vmem:[#allocation2 + $0x30] sm:$0xff] %vm224, 0.0
        %232 = vst.msk [vmem:[#allocation2 + $0x38] sm:$0xff] %vm224, 0.0
        %233 = vst.msk [vmem:[#allocation2 + $0x40] sm:$0xff] %vm224, 0.0
        %234 = vst.msk [vmem:[#allocation2 + $0x48] sm:$0xff] %vm224, 0.0
        %235 = vst.msk [vmem:[#allocation2 + $0x50] sm:$0xff] %vm224, 0.0
        %236 = vst.msk [vmem:[#allocation2 + $0x58] sm:$0xff] %vm224, 0.0
        %237 = vst.msk [vmem:[#allocation2 + $0x60] sm:$0xff] %vm224, 0.0
        %238 = vst.msk [vmem:[#allocation2 + $0x68] sm:$0xff] %vm224, 0.0
        %239 = vst.msk [vmem:[#allocation2 + $0x70] sm:$0xff] %vm224, 0.0
        %240 = vst.msk [vmem:[#allocation2 + $0x78] sm:$0xff] %vm224, 0.0
        %241 = vst.msk [vmem:[#allocation2 + $0x80] sm:$0xff] %vm224, 0.0
        %242 = vst.msk [vmem:[#allocation2 + $0x88] sm:$0xff] %vm224, 0.0
        %243 = vst.msk [vmem:[#allocation2 + $0x90] sm:$0xff] %vm224, 0.0
        %244 = vst.msk [vmem:[#allocation2 + $0x98] sm:$0xff] %vm224, 0.0
        %245 = vst.msk [vmem:[#allocation2 + $0xa0] sm:$0xff] %vm224, 0.0
        %246 = vst.msk [vmem:[#allocation2 + $0xa8] sm:$0xff] %vm224, 0.0
        %247 = vst.msk [vmem:[#allocation2 + $0xb0] sm:$0xff] %vm224, 0.0
        %248 = vst.msk [vmem:[#allocation2 + $0xb8] sm:$0xff] %vm224, 0.0
        %249 = vst.msk [vmem:[#allocation2 + $0xc0] sm:$0xff] %vm224, 0.0
        %250 = vst.msk [vmem:[#allocation2 + $0xc8] sm:$0xff] %vm224, 0.0
        %251 = vst.msk [vmem:[#allocation2 + $0xd0] sm:$0xff] %vm224, 0.0
        %252 = vst.msk [vmem:[#allocation2 + $0xd8] sm:$0xff] %vm224, 0.0
        %253 = vst.msk [vmem:[#allocation2 + $0xe0] sm:$0xff] %vm224, 0.0
        %254 = vst.msk [vmem:[#allocation2 + $0xe8] sm:$0xff] %vm224, 0.0
        %255 = vst.msk [vmem:[#allocation2 + $0xf0] sm:$0xff] %vm224, 0.0
        %256 = vst.msk [vmem:[#allocation2 + $0xf8] sm:$0xff] %vm224, 0.0
      $region36: #{cnn_forward.4} parent=31 // pred_fallthru
        _
      %v257 = vld [vmem:[#allocation2] sm:$0xff]
      %v258 = vld [vmem:[#allocation2 + $0x8] sm:$0xff]
      %v259 = vld [vmem:[#allocation2 + $0x10] sm:$0xff]
      %v260 = vld [vmem:[#allocation2 + $0x18] sm:$0xff]
      %v261 = vld [vmem:[#allocation2 + $0x20] sm:$0xff]
      %v262 = vld [vmem:[#allocation2 + $0x28] sm:$0xff]
      %v263 = vld [vmem:[#allocation2 + $0x30] sm:$0xff]
      %v264 = vld [vmem:[#allocation2 + $0x38] sm:$0xff]
      %v265 = vld [vmem:[#allocation2 + $0x40] sm:$0xff]
      %v266 = vld [vmem:[#allocation2 + $0x48] sm:$0xff]
      %v267 = vld [vmem:[#allocation2 + $0x50] sm:$0xff]
      %v268 = vld [vmem:[#allocation2 + $0x58] sm:$0xff]
      %v269 = vld [vmem:[#allocation2 + $0x60] sm:$0xff]
      %v270 = vld [vmem:[#allocation2 + $0x68] sm:$0xff]
      %v271 = vld [vmem:[#allocation2 + $0x70] sm:$0xff]
      %v272 = vld [vmem:[#allocation2 + $0x78] sm:$0xff]
      %v273 = vld [vmem:[#allocation2 + $0x80] sm:$0xff]
      %v274 = vld [vmem:[#allocation2 + $0x88] sm:$0xff]
      %v275 = vld [vmem:[#allocation2 + $0x90] sm:$0xff]
      %v276 = vld [vmem:[#allocation2 + $0x98] sm:$0xff]
      %v277 = vld [vmem:[#allocation2 + $0xa0] sm:$0xff]
      %v278 = vld [vmem:[#allocation2 + $0xa8] sm:$0xff]
      %v279 = vld [vmem:[#allocation2 + $0xb0] sm:$0xff]
      %v280 = vld [vmem:[#allocation2 + $0xb8] sm:$0xff]
      %v281 = vld [vmem:[#allocation2 + $0xc0] sm:$0xff]
      %v282 = vld [vmem:[#allocation2 + $0xc8] sm:$0xff]
      %v283 = vld [vmem:[#allocation2 + $0xd0] sm:$0xff]
      %v284 = vld [vmem:[#allocation2 + $0xd8] sm:$0xff]
      %v285 = vld [vmem:[#allocation2 + $0xe0] sm:$0xff]
      %v286 = vld [vmem:[#allocation2 + $0xe8] sm:$0xff]
      %v287 = vld [vmem:[#allocation2 + $0xf0] sm:$0xff]
      %v288 = vld [vmem:[#allocation2 + $0xf8] sm:$0xff]
      %v289 = vld [vmem:[%s205] sm:$0xf]
      %v290 = vld [vmem:[%s205 + $0x4] sm:$0xf]
      %v291 = vld [vmem:[%s205 + $0x8] sm:$0xf]
      %v292 = vld [vmem:[%s205 + $0xc] sm:$0xf]
      %v293 = vld [vmem:[%s205 + $0x10] sm:$0xf]
      %v294 = vld [vmem:[%s205 + $0x14] sm:$0xf]
      %v295 = vld [vmem:[%s205 + $0x18] sm:$0xf]
      %v296 = vld [vmem:[%s205 + $0x1c] sm:$0xf]
      %v297 = vld [vmem:[%s205 + $0x20] sm:$0xf]
      %v298 = vld [vmem:[%s205 + $0x24] sm:$0xf]
      %v299 = vld [vmem:[%s205 + $0x28] sm:$0xf]
      %v300 = vld [vmem:[%s205 + $0x2c] sm:$0xf]
      %v301 = vld [vmem:[%s205 + $0x30] sm:$0xf]
      %v302 = vld [vmem:[%s205 + $0x34] sm:$0xf]
      %v303 = vld [vmem:[%s205 + $0x38] sm:$0xf]
      %v304 = vld [vmem:[%s205 + $0x3c] sm:$0xf]
      %v305 = vld [vmem:[%s205 + $0x40] sm:$0xf]
      %v306 = vld [vmem:[%s205 + $0x44] sm:$0xf]
      %v307 = vld [vmem:[%s205 + $0x48] sm:$0xf]
      %v308 = vld [vmem:[%s205 + $0x4c] sm:$0xf]
      %v309 = vld [vmem:[%s205 + $0x50] sm:$0xf]
      %v310 = vld [vmem:[%s205 + $0x54] sm:$0xf]
      %v311 = vld [vmem:[%s205 + $0x58] sm:$0xf]
      %v312 = vld [vmem:[%s205 + $0x5c] sm:$0xf]
      %v313 = vld [vmem:[%s205 + $0x60] sm:$0xf]
      %v314 = vld [vmem:[%s205 + $0x64] sm:$0xf]
      %v315 = vld [vmem:[%s205 + $0x68] sm:$0xf]
      %v316 = vld [vmem:[%s205 + $0x6c] sm:$0xf]
      %v317 = vld [vmem:[%s205 + $0x70] sm:$0xf]
      %v318 = vld [vmem:[%s205 + $0x74] sm:$0xf]
      %v319 = vld [vmem:[%s205 + $0x78] sm:$0xf]
      %v320 = vld [vmem:[%s205 + $0x7c] sm:$0xf]
      %v321 = vld [vmem:[%s211] sm:$0xf]
      %v322 = vld [vmem:[%s211 + $0x4] sm:$0xf]
      %v323 = vld [vmem:[%s211 + $0x8] sm:$0xf]
      %v324 = vld [vmem:[%s211 + $0xc] sm:$0xf]
      %v325 = vld [vmem:[%s211 + $0x10] sm:$0xf]
      %v326 = vld [vmem:[%s211 + $0x14] sm:$0xf]
      %v327 = vld [vmem:[%s211 + $0x18] sm:$0x7]
      %v360 = vunpack.c.l.b16 %v289
      %v361 = vunpack.c.l.b16 %v290
      %v362 = vunpack.c.l.b16 %v291
      %v363 = vunpack.c.l.b16 %v292
      %v364 = vunpack.c.l.b16 %v293
      %v365 = vunpack.c.l.b16 %v294
      %v366 = vunpack.c.l.b16 %v295
      %v367 = vunpack.c.l.b16 %v296
      %v368 = vunpack.c.l.b16 %v297
      %v369 = vunpack.c.l.b16 %v298
      %v370 = vunpack.c.l.b16 %v299
      %v371 = vunpack.c.l.b16 %v300
      %v372 = vunpack.c.l.b16 %v301
      %v373 = vunpack.c.l.b16 %v302
      %v374 = vunpack.c.l.b16 %v303
      %v375 = vunpack.c.l.b16 %v304
      %v376 = vunpack.c.l.b16 %v305
      %v377 = vunpack.c.l.b16 %v306
      %v378 = vunpack.c.l.b16 %v307
      %v379 = vunpack.c.l.b16 %v308
      %v380 = vunpack.c.l.b16 %v309
      %v381 = vunpack.c.l.b16 %v310
      %v382 = vunpack.c.l.b16 %v311
      %v383 = vunpack.c.l.b16 %v312
      %v384 = vunpack.c.l.b16 %v313
      %v385 = vunpack.c.l.b16 %v314
      %v386 = vunpack.c.l.b16 %v315
      %v387 = vunpack.c.l.b16 %v316
      %v388 = vunpack.c.l.b16 %v317
      %v389 = vunpack.c.l.b16 %v318
      %v390 = vunpack.c.l.b16 %v319
      %v391 = vunpack.c.l.b16 %v320
      %v392 = vpack.c.b16 %v361, %v360
      %v393 = vpack.c.b16 %v363, %v362
      %v394 = vpack.c.b16 %v365, %v364
      %v395 = vpack.c.b16 %v367, %v366
      %v396 = vpack.c.b16 %v369, %v368
      %v397 = vpack.c.b16 %v371, %v370
      %v398 = vpack.c.b16 %v373, %v372
      %v399 = vpack.c.b16 %v375, %v374
      %v400 = vpack.c.b16 %v377, %v376
      %v401 = vpack.c.b16 %v379, %v378
      %v402 = vpack.c.b16 %v381, %v380
      %v403 = vpack.c.b16 %v383, %v382
      %v404 = vpack.c.b16 %v385, %v384
      %v405 = vpack.c.b16 %v387, %v386
      %v406 = vpack.c.b16 %v389, %v388
      %v407 = vpack.c.b16 %v391, %v390
      %v415 = vunpack.c.l.b16 %v321
      %v416 = vunpack.c.l.b16 %v322
      %v417 = vunpack.c.l.b16 %v323
      %v418 = vunpack.c.l.b16 %v324
      %v419 = vunpack.c.l.b16 %v325
      %v420 = vunpack.c.l.b16 %v326
      %v421 = vunpack.c.l.b16 %v327
      %v422 = vpack.c.b16 %v416, %v415
      %v423 = vpack.c.b16 %v418, %v417
      %v424 = vpack.c.b16 %v420, %v419
      %v425 = vpack.c.b16 %v421, %v421
      %vm429 = vcmask 441344
      %v431 = vsel %vm429, %v392, 0
      %v434 = vsel %vm429, %v393, 0
      %v437 = vsel %vm429, %v394, 0
      %v440 = vsel %vm429, %v395, 0
      %v443 = vsel %vm429, %v396, 0
      %v446 = vsel %vm429, %v397, 0
      %v449 = vsel %vm429, %v398, 0
      %v452 = vsel %vm429, %v399, 0
      %v455 = vsel %vm429, %v400, 0
      %v458 = vsel %vm429, %v401, 0
      %v461 = vsel %vm429, %v402, 0
      %v464 = vsel %vm429, %v403, 0
      %v467 = vsel %vm429, %v404, 0
      %v470 = vsel %vm429, %v405, 0
      %v473 = vsel %vm429, %v406, 0
      %v476 = vsel %vm429, %v407, 0
      %vm478 = vcmask 1042432
      %v480 = vsel %vm478, %v425, 0
      %482 = vmatprep.subr.bf16.mxu0 0
      %483 = vmatpush1.bf16.msra.mxu0 0
      %484 = vmatprep.subr.bf16.mxu0 0
      %485 = vmatpush1.bf16.msra.mxu0 0
      %486 = vmatprep.subr.bf16.mxu0 0
      %487 = vmatpush1.bf16.msra.mxu0 0
      %488 = vmatprep.subr.bf16.mxu0 0
      %489 = vmatpush1.bf16.msra.mxu0 0
      %490 = vmatprep.subr.bf16.mxu0 0
      %491 = vmatpush1.bf16.msra.mxu0 %v480
      %492 = vmatprep.subr.bf16.mxu0 0
      %493 = vmatpush1.bf16.msra.mxu0 %v424
      %494 = vmatprep.subr.bf16.mxu0 0
      %495 = vmatpush1.bf16.msra.mxu0 %v423
      %496 = vmatprep.subr.bf16.mxu0 0
      %497 = vmatpush1.bf16.msra.mxu0 %v422
      %498 = vmatprep.subr.bf16.mxu0 0
      %499 = vmatpush2.bf16.msra.mxu0 0
      %500 = vmatprep.subr.bf16.mxu0 0
      %501 = vmatpush2.bf16.msra.mxu0 0
      %502 = vmatprep.subr.bf16.mxu0 0
      %503 = vmatpush2.bf16.msra.mxu0 0
      %504 = vmatprep.subr.bf16.mxu0 0
      %505 = vmatpush2.bf16.msra.mxu0 0
      %506 = vmatprep.subr.bf16.mxu0 0
      %507 = vmatpush2.bf16.msra.mxu0 0
      %508 = vmatprep.subr.bf16.mxu0 0
      %509 = vmatpush2.bf16.msra.mxu0 0
      %510 = vmatprep.subr.bf16.mxu0 0
      %511 = vmatpush2.bf16.msra.mxu0 0
      %512 = vmatprep.subr.bf16.mxu0 0
      %513 = vmatpush2.bf16.msra.mxu0 0
      %514 = vmatprep.mubr.bf16.mxu0 0
      %515 = vmatmul.mubr.bf16.gmra.mxu0 %v431
      %v516 = vpop.f32.mrf.mxu0
      %v517 = vadd.f32 0.0, %v516
      %v518 = vpop.f32.mrf.mxu0
      %v519 = vpop.f32.mrf.mxu0
      %v520 = vadd.f32 0.0, %v519
      %v521 = vpop.f32.mrf.mxu0
      %522 = vmatprep.mubr.bf16.mxu0 0
      %523 = vmatmul.mubr.bf16.gmra.mxu0 %v434
      %v524 = vpop.f32.mrf.mxu0
      %v525 = vadd.f32 0.0, %v524
      %v526 = vpop.f32.mrf.mxu0
      %v527 = vpop.f32.mrf.mxu0
      %v528 = vadd.f32 0.0, %v527
      %v529 = vpop.f32.mrf.mxu0
      %530 = vmatprep.mubr.bf16.mxu0 0
      %531 = vmatmul.mubr.bf16.gmra.mxu0 %v437
      %v532 = vpop.f32.mrf.mxu0
      %v533 = vadd.f32 0.0, %v532
      %v534 = vpop.f32.mrf.mxu0
      %v535 = vpop.f32.mrf.mxu0
      %v536 = vadd.f32 0.0, %v535
      %v537 = vpop.f32.mrf.mxu0
      %538 = vmatprep.mubr.bf16.mxu0 0
      %539 = vmatmul.mubr.bf16.gmra.mxu0 %v440
      %v540 = vpop.f32.mrf.mxu0
      %v541 = vadd.f32 0.0, %v540
      %v542 = vpop.f32.mrf.mxu0
      %v543 = vpop.f32.mrf.mxu0
      %v544 = vadd.f32 0.0, %v543
      %v545 = vpop.f32.mrf.mxu0
      %546 = vmatprep.mubr.bf16.mxu0 0
      %547 = vmatmul.mubr.bf16.gmra.mxu0 %v443
      %v548 = vpop.f32.mrf.mxu0
      %v549 = vadd.f32 0.0, %v548
      %v550 = vpop.f32.mrf.mxu0
      %v551 = vpop.f32.mrf.mxu0
      %v552 = vadd.f32 0.0, %v551
      %v553 = vpop.f32.mrf.mxu0
      %554 = vmatprep.mubr.bf16.mxu0 0
      %555 = vmatmul.mubr.bf16.gmra.mxu0 %v446
      %v556 = vpop.f32.mrf.mxu0
      %v557 = vadd.f32 0.0, %v556
      %v558 = vpop.f32.mrf.mxu0
      %v559 = vpop.f32.mrf.mxu0
      %v560 = vadd.f32 0.0, %v559
      %v561 = vpop.f32.mrf.mxu0
      %562 = vmatprep.mubr.bf16.mxu0 0
      %563 = vmatmul.mubr.bf16.gmra.mxu0 %v449
      %v564 = vpop.f32.mrf.mxu0
      %v565 = vadd.f32 0.0, %v564
      %v566 = vpop.f32.mrf.mxu0
      %v567 = vpop.f32.mrf.mxu0
      %v568 = vadd.f32 0.0, %v567
      %v569 = vpop.f32.mrf.mxu0
      %570 = vmatprep.mubr.bf16.mxu0 0
      %571 = vmatmul.mubr.bf16.gmra.mxu0 %v452
      %v572 = vpop.f32.mrf.mxu0
      %v573 = vadd.f32 0.0, %v572
      %v574 = vpop.f32.mrf.mxu0
      %v575 = vpop.f32.mrf.mxu0
      %v576 = vadd.f32 0.0, %v575
      %v577 = vpop.f32.mrf.mxu0
      %578 = vmatprep.mubr.bf16.mxu0 0
      %579 = vmatmul.mubr.bf16.gmra.mxu0 %v455
      %v580 = vpop.f32.mrf.mxu0
      %v581 = vadd.f32 0.0, %v580
      %v582 = vpop.f32.mrf.mxu0
      %v583 = vpop.f32.mrf.mxu0
      %v584 = vadd.f32 0.0, %v583
      %v585 = vpop.f32.mrf.mxu0
      %586 = vmatprep.mubr.bf16.mxu0 0
      %587 = vmatmul.mubr.bf16.gmra.mxu0 %v458
      %v588 = vpop.f32.mrf.mxu0
      %v589 = vadd.f32 0.0, %v588
      %v590 = vpop.f32.mrf.mxu0
      %v591 = vpop.f32.mrf.mxu0
      %v592 = vadd.f32 0.0, %v591
      %v593 = vpop.f32.mrf.mxu0
      %594 = vmatprep.mubr.bf16.mxu0 0
      %595 = vmatmul.mubr.bf16.gmra.mxu0 %v461
      %v596 = vpop.f32.mrf.mxu0
      %v597 = vadd.f32 0.0, %v596
      %v598 = vpop.f32.mrf.mxu0
      %v599 = vpop.f32.mrf.mxu0
      %v600 = vadd.f32 0.0, %v599
      %v601 = vpop.f32.mrf.mxu0
      %602 = vmatprep.mubr.bf16.mxu0 0
      %603 = vmatmul.mubr.bf16.gmra.mxu0 %v464
      %v604 = vpop.f32.mrf.mxu0
      %v605 = vadd.f32 0.0, %v604
      %v606 = vpop.f32.mrf.mxu0
      %v607 = vpop.f32.mrf.mxu0
      %v608 = vadd.f32 0.0, %v607
      %v609 = vpop.f32.mrf.mxu0
      %610 = vmatprep.mubr.bf16.mxu0 0
      %611 = vmatmul.mubr.bf16.gmra.mxu0 %v467
      %v612 = vpop.f32.mrf.mxu0
      %v613 = vadd.f32 0.0, %v612
      %v614 = vpop.f32.mrf.mxu0
      %v615 = vpop.f32.mrf.mxu0
      %v616 = vadd.f32 0.0, %v615
      %v617 = vpop.f32.mrf.mxu0
      %618 = vmatprep.mubr.bf16.mxu0 0
      %619 = vmatmul.mubr.bf16.gmra.mxu0 %v470
      %v620 = vpop.f32.mrf.mxu0
      %v621 = vadd.f32 0.0, %v620
      %v622 = vpop.f32.mrf.mxu0
      %v623 = vpop.f32.mrf.mxu0
      %v624 = vadd.f32 0.0, %v623
      %v625 = vpop.f32.mrf.mxu0
      %626 = vmatprep.mubr.bf16.mxu0 0
      %627 = vmatmul.mubr.bf16.gmra.mxu0 %v473
      %v628 = vpop.f32.mrf.mxu0
      %v629 = vadd.f32 0.0, %v628
      %v630 = vpop.f32.mrf.mxu0
      %v631 = vpop.f32.mrf.mxu0
      %v632 = vadd.f32 0.0, %v631
      %v633 = vpop.f32.mrf.mxu0
      %634 = vmatprep.mubr.bf16.mxu0 0
      %635 = vmatmul.mubr.bf16.gmra.mxu0 %v476
      %v636 = vpop.f32.mrf.mxu0
      %v637 = vadd.f32 0.0, %v636
      %v638 = vpop.f32.mrf.mxu0
      %v639 = vpop.f32.mrf.mxu0
      %v640 = vadd.f32 0.0, %v639
      %v641 = vpop.f32.mrf.mxu0
      %642 = vdwg.mxu0
      %v643 = vadd.f32 %v257, %v517
      %v644 = vadd.f32 %v258, %v520
      %v645 = vadd.f32 %v259, %v525
      %v646 = vadd.f32 %v260, %v528
      %v647 = vadd.f32 %v261, %v533
      %v648 = vadd.f32 %v262, %v536
      %v649 = vadd.f32 %v263, %v541
      %v650 = vadd.f32 %v264, %v544
      %v651 = vadd.f32 %v265, %v549
      %v652 = vadd.f32 %v266, %v552
      %v653 = vadd.f32 %v267, %v557
      %v654 = vadd.f32 %v268, %v560
      %v655 = vadd.f32 %v269, %v565
      %v656 = vadd.f32 %v270, %v568
      %v657 = vadd.f32 %v271, %v573
      %v658 = vadd.f32 %v272, %v576
      %v659 = vadd.f32 %v273, %v581
      %v660 = vadd.f32 %v274, %v584
      %v661 = vadd.f32 %v275, %v589
      %v662 = vadd.f32 %v276, %v592
      %v663 = vadd.f32 %v277, %v597
      %v664 = vadd.f32 %v278, %v600
      %v665 = vadd.f32 %v279, %v605
      %v666 = vadd.f32 %v280, %v608
      %v667 = vadd.f32 %v281, %v613
      %v668 = vadd.f32 %v282, %v616
      %v669 = vadd.f32 %v283, %v621
      %v670 = vadd.f32 %v284, %v624
      %v671 = vadd.f32 %v285, %v629
      %v672 = vadd.f32 %v286, %v632
      %v673 = vadd.f32 %v287, %v637
      %v674 = vadd.f32 %v288, %v640
      %vm675 = vcmask 130048
      %676 = vst.msk [vmem:[#allocation2] sm:$0xff] %vm675, %v643
      %677 = vst.msk [vmem:[#allocation2 + $0x8] sm:$0xff] %vm675, %v644
      %678 = vst.msk [vmem:[#allocation2 + $0x10] sm:$0xff] %vm675, %v645
      %679 = vst.msk [vmem:[#allocation2 + $0x18] sm:$0xff] %vm675, %v646
      %680 = vst.msk [vmem:[#allocation2 + $0x20] sm:$0xff] %vm675, %v647
      %681 = vst.msk [vmem:[#allocation2 + $0x28] sm:$0xff] %vm675, %v648
      %682 = vst.msk [vmem:[#allocation2 + $0x30] sm:$0xff] %vm675, %v649
      %683 = vst.msk [vmem:[#allocation2 + $0x38] sm:$0xff] %vm675, %v650
      %684 = vst.msk [vmem:[#allocation2 + $0x40] sm:$0xff] %vm675, %v651
      %685 = vst.msk [vmem:[#allocation2 + $0x48] sm:$0xff] %vm675, %v652
      %686 = vst.msk [vmem:[#allocation2 + $0x50] sm:$0xff] %vm675, %v653
      %687 = vst.msk [vmem:[#allocation2 + $0x58] sm:$0xff] %vm675, %v654
      %688 = vst.msk [vmem:[#allocation2 + $0x60] sm:$0xff] %vm675, %v655
      %689 = vst.msk [vmem:[#allocation2 + $0x68] sm:$0xff] %vm675, %v656
      %690 = vst.msk [vmem:[#allocation2 + $0x70] sm:$0xff] %vm675, %v657
      %691 = vst.msk [vmem:[#allocation2 + $0x78] sm:$0xff] %vm675, %v658
      %692 = vst.msk [vmem:[#allocation2 + $0x80] sm:$0xff] %vm675, %v659
      %693 = vst.msk [vmem:[#allocation2 + $0x88] sm:$0xff] %vm675, %v660
      %694 = vst.msk [vmem:[#allocation2 + $0x90] sm:$0xff] %vm675, %v661
      %695 = vst.msk [vmem:[#allocation2 + $0x98] sm:$0xff] %vm675, %v662
      %696 = vst.msk [vmem:[#allocation2 + $0xa0] sm:$0xff] %vm675, %v663
      %697 = vst.msk [vmem:[#allocation2 + $0xa8] sm:$0xff] %vm675, %v664
      %698 = vst.msk [vmem:[#allocation2 + $0xb0] sm:$0xff] %vm675, %v665
      %699 = vst.msk [vmem:[#allocation2 + $0xb8] sm:$0xff] %vm675, %v666
      %700 = vst.msk [vmem:[#allocation2 + $0xc0] sm:$0xff] %vm675, %v667
      %701 = vst.msk [vmem:[#allocation2 + $0xc8] sm:$0xff] %vm675, %v668
      %702 = vst.msk [vmem:[#allocation2 + $0xd0] sm:$0xff] %vm675, %v669
      %703 = vst.msk [vmem:[#allocation2 + $0xd8] sm:$0xff] %vm675, %v670
      %704 = vst.msk [vmem:[#allocation2 + $0xe0] sm:$0xff] %vm675, %v671
      %705 = vst.msk [vmem:[#allocation2 + $0xe8] sm:$0xff] %vm675, %v672
      %706 = vst.msk [vmem:[#allocation2 + $0xf0] sm:$0xff] %vm675, %v673
      %707 = vst.msk [vmem:[#allocation2 + $0xf8] sm:$0xff] %vm675, %v674
      // Predicated region
      $region37: #{cnn_forward.4} parent=31 // pred_check
        %p708 = pneg %p220
      $region38: #{cnn_forward.4} parent=31 // pred_check_branch
        %710 = sbr.rel (%p708) target = $region40
      $region39: #{cnn_forward.4} parent=31 // pred_region
        %v711 = vld [vmem:[#allocation2] sm:$0xff]
        %v712 = vld [vmem:[#allocation2 + $0x8] sm:$0xff]
        %v713 = vld [vmem:[#allocation2 + $0x10] sm:$0xff]
        %v714 = vld [vmem:[#allocation2 + $0x18] sm:$0xff]
        %v715 = vld [vmem:[#allocation2 + $0x20] sm:$0xff]
        %v716 = vld [vmem:[#allocation2 + $0x28] sm:$0xff]
        %v717 = vld [vmem:[#allocation2 + $0x30] sm:$0xff]
        %v718 = vld [vmem:[#allocation2 + $0x38] sm:$0xff]
        %v719 = vld [vmem:[#allocation2 + $0x40] sm:$0xff]
        %v720 = vld [vmem:[#allocation2 + $0x48] sm:$0xff]
        %v721 = vld [vmem:[#allocation2 + $0x50] sm:$0xff]
        %v722 = vld [vmem:[#allocation2 + $0x58] sm:$0xff]
        %v723 = vld [vmem:[#allocation2 + $0x60] sm:$0xff]
        %v724 = vld [vmem:[#allocation2 + $0x68] sm:$0xff]
        %v725 = vld [vmem:[#allocation2 + $0x70] sm:$0xff]
        %v726 = vld [vmem:[#allocation2 + $0x78] sm:$0xff]
        %v727 = vld [vmem:[#allocation2 + $0x80] sm:$0xff]
        %v728 = vld [vmem:[#allocation2 + $0x88] sm:$0xff]
        %v729 = vld [vmem:[#allocation2 + $0x90] sm:$0xff]
        %v730 = vld [vmem:[#allocation2 + $0x98] sm:$0xff]
        %v731 = vld [vmem:[#allocation2 + $0xa0] sm:$0xff]
        %v732 = vld [vmem:[#allocation2 + $0xa8] sm:$0xff]
        %v733 = vld [vmem:[#allocation2 + $0xb0] sm:$0xff]
        %v734 = vld [vmem:[#allocation2 + $0xb8] sm:$0xff]
        %v735 = vld [vmem:[#allocation2 + $0xc0] sm:$0xff]
        %v736 = vld [vmem:[#allocation2 + $0xc8] sm:$0xff]
        %v737 = vld [vmem:[#allocation2 + $0xd0] sm:$0xff]
        %v738 = vld [vmem:[#allocation2 + $0xd8] sm:$0xff]
        %v739 = vld [vmem:[#allocation2 + $0xe0] sm:$0xff]
        %v740 = vld [vmem:[#allocation2 + $0xe8] sm:$0xff]
        %v741 = vld [vmem:[#allocation2 + $0xf0] sm:$0xff]
        %v742 = vld [vmem:[#allocation2 + $0xf8] sm:$0xff]
        %v743 = vld [vmem:[%s2] sm:$0x1]
        %v745 = vlaneseq
        %v746 = vshrl.u32 %v745, 7
        %v747 = vsub.s32 0, %v746
        %v748 = vrot.slane %v743, %v747
        %v750 = vadd.f32 %v711, %v748
        %v751 = vadd.f32 %v712, %v748
        %v752 = vadd.f32 %v713, %v748
        %v753 = vadd.f32 %v714, %v748
        %v754 = vadd.f32 %v715, %v748
        %v755 = vadd.f32 %v716, %v748
        %v756 = vadd.f32 %v717, %v748
        %v757 = vadd.f32 %v718, %v748
        %v758 = vadd.f32 %v719, %v748
        %v759 = vadd.f32 %v720, %v748
        %v760 = vadd.f32 %v721, %v748
        %v761 = vadd.f32 %v722, %v748
        %v762 = vadd.f32 %v723, %v748
        %v763 = vadd.f32 %v724, %v748
        %v764 = vadd.f32 %v725, %v748
        %v765 = vadd.f32 %v726, %v748
        %v766 = vadd.f32 %v727, %v748
        %v767 = vadd.f32 %v728, %v748
        %v768 = vadd.f32 %v729, %v748
        %v769 = vadd.f32 %v730, %v748
        %v770 = vadd.f32 %v731, %v748
        %v771 = vadd.f32 %v732, %v748
        %v772 = vadd.f32 %v733, %v748
        %v773 = vadd.f32 %v734, %v748
        %v774 = vadd.f32 %v735, %v748
        %v775 = vadd.f32 %v736, %v748
        %v776 = vadd.f32 %v737, %v748
        %v777 = vadd.f32 %v738, %v748
        %v778 = vadd.f32 %v739, %v748
        %v779 = vadd.f32 %v740, %v748
        %v780 = vadd.f32 %v741, %v748
        %v781 = vadd.f32 %v742, %v748
        %v782 = vmax.f32 %v750, 0.0
        %v783 = vmax.f32 %v751, 0.0
        %v784 = vmax.f32 %v752, 0.0
        %v785 = vmax.f32 %v753, 0.0
        %v786 = vmax.f32 %v754, 0.0
        %v787 = vmax.f32 %v755, 0.0
        %v788 = vmax.f32 %v756, 0.0
        %v789 = vmax.f32 %v757, 0.0
        %v790 = vmax.f32 %v758, 0.0
        %v791 = vmax.f32 %v759, 0.0
        %v792 = vmax.f32 %v760, 0.0
        %v793 = vmax.f32 %v761, 0.0
        %v794 = vmax.f32 %v762, 0.0
        %v795 = vmax.f32 %v763, 0.0
        %v796 = vmax.f32 %v764, 0.0
        %v797 = vmax.f32 %v765, 0.0
        %v798 = vmax.f32 %v766, 0.0
        %v799 = vmax.f32 %v767, 0.0
        %v800 = vmax.f32 %v768, 0.0
        %v801 = vmax.f32 %v769, 0.0
        %v802 = vmax.f32 %v770, 0.0
        %v803 = vmax.f32 %v771, 0.0
        %v804 = vmax.f32 %v772, 0.0
        %v805 = vmax.f32 %v773, 0.0
        %v806 = vmax.f32 %v774, 0.0
        %v807 = vmax.f32 %v775, 0.0
        %v808 = vmax.f32 %v776, 0.0
        %v809 = vmax.f32 %v777, 0.0
        %v810 = vmax.f32 %v778, 0.0
        %v811 = vmax.f32 %v779, 0.0
        %v812 = vmax.f32 %v780, 0.0
        %v813 = vmax.f32 %v781, 0.0
        %v814 = vpack.c.bf16 %v783, %v782
        %v815 = vpack.c.bf16 %v785, %v784
        %v816 = vpack.c.bf16 %v787, %v786
        %v817 = vpack.c.bf16 %v789, %v788
        %v818 = vpack.c.bf16 %v791, %v790
        %v819 = vpack.c.bf16 %v793, %v792
        %v820 = vpack.c.bf16 %v795, %v794
        %v821 = vpack.c.bf16 %v797, %v796
        %v822 = vpack.c.bf16 %v799, %v798
        %v823 = vpack.c.bf16 %v801, %v800
        %v824 = vpack.c.bf16 %v803, %v802
        %v825 = vpack.c.bf16 %v805, %v804
        %v826 = vpack.c.bf16 %v807, %v806
        %v827 = vpack.c.bf16 %v809, %v808
        %v828 = vpack.c.bf16 %v811, %v810
        %v829 = vpack.c.bf16 %v813, %v812
        %v846 = vunpack.c.l.b16 %v814
        %v847 = vunpack.c.h.b16 %v814
        %v848 = vunpack.c.l.b16 %v815
        %v849 = vunpack.c.h.b16 %v815
        %v850 = vunpack.c.l.b16 %v816
        %v851 = vunpack.c.h.b16 %v816
        %v852 = vunpack.c.l.b16 %v817
        %v853 = vunpack.c.h.b16 %v817
        %v854 = vunpack.c.l.b16 %v818
        %v855 = vunpack.c.h.b16 %v818
        %v856 = vunpack.c.l.b16 %v819
        %v857 = vunpack.c.h.b16 %v819
        %v858 = vunpack.c.l.b16 %v820
        %v859 = vunpack.c.h.b16 %v820
        %v860 = vunpack.c.l.b16 %v821
        %v861 = vunpack.c.h.b16 %v821
        %v862 = vunpack.c.l.b16 %v822
        %v863 = vunpack.c.h.b16 %v822
        %v864 = vunpack.c.l.b16 %v823
        %v865 = vunpack.c.h.b16 %v823
        %v866 = vunpack.c.l.b16 %v824
        %v867 = vunpack.c.h.b16 %v824
        %v868 = vunpack.c.l.b16 %v825
        %v869 = vunpack.c.h.b16 %v825
        %v870 = vunpack.c.l.b16 %v826
        %v871 = vunpack.c.h.b16 %v826
        %v872 = vunpack.c.l.b16 %v827
        %v873 = vunpack.c.h.b16 %v827
        %v874 = vunpack.c.l.b16 %v828
        %v875 = vunpack.c.h.b16 %v828
        %v876 = vunpack.c.l.b16 %v829
        %v877 = vunpack.c.h.b16 %v829
        %v878 = vpack.c.b16 %v846, %v846
        %v879 = vpack.c.b16 %v847, %v847
        %v880 = vpack.c.b16 %v848, %v848
        %v881 = vpack.c.b16 %v849, %v849
        %v882 = vpack.c.b16 %v850, %v850
        %v883 = vpack.c.b16 %v851, %v851
        %v884 = vpack.c.b16 %v852, %v852
        %v885 = vpack.c.b16 %v853, %v853
        %v886 = vpack.c.b16 %v854, %v854
        %v887 = vpack.c.b16 %v855, %v855
        %v888 = vpack.c.b16 %v856, %v856
        %v889 = vpack.c.b16 %v857, %v857
        %v890 = vpack.c.b16 %v858, %v858
        %v891 = vpack.c.b16 %v859, %v859
        %v892 = vpack.c.b16 %v860, %v860
        %v893 = vpack.c.b16 %v861, %v861
        %v894 = vpack.c.b16 %v862, %v862
        %v895 = vpack.c.b16 %v863, %v863
        %v896 = vpack.c.b16 %v864, %v864
        %v897 = vpack.c.b16 %v865, %v865
        %v898 = vpack.c.b16 %v866, %v866
        %v899 = vpack.c.b16 %v867, %v867
        %v900 = vpack.c.b16 %v868, %v868
        %v901 = vpack.c.b16 %v869, %v869
        %v902 = vpack.c.b16 %v870, %v870
        %v903 = vpack.c.b16 %v871, %v871
        %v904 = vpack.c.b16 %v872, %v872
        %v905 = vpack.c.b16 %v873, %v873
        %v906 = vpack.c.b16 %v874, %v874
        %v907 = vpack.c.b16 %v875, %v875
        %v908 = vpack.c.b16 %v876, %v876
        %v909 = vpack.c.b16 %v877, %v877
        %vm942 = vcmask 125952
        %943 = vst.msk [vmem:[%s217] sm:$0xf] %vm942, %v878
        %944 = vst.msk [vmem:[%s217 + $0x4] sm:$0xf] %vm942, %v879
        %945 = vst.msk [vmem:[%s217 + $0x8] sm:$0xf] %vm942, %v880
        %946 = vst.msk [vmem:[%s217 + $0xc] sm:$0xf] %vm942, %v881
        %947 = vst.msk [vmem:[%s217 + $0x10] sm:$0xf] %vm942, %v882
        %948 = vst.msk [vmem:[%s217 + $0x14] sm:$0xf] %vm942, %v883
        %949 = vst.msk [vmem:[%s217 + $0x18] sm:$0xf] %vm942, %v884
        %950 = vst.msk [vmem:[%s217 + $0x1c] sm:$0xf] %vm942, %v885
        %951 = vst.msk [vmem:[%s217 + $0x20] sm:$0xf] %vm942, %v886
        %952 = vst.msk [vmem:[%s217 + $0x24] sm:$0xf] %vm942, %v887
        %953 = vst.msk [vmem:[%s217 + $0x28] sm:$0xf] %vm942, %v888
        %954 = vst.msk [vmem:[%s217 + $0x2c] sm:$0xf] %vm942, %v889
        %955 = vst.msk [vmem:[%s217 + $0x30] sm:$0xf] %vm942, %v890
        %956 = vst.msk [vmem:[%s217 + $0x34] sm:$0xf] %vm942, %v891
        %957 = vst.msk [vmem:[%s217 + $0x38] sm:$0xf] %vm942, %v892
        %958 = vst.msk [vmem:[%s217 + $0x3c] sm:$0xf] %vm942, %v893
        %959 = vst.msk [vmem:[%s217 + $0x40] sm:$0xf] %vm942, %v894
        %960 = vst.msk [vmem:[%s217 + $0x44] sm:$0xf] %vm942, %v895
        %961 = vst.msk [vmem:[%s217 + $0x48] sm:$0xf] %vm942, %v896
        %962 = vst.msk [vmem:[%s217 + $0x4c] sm:$0xf] %vm942, %v897
        %963 = vst.msk [vmem:[%s217 + $0x50] sm:$0xf] %vm942, %v898
        %964 = vst.msk [vmem:[%s217 + $0x54] sm:$0xf] %vm942, %v899
        %965 = vst.msk [vmem:[%s217 + $0x58] sm:$0xf] %vm942, %v900
        %966 = vst.msk [vmem:[%s217 + $0x5c] sm:$0xf] %vm942, %v901
        %967 = vst.msk [vmem:[%s217 + $0x60] sm:$0xf] %vm942, %v902
        %968 = vst.msk [vmem:[%s217 + $0x64] sm:$0xf] %vm942, %v903
        %969 = vst.msk [vmem:[%s217 + $0x68] sm:$0xf] %vm942, %v904
        %970 = vst.msk [vmem:[%s217 + $0x6c] sm:$0xf] %vm942, %v905
        %971 = vst.msk [vmem:[%s217 + $0x70] sm:$0xf] %vm942, %v906
        %972 = vst.msk [vmem:[%s217 + $0x74] sm:$0xf] %vm942, %v907
        %973 = vst.msk [vmem:[%s217 + $0x78] sm:$0xf] %vm942, %v908
        %974 = vst.msk [vmem:[%s217 + $0x7c] sm:$0xf] %vm942, %v909
      $region40: #{cnn_forward.4} parent=31 // pred_fallthru
        _
      %s975 = smul.u32 32, %s18
      %p976 = scmp.lt.s32.totalorder %s975, 63
      %s977 = scalar_select %p976, %s975, 63
      %s978 = smul.addr %s977, 4
      %s979 = scalar_lea.vmem %s3, %s978
      // Predicated region
      $region41: #{cnn_forward.4} parent=31 // pred_check
        %p980 = pneg %p119
      $region42: #{cnn_forward.4} parent=31 // pred_check_branch
        %982 = sbr.rel (%p980) target = $region44
      $region43: #{cnn_forward.4} parent=31 // pred_region
        %s983 = smul.u32 32, %s18
      $region44: #{cnn_forward.4} parent=31 // pred_fallthru
        _
    $region32: #{cnn_forward.4} parent=5 // pred_fallthru
      _
    %p984 = scmp.le.s32.totalorder 2, %s9
    // Predicated region
    $region45: #{cnn_forward.4} parent=5 // pred_check
      %p985 = pneg %p984
    $region46: #{cnn_forward.4} parent=5 // pred_check_branch
      %987 = sbr.rel (%p985) target = $region48
    $region47: #{cnn_forward.4} parent=5 // pred_region
      %s988 = ssub.s32 %s9, 2
      // Predicated region
      $region49: #{cnn_forward.4} parent=47 // pred_check
        %p989 = pneg %p125
      $region50: #{cnn_forward.4} parent=47 // pred_check_branch
        %991 = sbr.rel (%p989) target = $region52
      $region51: #{cnn_forward.4} parent=47 // pred_region
        %s992 = smul.u32 32, %s20
        %p993 = scmp.lt.s32.totalorder %s992, 63
        %s994 = scalar_select %p993, %s992, 63
        %s995 = smul.addr %s994, 4
        %s996 = scalar_lea.vmem %s3, %s995
      $region52: #{cnn_forward.4} parent=47 // pred_fallthru
        _
    $region48: #{cnn_forward.4} parent=5 // pred_fallthru
      _
  $region6: #{cnn_forward.4} parent=0 // loop_footer
    %s13 = sadd.s32 1, %s9
  $region7: #{cnn_forward.4} parent=0 // loop_footer_branch
    %8 = sbr.rel target = $region3
  $region8: #{cnn_forward.4} parent=0 // loop_exit
    _

// kernel: cnn_forward.5
$region0: #{cnn_forward.5}
  #allocation0 [shape = 'u32[]', space=smem, size = 0x4, offset = 0x4, fixed_abs, tag = 'smem constant byte address 0x4 - core index']
  #allocation1 [shape = 'u32[144,128]{1,0:T(1,128)}', space=vmem, size = 0x12000, scoped, tag = 'internal scratch']
  #allocation2 [shape = 'f32[128,32]{1,0:T(8,128)}', space=vmem, size = 0x10000, scoped, tag = 'scratch operand']
  %s0 = inlined_call_operand.vmem [shape: bf16[128,144], index: 0, kind: input, shape index: {}]
  %s1 = inlined_call_operand.vmem [shape: bf16[144,32], index: 1, kind: input, shape index: {}]
  %s2 = inlined_call_operand.vmem [shape: f32[1,32], index: 2, kind: input, shape index: {}]
  %s3 = inlined_call_operand.vmem [shape: bf16[128,32], index: 3, kind: output, shape index: {}]
  %s4 = sld [smem:[#allocation0]]
  $region30: #{cnn_forward.5} parent=0
    _
  %s6 = ssub.s32 1, %s4
  %s7 = scalar_select 0, %s6, %s4
  // Predicated region
  $region2: #{cnn_forward.5} parent=0 // pred_check
    _
  $region3: #{cnn_forward.5} parent=0 // pred_check_branch
    %9 = sbr.rel (0) target = $region5
  $region4: #{cnn_forward.5} parent=0 // pred_region
    _
  $region5: #{cnn_forward.5} parent=0 // pred_fallthru
    _
  // Predicated region
  $region6: #{cnn_forward.5} parent=0 // pred_check
    _
  $region7: #{cnn_forward.5} parent=0 // pred_check_branch
    %11 = sbr.rel (0) target = $region9
  $region8: #{cnn_forward.5} parent=0 // pred_region
    _
  $region9: #{cnn_forward.5} parent=0 // pred_fallthru
    _
  // Predicated region
  $region10: #{cnn_forward.5} parent=0 // pred_check
    _
  $region11: #{cnn_forward.5} parent=0 // pred_check_branch
    %13 = sbr.rel (0) target = $region13
  $region12: #{cnn_forward.5} parent=0 // pred_region
    _
  $region13: #{cnn_forward.5} parent=0 // pred_fallthru
    _
  %p15 = scmp.eq.s32.totalorder 0, 0
  // Predicated region
  $region14: #{cnn_forward.5} parent=0 // pred_check
    %p16 = pneg %p15
  $region15: #{cnn_forward.5} parent=0 // pred_check_branch
    %18 = sbr.rel (%p16) target = $region17
  $region16: #{cnn_forward.5} parent=0 // pred_region
    %vm19 = vcmask 261120
    %20 = vst.msk [vmem:[#allocation2] sm:$0xff] %vm19, 0.0
    %21 = vst.msk [vmem:[#allocation2 + $0x8] sm:$0xff] %vm19, 0.0
    %22 = vst.msk [vmem:[#allocation2 + $0x10] sm:$0xff] %vm19, 0.0
    %23 = vst.msk [vmem:[#allocation2 + $0x18] sm:$0xff] %vm19, 0.0
    %24 = vst.msk [vmem:[#allocation2 + $0x20] sm:$0xff] %vm19, 0.0
    %25 = vst.msk [vmem:[#allocation2 + $0x28] sm:$0xff] %vm19, 0.0
    %26 = vst.msk [vmem:[#allocation2 + $0x30] sm:$0xff] %vm19, 0.0
    %27 = vst.msk [vmem:[#allocation2 + $0x38] sm:$0xff] %vm19, 0.0
    %28 = vst.msk [vmem:[#allocation2 + $0x40] sm:$0xff] %vm19, 0.0
    %29 = vst.msk [vmem:[#allocation2 + $0x48] sm:$0xff] %vm19, 0.0
    %30 = vst.msk [vmem:[#allocation2 + $0x50] sm:$0xff] %vm19, 0.0
    %31 = vst.msk [vmem:[#allocation2 + $0x58] sm:$0xff] %vm19, 0.0
    %32 = vst.msk [vmem:[#allocation2 + $0x60] sm:$0xff] %vm19, 0.0
    %33 = vst.msk [vmem:[#allocation2 + $0x68] sm:$0xff] %vm19, 0.0
    %34 = vst.msk [vmem:[#allocation2 + $0x70] sm:$0xff] %vm19, 0.0
    %35 = vst.msk [vmem:[#allocation2 + $0x78] sm:$0xff] %vm19, 0.0
  $region17: #{cnn_forward.5} parent=0 // pred_fallthru
    _
  %v36 = vld [vmem:[#allocation2] sm:$0xff]
  %v37 = vld [vmem:[#allocation2 + $0x8] sm:$0xff]
  %v38 = vld [vmem:[#allocation2 + $0x10] sm:$0xff]
  %v39 = vld [vmem:[#allocation2 + $0x18] sm:$0xff]
  %v40 = vld [vmem:[#allocation2 + $0x20] sm:$0xff]
  %v41 = vld [vmem:[#allocation2 + $0x28] sm:$0xff]
  %v42 = vld [vmem:[#allocation2 + $0x30] sm:$0xff]
  %v43 = vld [vmem:[#allocation2 + $0x38] sm:$0xff]
  %v44 = vld [vmem:[#allocation2 + $0x40] sm:$0xff]
  %v45 = vld [vmem:[#allocation2 + $0x48] sm:$0xff]
  %v46 = vld [vmem:[#allocation2 + $0x50] sm:$0xff]
  %v47 = vld [vmem:[#allocation2 + $0x58] sm:$0xff]
  %v48 = vld [vmem:[#allocation2 + $0x60] sm:$0xff]
  %v49 = vld [vmem:[#allocation2 + $0x68] sm:$0xff]
  %v50 = vld [vmem:[#allocation2 + $0x70] sm:$0xff]
  %v51 = vld [vmem:[#allocation2 + $0x78] sm:$0xff]
  %v52 = vld [vmem:[%s0] sm:$0xff]
  %v53 = vld [vmem:[%s0 + $0x8] sm:$0xff]
  %v54 = vld [vmem:[%s0 + $0x10] sm:$0xff]
  %v55 = vld [vmem:[%s0 + $0x18] sm:$0xff]
  %v56 = vld [vmem:[%s0 + $0x20] sm:$0xff]
  %v57 = vld [vmem:[%s0 + $0x28] sm:$0xff]
  %v58 = vld [vmem:[%s0 + $0x30] sm:$0xff]
  %v59 = vld [vmem:[%s0 + $0x38] sm:$0xff]
  %v60 = vld [vmem:[%s0 + $0x40] sm:$0xff]
  %v61 = vld [vmem:[%s0 + $0x48] sm:$0xff]
  %v62 = vld [vmem:[%s0 + $0x50] sm:$0xff]
  %v63 = vld [vmem:[%s0 + $0x58] sm:$0xff]
  %v64 = vld [vmem:[%s0 + $0x60] sm:$0xff]
  %v65 = vld [vmem:[%s0 + $0x68] sm:$0xff]
  %v66 = vld [vmem:[%s0 + $0x70] sm:$0xff]
  %v67 = vld [vmem:[%s0 + $0x78] sm:$0xff]
  %v68 = vld [vmem:[%s1] sm:$0xf]
  %v69 = vld [vmem:[%s1 + $0x4] sm:$0xf]
  %v70 = vld [vmem:[%s1 + $0x8] sm:$0xf]
  %v71 = vld [vmem:[%s1 + $0xc] sm:$0xf]
  %v72 = vld [vmem:[%s1 + $0x10] sm:$0xf]
  %v73 = vld [vmem:[%s1 + $0x14] sm:$0xf]
  %v74 = vld [vmem:[%s1 + $0x18] sm:$0xf]
  %v75 = vld [vmem:[%s1 + $0x1c] sm:$0xf]
  %v76 = vld [vmem:[%s1 + $0x20] sm:$0xf]
  %v77 = vld [vmem:[%s1 + $0x24] sm:$0xf]
  %v78 = vld [vmem:[%s1 + $0x28] sm:$0xf]
  %v79 = vld [vmem:[%s1 + $0x2c] sm:$0xf]
  %v80 = vld [vmem:[%s1 + $0x30] sm:$0xf]
  %v81 = vld [vmem:[%s1 + $0x34] sm:$0xf]
  %v82 = vld [vmem:[%s1 + $0x38] sm:$0xf]
  %v83 = vld [vmem:[%s1 + $0x3c] sm:$0xf]
  %v84 = vld [vmem:[%s1 + $0x40] sm:$0xf]
  %v85 = vld [vmem:[%s1 + $0x44] sm:$0xf]
  %v102 = vunpack.c.l.b16 %v52
  %v103 = vunpack.c.h.b16 %v52
  %v104 = vunpack.c.l.b16 %v53
  %v105 = vunpack.c.h.b16 %v53
  %v106 = vunpack.c.l.b16 %v54
  %v107 = vunpack.c.h.b16 %v54
  %v108 = vunpack.c.l.b16 %v55
  %v109 = vunpack.c.h.b16 %v55
  %v110 = vunpack.c.l.b16 %v56
  %v111 = vunpack.c.h.b16 %v56
  %v112 = vunpack.c.l.b16 %v57
  %v113 = vunpack.c.h.b16 %v57
  %v114 = vunpack.c.l.b16 %v58
  %v115 = vunpack.c.h.b16 %v58
  %v116 = vunpack.c.l.b16 %v59
  %v117 = vunpack.c.h.b16 %v59
  %v118 = vunpack.c.l.b16 %v60
  %v119 = vunpack.c.h.b16 %v60
  %v120 = vunpack.c.l.b16 %v61
  %v121 = vunpack.c.h.b16 %v61
  %v122 = vunpack.c.l.b16 %v62
  %v123 = vunpack.c.h.b16 %v62
  %v124 = vunpack.c.l.b16 %v63
  %v125 = vunpack.c.h.b16 %v63
  %v126 = vunpack.c.l.b16 %v64
  %v127 = vunpack.c.h.b16 %v64
  %v128 = vunpack.c.l.b16 %v65
  %v129 = vunpack.c.h.b16 %v65
  %v130 = vunpack.c.l.b16 %v66
  %v131 = vunpack.c.h.b16 %v66
  %v132 = vunpack.c.l.b16 %v67
  %v133 = vunpack.c.h.b16 %v67
  %v134 = vpack.c.b16 %v104, %v102
  %v135 = vpack.c.b16 %v105, %v103
  %v136 = vpack.c.b16 %v108, %v106
  %v137 = vpack.c.b16 %v109, %v107
  %v138 = vpack.c.b16 %v112, %v110
  %v139 = vpack.c.b16 %v113, %v111
  %v140 = vpack.c.b16 %v116, %v114
  %v141 = vpack.c.b16 %v117, %v115
  %v142 = vpack.c.b16 %v120, %v118
  %v143 = vpack.c.b16 %v121, %v119
  %v144 = vpack.c.b16 %v124, %v122
  %v145 = vpack.c.b16 %v125, %v123
  %v146 = vpack.c.b16 %v128, %v126
  %v147 = vpack.c.b16 %v129, %v127
  %v148 = vpack.c.b16 %v132, %v130
  %v149 = vpack.c.b16 %v133, %v131
  %v176 = vunpack.c.l.b16 %v68
  %v177 = vunpack.c.l.b16 %v69
  %v178 = vunpack.c.l.b16 %v70
  %v179 = vunpack.c.l.b16 %v71
  %v180 = vunpack.c.l.b16 %v72
  %v181 = vunpack.c.l.b16 %v73
  %v182 = vunpack.c.l.b16 %v74
  %v183 = vunpack.c.l.b16 %v75
  %v184 = vunpack.c.l.b16 %v76
  %v185 = vunpack.c.l.b16 %v77
  %v186 = vunpack.c.l.b16 %v78
  %v187 = vunpack.c.l.b16 %v79
  %v188 = vunpack.c.l.b16 %v80
  %v189 = vunpack.c.l.b16 %v81
  %v190 = vunpack.c.l.b16 %v82
  %v191 = vunpack.c.l.b16 %v83
  %v192 = vunpack.c.l.b16 %v84
  %v193 = vunpack.c.l.b16 %v85
  %v194 = vpack.c.b16 %v177, %v176
  %v195 = vpack.c.b16 %v179, %v178
  %v196 = vpack.c.b16 %v181, %v180
  %v197 = vpack.c.b16 %v183, %v182
  %v198 = vpack.c.b16 %v185, %v184
  %v199 = vpack.c.b16 %v187, %v186
  %v200 = vpack.c.b16 %v189, %v188
  %v201 = vpack.c.b16 %v191, %v190
  %v202 = vpack.c.b16 %v193, %v192
  %vm212 = vcmask 130048
  %v214 = vsel %vm212, %v135, 0
  %v217 = vsel %vm212, %v137, 0
  %v220 = vsel %vm212, %v139, 0
  %v223 = vsel %vm212, %v141, 0
  %v226 = vsel %vm212, %v143, 0
  %v229 = vsel %vm212, %v145, 0
  %v232 = vsel %vm212, %v147, 0
  %v235 = vsel %vm212, %v149, 0
  %237 = vmatprep.subr.bf16.mxu0 0
  %238 = vmatpush1.bf16.msra.mxu0 %v201
  %239 = vmatprep.subr.bf16.mxu0 0
  %240 = vmatpush1.bf16.msra.mxu0 %v200
  %241 = vmatprep.subr.bf16.mxu0 0
  %242 = vmatpush1.bf16.msra.mxu0 %v199
  %243 = vmatprep.subr.bf16.mxu0 0
  %244 = vmatpush1.bf16.msra.mxu0 %v198
  %245 = vmatprep.subr.bf16.mxu0 0
  %246 = vmatpush1.bf16.msra.mxu0 %v197
  %247 = vmatprep.subr.bf16.mxu0 0
  %248 = vmatpush1.bf16.msra.mxu0 %v196
  %249 = vmatprep.subr.bf16.mxu0 0
  %250 = vmatpush1.bf16.msra.mxu0 %v195
  %251 = vmatprep.subr.bf16.mxu0 0
  %252 = vmatpush1.bf16.msra.mxu0 %v194
  %253 = vmatprep.subr.bf16.mxu0 0
  %254 = vmatpush2.bf16.msra.mxu0 0
  %255 = vmatprep.subr.bf16.mxu0 0
  %256 = vmatpush2.bf16.msra.mxu0 0
  %257 = vmatprep.subr.bf16.mxu0 0
  %258 = vmatpush2.bf16.msra.mxu0 0
  %259 = vmatprep.subr.bf16.mxu0 0
  %260 = vmatpush2.bf16.msra.mxu0 0
  %261 = vmatprep.subr.bf16.mxu0 0
  %262 = vmatpush2.bf16.msra.mxu0 0
  %263 = vmatprep.subr.bf16.mxu0 0
  %264 = vmatpush2.bf16.msra.mxu0 0
  %265 = vmatprep.subr.bf16.mxu0 0
  %266 = vmatpush2.bf16.msra.mxu0 0
  %267 = vmatprep.subr.bf16.mxu0 0
  %268 = vmatpush2.bf16.msra.mxu0 %v202
  %269 = vmatprep.mubr.bf16.mxu0 %v214
  %270 = vmatmul.mubr.bf16.gmra.mxu0 %v134
  %v271 = vpop.f32.mrf.mxu0
  %v272 = vadd.f32 0.0, %v271
  %v273 = vpop.f32.mrf.mxu0
  %v274 = vpop.f32.mrf.mxu0
  %v275 = vadd.f32 0.0, %v274
  %v276 = vpop.f32.mrf.mxu0
  %277 = vmatprep.mubr.bf16.mxu0 %v217
  %278 = vmatmul.mubr.bf16.gmra.mxu0 %v136
  %v279 = vpop.f32.mrf.mxu0
  %v280 = vadd.f32 0.0, %v279
  %v281 = vpop.f32.mrf.mxu0
  %v282 = vpop.f32.mrf.mxu0
  %v283 = vadd.f32 0.0, %v282
  %v284 = vpop.f32.mrf.mxu0
  %285 = vmatprep.mubr.bf16.mxu0 %v220
  %286 = vmatmul.mubr.bf16.gmra.mxu0 %v138
  %v287 = vpop.f32.mrf.mxu0
  %v288 = vadd.f32 0.0, %v287
  %v289 = vpop.f32.mrf.mxu0
  %v290 = vpop.f32.mrf.mxu0
  %v291 = vadd.f32 0.0, %v290
  %v292 = vpop.f32.mrf.mxu0
  %293 = vmatprep.mubr.bf16.mxu0 %v223
  %294 = vmatmul.mubr.bf16.gmra.mxu0 %v140
  %v295 = vpop.f32.mrf.mxu0
  %v296 = vadd.f32 0.0, %v295
  %v297 = vpop.f32.mrf.mxu0
  %v298 = vpop.f32.mrf.mxu0
  %v299 = vadd.f32 0.0, %v298
  %v300 = vpop.f32.mrf.mxu0
  %301 = vmatprep.mubr.bf16.mxu0 %v226
  %302 = vmatmul.mubr.bf16.gmra.mxu0 %v142
  %v303 = vpop.f32.mrf.mxu0
  %v304 = vadd.f32 0.0, %v303
  %v305 = vpop.f32.mrf.mxu0
  %v306 = vpop.f32.mrf.mxu0
  %v307 = vadd.f32 0.0, %v306
  %v308 = vpop.f32.mrf.mxu0
  %309 = vmatprep.mubr.bf16.mxu0 %v229
  %310 = vmatmul.mubr.bf16.gmra.mxu0 %v144
  %v311 = vpop.f32.mrf.mxu0
  %v312 = vadd.f32 0.0, %v311
  %v313 = vpop.f32.mrf.mxu0
  %v314 = vpop.f32.mrf.mxu0
  %v315 = vadd.f32 0.0, %v314
  %v316 = vpop.f32.mrf.mxu0
  %317 = vmatprep.mubr.bf16.mxu0 %v232
  %318 = vmatmul.mubr.bf16.gmra.mxu0 %v146
  %v319 = vpop.f32.mrf.mxu0
  %v320 = vadd.f32 0.0, %v319
  %v321 = vpop.f32.mrf.mxu0
  %v322 = vpop.f32.mrf.mxu0
  %v323 = vadd.f32 0.0, %v322
  %v324 = vpop.f32.mrf.mxu0
  %325 = vmatprep.mubr.bf16.mxu0 %v235
  %326 = vmatmul.mubr.bf16.gmra.mxu0 %v148
  %v327 = vpop.f32.mrf.mxu0
  %v328 = vadd.f32 0.0, %v327
  %v329 = vpop.f32.mrf.mxu0
  %v330 = vpop.f32.mrf.mxu0
  %v331 = vadd.f32 0.0, %v330
  %v332 = vpop.f32.mrf.mxu0
  %333 = vdwg.mxu0
  %v334 = vadd.f32 %v36, %v272
  %v335 = vadd.f32 %v37, %v275
  %v336 = vadd.f32 %v38, %v280
  %v337 = vadd.f32 %v39, %v283
  %v338 = vadd.f32 %v40, %v288
  %v339 = vadd.f32 %v41, %v291
  %v340 = vadd.f32 %v42, %v296
  %v341 = vadd.f32 %v43, %v299
  %v342 = vadd.f32 %v44, %v304
  %v343 = vadd.f32 %v45, %v307
  %v344 = vadd.f32 %v46, %v312
  %v345 = vadd.f32 %v47, %v315
  %v346 = vadd.f32 %v48, %v320
  %v347 = vadd.f32 %v49, %v323
  %v348 = vadd.f32 %v50, %v328
  %v349 = vadd.f32 %v51, %v331
  %vm350 = vcmask 261120
  %351 = vst.msk [vmem:[#allocation2] sm:$0xff] %vm350, %v334
  %352 = vst.msk [vmem:[#allocation2 + $0x8] sm:$0xff] %vm350, %v335
  %353 = vst.msk [vmem:[#allocation2 + $0x10] sm:$0xff] %vm350, %v336
  %354 = vst.msk [vmem:[#allocation2 + $0x18] sm:$0xff] %vm350, %v337
  %355 = vst.msk [vmem:[#allocation2 + $0x20] sm:$0xff] %vm350, %v338
  %356 = vst.msk [vmem:[#allocation2 + $0x28] sm:$0xff] %vm350, %v339
  %357 = vst.msk [vmem:[#allocation2 + $0x30] sm:$0xff] %vm350, %v340
  %358 = vst.msk [vmem:[#allocation2 + $0x38] sm:$0xff] %vm350, %v341
  %359 = vst.msk [vmem:[#allocation2 + $0x40] sm:$0xff] %vm350, %v342
  %360 = vst.msk [vmem:[#allocation2 + $0x48] sm:$0xff] %vm350, %v343
  %361 = vst.msk [vmem:[#allocation2 + $0x50] sm:$0xff] %vm350, %v344
  %362 = vst.msk [vmem:[#allocation2 + $0x58] sm:$0xff] %vm350, %v345
  %363 = vst.msk [vmem:[#allocation2 + $0x60] sm:$0xff] %vm350, %v346
  %364 = vst.msk [vmem:[#allocation2 + $0x68] sm:$0xff] %vm350, %v347
  %365 = vst.msk [vmem:[#allocation2 + $0x70] sm:$0xff] %vm350, %v348
  %366 = vst.msk [vmem:[#allocation2 + $0x78] sm:$0xff] %vm350, %v349
  // Predicated region
  $region18: #{cnn_forward.5} parent=0 // pred_check
    %p367 = pneg %p15
  $region19: #{cnn_forward.5} parent=0 // pred_check_branch
    %369 = sbr.rel (%p367) target = $region21
  $region20: #{cnn_forward.5} parent=0 // pred_region
    %v370 = vld [vmem:[#allocation2] sm:$0xff]
    %v371 = vld [vmem:[#allocation2 + $0x8] sm:$0xff]
    %v372 = vld [vmem:[#allocation2 + $0x10] sm:$0xff]
    %v373 = vld [vmem:[#allocation2 + $0x18] sm:$0xff]
    %v374 = vld [vmem:[#allocation2 + $0x20] sm:$0xff]
    %v375 = vld [vmem:[#allocation2 + $0x28] sm:$0xff]
    %v376 = vld [vmem:[#allocation2 + $0x30] sm:$0xff]
    %v377 = vld [vmem:[#allocation2 + $0x38] sm:$0xff]
    %v378 = vld [vmem:[#allocation2 + $0x40] sm:$0xff]
    %v379 = vld [vmem:[#allocation2 + $0x48] sm:$0xff]
    %v380 = vld [vmem:[#allocation2 + $0x50] sm:$0xff]
    %v381 = vld [vmem:[#allocation2 + $0x58] sm:$0xff]
    %v382 = vld [vmem:[#allocation2 + $0x60] sm:$0xff]
    %v383 = vld [vmem:[#allocation2 + $0x68] sm:$0xff]
    %v384 = vld [vmem:[#allocation2 + $0x70] sm:$0xff]
    %v385 = vld [vmem:[#allocation2 + $0x78] sm:$0xff]
    %v386 = vld [vmem:[%s2] sm:$0x1]
    %v388 = vlaneseq
    %v389 = vshrl.u32 %v388, 7
    %v390 = vsub.s32 0, %v389
    %v391 = vrot.slane %v386, %v390
    %v393 = vadd.f32 %v370, %v391
    %v394 = vadd.f32 %v371, %v391
    %v395 = vadd.f32 %v372, %v391
    %v396 = vadd.f32 %v373, %v391
    %v397 = vadd.f32 %v374, %v391
    %v398 = vadd.f32 %v375, %v391
    %v399 = vadd.f32 %v376, %v391
    %v400 = vadd.f32 %v377, %v391
    %v401 = vadd.f32 %v378, %v391
    %v402 = vadd.f32 %v379, %v391
    %v403 = vadd.f32 %v380, %v391
    %v404 = vadd.f32 %v381, %v391
    %v405 = vadd.f32 %v382, %v391
    %v406 = vadd.f32 %v383, %v391
    %v407 = vadd.f32 %v384, %v391
    %v408 = vadd.f32 %v385, %v391
    %v409 = vmax.f32 %v393, 0.0
    %v410 = vmax.f32 %v394, 0.0
    %v411 = vmax.f32 %v395, 0.0
    %v412 = vmax.f32 %v396, 0.0
    %v413 = vmax.f32 %v397, 0.0
    %v414 = vmax.f32 %v398, 0.0
    %v415 = vmax.f32 %v399, 0.0
    %v416 = vmax.f32 %v400, 0.0
    %v417 = vmax.f32 %v401, 0.0
    %v418 = vmax.f32 %v402, 0.0
    %v419 = vmax.f32 %v403, 0.0
    %v420 = vmax.f32 %v404, 0.0
    %v421 = vmax.f32 %v405, 0.0
    %v422 = vmax.f32 %v406, 0.0
    %v423 = vmax.f32 %v407, 0.0
    %v424 = vmax.f32 %v408, 0.0
    %v425 = vpack.c.bf16 %v410, %v409
    %v426 = vpack.c.bf16 %v412, %v411
    %v427 = vpack.c.bf16 %v414, %v413
    %v428 = vpack.c.bf16 %v416, %v415
    %v429 = vpack.c.bf16 %v418, %v417
    %v430 = vpack.c.bf16 %v420, %v419
    %v431 = vpack.c.bf16 %v422, %v421
    %v432 = vpack.c.bf16 %v424, %v423
    %v441 = vunpack.c.l.b16 %v425
    %v442 = vunpack.c.h.b16 %v425
    %v443 = vunpack.c.l.b16 %v426
    %v444 = vunpack.c.h.b16 %v426
    %v445 = vunpack.c.l.b16 %v427
    %v446 = vunpack.c.h.b16 %v427
    %v447 = vunpack.c.l.b16 %v428
    %v448 = vunpack.c.h.b16 %v428
    %v449 = vunpack.c.l.b16 %v429
    %v450 = vunpack.c.h.b16 %v429
    %v451 = vunpack.c.l.b16 %v430
    %v452 = vunpack.c.h.b16 %v430
    %v453 = vunpack.c.l.b16 %v431
    %v454 = vunpack.c.h.b16 %v431
    %v455 = vunpack.c.l.b16 %v432
    %v456 = vunpack.c.h.b16 %v432
    %v457 = vpack.c.b16 %v441, %v441
    %v458 = vpack.c.b16 %v442, %v442
    %v459 = vpack.c.b16 %v443, %v443
    %v460 = vpack.c.b16 %v444, %v444
    %v461 = vpack.c.b16 %v445, %v445
    %v462 = vpack.c.b16 %v446, %v446
    %v463 = vpack.c.b16 %v447, %v447
    %v464 = vpack.c.b16 %v448, %v448
    %v465 = vpack.c.b16 %v449, %v449
    %v466 = vpack.c.b16 %v450, %v450
    %v467 = vpack.c.b16 %v451, %v451
    %v468 = vpack.c.b16 %v452, %v452
    %v469 = vpack.c.b16 %v453, %v453
    %v470 = vpack.c.b16 %v454, %v454
    %v471 = vpack.c.b16 %v455, %v455
    %v472 = vpack.c.b16 %v456, %v456
    %vm489 = vcmask 257024
    %490 = vst.msk [vmem:[%s3] sm:$0xf] %vm489, %v457
    %491 = vst.msk [vmem:[%s3 + $0x4] sm:$0xf] %vm489, %v458
    %492 = vst.msk [vmem:[%s3 + $0x8] sm:$0xf] %vm489, %v459
    %493 = vst.msk [vmem:[%s3 + $0xc] sm:$0xf] %vm489, %v460
    %494 = vst.msk [vmem:[%s3 + $0x10] sm:$0xf] %vm489, %v461
    %495 = vst.msk [vmem:[%s3 + $0x14] sm:$0xf] %vm489, %v462
    %496 = vst.msk [vmem:[%s3 + $0x18] sm:$0xf] %vm489, %v463
    %497 = vst.msk [vmem:[%s3 + $0x1c] sm:$0xf] %vm489, %v464
    %498 = vst.msk [vmem:[%s3 + $0x20] sm:$0xf] %vm489, %v465
    %499 = vst.msk [vmem:[%s3 + $0x24] sm:$0xf] %vm489, %v466
    %500 = vst.msk [vmem:[%s3 + $0x28] sm:$0xf] %vm489, %v467
    %501 = vst.msk [vmem:[%s3 + $0x2c] sm:$0xf] %vm489, %v468
    %502 = vst.msk [vmem:[%s3 + $0x30] sm:$0xf] %vm489, %v469
    %503 = vst.msk [vmem:[%s3 + $0x34] sm:$0xf] %vm489, %v470
    %504 = vst.msk [vmem:[%s3 + $0x38] sm:$0xf] %vm489, %v471
    %505 = vst.msk [vmem:[%s3 + $0x3c] sm:$0xf] %vm489, %v472
  $region21: #{cnn_forward.5} parent=0 // pred_fallthru
    _
  // Predicated region
  $region22: #{cnn_forward.5} parent=0 // pred_check
    _
  $region23: #{cnn_forward.5} parent=0 // pred_check_branch
    %507 = sbr.rel (0) target = $region25
  $region24: #{cnn_forward.5} parent=0 // pred_region
    _
  $region25: #{cnn_forward.5} parent=0 // pred_fallthru
    _
  // Predicated region
  $region26: #{cnn_forward.5} parent=0 // pred_check
    _
  $region27: #{cnn_forward.5} parent=0 // pred_check_branch
    %509 = sbr.rel (0) target = $region29
  $region28: #{cnn_forward.5} parent=0 // pred_region
    _
  $region29: #{cnn_forward.5} parent=0 // pred_fallthru
    _

// kernel: cnn_forward.6
$region0: #{cnn_forward.6}
  #allocation0 [shape = 'u32[]', space=smem, size = 0x4, offset = 0x4, fixed_abs, tag = 'smem constant byte address 0x4 - core index']
  #allocation1 [shape = 'u32[144,128]{1,0:T(1,128)}', space=vmem, size = 0x12000, scoped, tag = 'internal scratch']
  #allocation2 [shape = 'f32[128,64]{1,0:T(8,128)}', space=vmem, size = 0x10000, scoped, tag = 'scratch operand']
  %s0 = inlined_call_operand.vmem [shape: bf16[128,288], index: 0, kind: input, shape index: {}]
  %s1 = inlined_call_operand.vmem [shape: bf16[288,64], index: 1, kind: input, shape index: {}]
  %s2 = inlined_call_operand.vmem [shape: f32[1,64], index: 2, kind: input, shape index: {}]
  %s3 = inlined_call_operand.vmem [shape: bf16[128,64], index: 3, kind: output, shape index: {}]
  %s4 = sld [smem:[#allocation0]]
  $region30: #{cnn_forward.6} parent=0
    _
  %s6 = ssub.s32 1, %s4
  %s7 = scalar_select 0, %s6, %s4
  // Predicated region
  $region2: #{cnn_forward.6} parent=0 // pred_check
    _
  $region3: #{cnn_forward.6} parent=0 // pred_check_branch
    %9 = sbr.rel (0) target = $region5
  $region4: #{cnn_forward.6} parent=0 // pred_region
    _
  $region5: #{cnn_forward.6} parent=0 // pred_fallthru
    _
  // Predicated region
  $region6: #{cnn_forward.6} parent=0 // pred_check
    _
  $region7: #{cnn_forward.6} parent=0 // pred_check_branch
    %11 = sbr.rel (0) target = $region9
  $region8: #{cnn_forward.6} parent=0 // pred_region
    _
  $region9: #{cnn_forward.6} parent=0 // pred_fallthru
    _
  // Predicated region
  $region10: #{cnn_forward.6} parent=0 // pred_check
    _
  $region11: #{cnn_forward.6} parent=0 // pred_check_branch
    %13 = sbr.rel (0) target = $region13
  $region12: #{cnn_forward.6} parent=0 // pred_region
    _
  $region13: #{cnn_forward.6} parent=0 // pred_fallthru
    _
  %p15 = scmp.eq.s32.totalorder 0, 0
  // Predicated region
  $region14: #{cnn_forward.6} parent=0 // pred_check
    %p16 = pneg %p15
  $region15: #{cnn_forward.6} parent=0 // pred_check_branch
    %18 = sbr.rel (%p16) target = $region17
  $region16: #{cnn_forward.6} parent=0 // pred_region
    %vm19 = vcmask 523264
    %20 = vst.msk [vmem:[#allocation2] sm:$0xff] %vm19, 0.0
    %21 = vst.msk [vmem:[#allocation2 + $0x8] sm:$0xff] %vm19, 0.0
    %22 = vst.msk [vmem:[#allocation2 + $0x10] sm:$0xff] %vm19, 0.0
    %23 = vst.msk [vmem:[#allocation2 + $0x18] sm:$0xff] %vm19, 0.0
    %24 = vst.msk [vmem:[#allocation2 + $0x20] sm:$0xff] %vm19, 0.0
    %25 = vst.msk [vmem:[#allocation2 + $0x28] sm:$0xff] %vm19, 0.0
    %26 = vst.msk [vmem:[#allocation2 + $0x30] sm:$0xff] %vm19, 0.0
    %27 = vst.msk [vmem:[#allocation2 + $0x38] sm:$0xff] %vm19, 0.0
    %28 = vst.msk [vmem:[#allocation2 + $0x40] sm:$0xff] %vm19, 0.0
    %29 = vst.msk [vmem:[#allocation2 + $0x48] sm:$0xff] %vm19, 0.0
    %30 = vst.msk [vmem:[#allocation2 + $0x50] sm:$0xff] %vm19, 0.0
    %31 = vst.msk [vmem:[#allocation2 + $0x58] sm:$0xff] %vm19, 0.0
    %32 = vst.msk [vmem:[#allocation2 + $0x60] sm:$0xff] %vm19, 0.0
    %33 = vst.msk [vmem:[#allocation2 + $0x68] sm:$0xff] %vm19, 0.0
    %34 = vst.msk [vmem:[#allocation2 + $0x70] sm:$0xff] %vm19, 0.0
    %35 = vst.msk [vmem:[#allocation2 + $0x78] sm:$0xff] %vm19, 0.0
  $region17: #{cnn_forward.6} parent=0 // pred_fallthru
    _
  %v36 = vld [vmem:[#allocation2] sm:$0xff]
  %v37 = vld [vmem:[#allocation2 + $0x8] sm:$0xff]
  %v38 = vld [vmem:[#allocation2 + $0x10] sm:$0xff]
  %v39 = vld [vmem:[#allocation2 + $0x18] sm:$0xff]
  %v40 = vld [vmem:[#allocation2 + $0x20] sm:$0xff]
  %v41 = vld [vmem:[#allocation2 + $0x28] sm:$0xff]
  %v42 = vld [vmem:[#allocation2 + $0x30] sm:$0xff]
  %v43 = vld [vmem:[#allocation2 + $0x38] sm:$0xff]
  %v44 = vld [vmem:[#allocation2 + $0x40] sm:$0xff]
  %v45 = vld [vmem:[#allocation2 + $0x48] sm:$0xff]
  %v46 = vld [vmem:[#allocation2 + $0x50] sm:$0xff]
  %v47 = vld [vmem:[#allocation2 + $0x58] sm:$0xff]
  %v48 = vld [vmem:[#allocation2 + $0x60] sm:$0xff]
  %v49 = vld [vmem:[#allocation2 + $0x68] sm:$0xff]
  %v50 = vld [vmem:[#allocation2 + $0x70] sm:$0xff]
  %v51 = vld [vmem:[#allocation2 + $0x78] sm:$0xff]
  %v52 = vld [vmem:[%s0] sm:$0xff]
  %v53 = vld [vmem:[%s0 + $0x8] sm:$0xf]
  %v54 = vld [vmem:[%s0 + $0xc] sm:$0xff]
  %v55 = vld [vmem:[%s0 + $0x14] sm:$0xf]
  %v56 = vld [vmem:[%s0 + $0x18] sm:$0xff]
  %v57 = vld [vmem:[%s0 + $0x20] sm:$0xf]
  %v58 = vld [vmem:[%s0 + $0x24] sm:$0xff]
  %v59 = vld [vmem:[%s0 + $0x2c] sm:$0xf]
  %v60 = vld [vmem:[%s0 + $0x30] sm:$0xff]
  %v61 = vld [vmem:[%s0 + $0x38] sm:$0xf]
  %v62 = vld [vmem:[%s0 + $0x3c] sm:$0xff]
  %v63 = vld [vmem:[%s0 + $0x44] sm:$0xf]
  %v64 = vld [vmem:[%s0 + $0x48] sm:$0xff]
  %v65 = vld [vmem:[%s0 + $0x50] sm:$0xf]
  %v66 = vld [vmem:[%s0 + $0x54] sm:$0xff]
  %v67 = vld [vmem:[%s0 + $0x5c] sm:$0xf]
  %v68 = vld [vmem:[%s0 + $0x60] sm:$0xff]
  %v69 = vld [vmem:[%s0 + $0x68] sm:$0xf]
  %v70 = vld [vmem:[%s0 + $0x6c] sm:$0xff]
  %v71 = vld [vmem:[%s0 + $0x74] sm:$0xf]
  %v72 = vld [vmem:[%s0 + $0x78] sm:$0xff]
  %v73 = vld [vmem:[%s0 + $0x80] sm:$0xf]
  %v74 = vld [vmem:[%s0 + $0x84] sm:$0xff]
  %v75 = vld [vmem:[%s0 + $0x8c] sm:$0xf]
  %v76 = vld [vmem:[%s0 + $0x90] sm:$0xff]
  %v77 = vld [vmem:[%s0 + $0x98] sm:$0xf]
  %v78 = vld [vmem:[%s0 + $0x9c] sm:$0xff]
  %v79 = vld [vmem:[%s0 + $0xa4] sm:$0xf]
  %v80 = vld [vmem:[%s0 + $0xa8] sm:$0xff]
  %v81 = vld [vmem:[%s0 + $0xb0] sm:$0xf]
  %v82 = vld [vmem:[%s0 + $0xb4] sm:$0xff]
  %v83 = vld [vmem:[%s0 + $0xbc] sm:$0xf]
  %v84 = vld [vmem:[%s1] sm:$0xf]
  %v85 = vld [vmem:[%s1 + $0x4] sm:$0xf]
  %v86 = vld [vmem:[%s1 + $0x8] sm:$0xf]
  %v87 = vld [vmem:[%s1 + $0xc] sm:$0xf]
  %v88 = vld [vmem:[%s1 + $0x10] sm:$0xf]
  %v89 = vld [vmem:[%s1 + $0x14] sm:$0xf]
  %v90 = vld [vmem:[%s1 + $0x18] sm:$0xf]
  %v91 = vld [vmem:[%s1 + $0x1c] sm:$0xf]
  %v92 = vld [vmem:[%s1 + $0x20] sm:$0xf]
  %v93 = vld [vmem:[%s1 + $0x24] sm:$0xf]
  %v94 = vld [vmem:[%s1 + $0x28] sm:$0xf]
  %v95 = vld [vmem:[%s1 + $0x2c] sm:$0xf]
  %v96 = vld [vmem:[%s1 + $0x30] sm:$0xf]
  %v97 = vld [vmem:[%s1 + $0x34] sm:$0xf]
  %v98 = vld [vmem:[%s1 + $0x38] sm:$0xf]
  %v99 = vld [vmem:[%s1 + $0x3c] sm:$0xf]
  %v100 = vld [vmem:[%s1 + $0x40] sm:$0xf]
  %v101 = vld [vmem:[%s1 + $0x44] sm:$0xf]
  %v102 = vld [vmem:[%s1 + $0x48] sm:$0xf]
  %v103 = vld [vmem:[%s1 + $0x4c] sm:$0xf]
  %v104 = vld [vmem:[%s1 + $0x50] sm:$0xf]
  %v105 = vld [vmem:[%s1 + $0x54] sm:$0xf]
  %v106 = vld [vmem:[%s1 + $0x58] sm:$0xf]
  %v107 = vld [vmem:[%s1 + $0x5c] sm:$0xf]
  %v108 = vld [vmem:[%s1 + $0x60] sm:$0xf]
  %v109 = vld [vmem:[%s1 + $0x64] sm:$0xf]
  %v110 = vld [vmem:[%s1 + $0x68] sm:$0xf]
  %v111 = vld [vmem:[%s1 + $0x6c] sm:$0xf]
  %v112 = vld [vmem:[%s1 + $0x70] sm:$0xf]
  %v113 = vld [vmem:[%s1 + $0x74] sm:$0xf]
  %v114 = vld [vmem:[%s1 + $0x78] sm:$0xf]
  %v115 = vld [vmem:[%s1 + $0x7c] sm:$0xf]
  %v116 = vld [vmem:[%s1 + $0x80] sm:$0xf]
  %v117 = vld [vmem:[%s1 + $0x84] sm:$0xf]
  %v118 = vld [vmem:[%s1 + $0x88] sm:$0xf]
  %v119 = vld [vmem:[%s1 + $0x8c] sm:$0xf]
  %v152 = vunpack.c.l.b16 %v52
  %v153 = vunpack.c.h.b16 %v52
  %v154 = vunpack.c.l.b16 %v53
  %v155 = vunpack.c.l.b16 %v54
  %v156 = vunpack.c.h.b16 %v54
  %v157 = vunpack.c.l.b16 %v55
  %v158 = vunpack.c.l.b16 %v56
  %v159 = vunpack.c.h.b16 %v56
  %v160 = vunpack.c.l.b16 %v57
  %v161 = vunpack.c.l.b16 %v58
  %v162 = vunpack.c.h.b16 %v58
  %v163 = vunpack.c.l.b16 %v59
  %v164 = vunpack.c.l.b16 %v60
  %v165 = vunpack.c.h.b16 %v60
  %v166 = vunpack.c.l.b16 %v61
  %v167 = vunpack.c.l.b16 %v62
  %v168 = vunpack.c.h.b16 %v62
  %v169 = vunpack.c.l.b16 %v63
  %v170 = vunpack.c.l.b16 %v64
  %v171 = vunpack.c.h.b16 %v64
  %v172 = vunpack.c.l.b16 %v65
  %v173 = vunpack.c.l.b16 %v66
  %v174 = vunpack.c.h.b16 %v66
  %v175 = vunpack.c.l.b16 %v67
  %v176 = vunpack.c.l.b16 %v68
  %v177 = vunpack.c.h.b16 %v68
  %v178 = vunpack.c.l.b16 %v69
  %v179 = vunpack.c.l.b16 %v70
  %v180 = vunpack.c.h.b16 %v70
  %v181 = vunpack.c.l.b16 %v71
  %v182 = vunpack.c.l.b16 %v72
  %v183 = vunpack.c.h.b16 %v72
  %v184 = vunpack.c.l.b16 %v73
  %v185 = vunpack.c.l.b16 %v74
  %v186 = vunpack.c.h.b16 %v74
  %v187 = vunpack.c.l.b16 %v75
  %v188 = vunpack.c.l.b16 %v76
  %v189 = vunpack.c.h.b16 %v76
  %v190 = vunpack.c.l.b16 %v77
  %v191 = vunpack.c.l.b16 %v78
  %v192 = vunpack.c.h.b16 %v78
  %v193 = vunpack.c.l.b16 %v79
  %v194 = vunpack.c.l.b16 %v80
  %v195 = vunpack.c.h.b16 %v80
  %v196 = vunpack.c.l.b16 %v81
  %v197 = vunpack.c.l.b16 %v82
  %v198 = vunpack.c.h.b16 %v82
  %v199 = vunpack.c.l.b16 %v83
  %v200 = vpack.c.b16 %v155, %v152
  %v201 = vpack.c.b16 %v156, %v153
  %v202 = vpack.c.b16 %v157, %v154
  %v203 = vpack.c.b16 %v161, %v158
  %v204 = vpack.c.b16 %v162, %v159
  %v205 = vpack.c.b16 %v163, %v160
  %v206 = vpack.c.b16 %v167, %v164
  %v207 = vpack.c.b16 %v168, %v165
  %v208 = vpack.c.b16 %v169, %v166
  %v209 = vpack.c.b16 %v173, %v170
  %v210 = vpack.c.b16 %v174, %v171
  %v211 = vpack.c.b16 %v175, %v172
  %v212 = vpack.c.b16 %v179, %v176
  %v213 = vpack.c.b16 %v180, %v177
  %v214 = vpack.c.b16 %v181, %v178
  %v215 = vpack.c.b16 %v185, %v182
  %v216 = vpack.c.b16 %v186, %v183
  %v217 = vpack.c.b16 %v187, %v184
  %v218 = vpack.c.b16 %v191, %v188
  %v219 = vpack.c.b16 %v192, %v189
  %v220 = vpack.c.b16 %v193, %v190
  %v221 = vpack.c.b16 %v197, %v194
  %v222 = vpack.c.b16 %v198, %v195
  %v223 = vpack.c.b16 %v199, %v196
  %v276 = vunpack.c.l.b16 %v84
  %v277 = vunpack.c.l.b16 %v85
  %v278 = vunpack.c.l.b16 %v86
  %v279 = vunpack.c.l.b16 %v87
  %v280 = vunpack.c.l.b16 %v88
  %v281 = vunpack.c.l.b16 %v89
  %v282 = vunpack.c.l.b16 %v90
  %v283 = vunpack.c.l.b16 %v91
  %v284 = vunpack.c.l.b16 %v92
  %v285 = vunpack.c.l.b16 %v93
  %v286 = vunpack.c.l.b16 %v94
  %v287 = vunpack.c.l.b16 %v95
  %v288 = vunpack.c.l.b16 %v96
  %v289 = vunpack.c.l.b16 %v97
  %v290 = vunpack.c.l.b16 %v98
  %v291 = vunpack.c.l.b16 %v99
  %v292 = vunpack.c.l.b16 %v100
  %v293 = vunpack.c.l.b16 %v101
  %v294 = vunpack.c.l.b16 %v102
  %v295 = vunpack.c.l.b16 %v103
  %v296 = vunpack.c.l.b16 %v104
  %v297 = vunpack.c.l.b16 %v105
  %v298 = vunpack.c.l.b16 %v106
  %v299 = vunpack.c.l.b16 %v107
  %v300 = vunpack.c.l.b16 %v108
  %v301 = vunpack.c.l.b16 %v109
  %v302 = vunpack.c.l.b16 %v110
  %v303 = vunpack.c.l.b16 %v111
  %v304 = vunpack.c.l.b16 %v112
  %v305 = vunpack.c.l.b16 %v113
  %v306 = vunpack.c.l.b16 %v114
  %v307 = vunpack.c.l.b16 %v115
  %v308 = vunpack.c.l.b16 %v116
  %v309 = vunpack.c.l.b16 %v117
  %v310 = vunpack.c.l.b16 %v118
  %v311 = vunpack.c.l.b16 %v119
  %v312 = vpack.c.b16 %v277, %v276
  %v313 = vpack.c.b16 %v279, %v278
  %v314 = vpack.c.b16 %v281, %v280
  %v315 = vpack.c.b16 %v283, %v282
  %v316 = vpack.c.b16 %v285, %v284
  %v317 = vpack.c.b16 %v287, %v286
  %v318 = vpack.c.b16 %v289, %v288
  %v319 = vpack.c.b16 %v291, %v290
  %v320 = vpack.c.b16 %v293, %v292
  %v321 = vpack.c.b16 %v295, %v294
  %v322 = vpack.c.b16 %v297, %v296
  %v323 = vpack.c.b16 %v299, %v298
  %v324 = vpack.c.b16 %v301, %v300
  %v325 = vpack.c.b16 %v303, %v302
  %v326 = vpack.c.b16 %v305, %v304
  %v327 = vpack.c.b16 %v307, %v306
  %v328 = vpack.c.b16 %v309, %v308
  %v329 = vpack.c.b16 %v311, %v310
  %vm348 = vcmask 261120
  %v350 = vsel %vm348, %v202, 0
  %v353 = vsel %vm348, %v205, 0
  %v356 = vsel %vm348, %v208, 0
  %v359 = vsel %vm348, %v211, 0
  %v362 = vsel %vm348, %v214, 0
  %v365 = vsel %vm348, %v217, 0
  %v368 = vsel %vm348, %v220, 0
  %v371 = vsel %vm348, %v223, 0
  %373 = vmatprep.subr.bf16.mxu0 0
  %374 = vmatpush1.bf16.msra.mxu0 %v319
  %375 = vmatprep.subr.bf16.mxu0 0
  %376 = vmatpush1.bf16.msra.mxu0 %v318
  %377 = vmatprep.subr.bf16.mxu0 0
  %378 = vmatpush1.bf16.msra.mxu0 %v317
  %379 = vmatprep.subr.bf16.mxu0 0
  %380 = vmatpush1.bf16.msra.mxu0 %v316
  %381 = vmatprep.subr.bf16.mxu0 0
  %382 = vmatpush1.bf16.msra.mxu0 %v315
  %383 = vmatprep.subr.bf16.mxu0 0
  %384 = vmatpush1.bf16.msra.mxu0 %v314
  %385 = vmatprep.subr.bf16.mxu0 0
  %386 = vmatpush1.bf16.msra.mxu0 %v313
  %387 = vmatprep.subr.bf16.mxu0 0
  %388 = vmatpush1.bf16.msra.mxu0 %v312
  %389 = vmatprep.subr.bf16.mxu0 0
  %390 = vmatpush2.bf16.msra.mxu0 %v327
  %391 = vmatprep.subr.bf16.mxu0 0
  %392 = vmatpush2.bf16.msra.mxu0 %v326
  %393 = vmatprep.subr.bf16.mxu0 0
  %394 = vmatpush2.bf16.msra.mxu0 %v325
  %395 = vmatprep.subr.bf16.mxu0 0
  %396 = vmatpush2.bf16.msra.mxu0 %v324
  %397 = vmatprep.subr.bf16.mxu0 0
  %398 = vmatpush2.bf16.msra.mxu0 %v323
  %399 = vmatprep.subr.bf16.mxu0 0
  %400 = vmatpush2.bf16.msra.mxu0 %v322
  %401 = vmatprep.subr.bf16.mxu0 0
  %402 = vmatpush2.bf16.msra.mxu0 %v321
  %403 = vmatprep.subr.bf16.mxu0 0
  %404 = vmatpush2.bf16.msra.mxu0 %v320
  %405 = vmatprep.mubr.bf16.mxu0 %v201
  %406 = vmatmul.mubr.bf16.gmra.mxu0 %v200
  %v407 = vpop.f32.mrf.mxu0
  %v408 = vadd.f32 0.0, %v407
  %v409 = vpop.f32.mrf.mxu0
  %v410 = vpop.f32.mrf.mxu0
  %v411 = vadd.f32 0.0, %v410
  %v412 = vpop.f32.mrf.mxu0
  %413 = vmatprep.mubr.bf16.mxu0 %v204
  %414 = vmatmul.mubr.bf16.gmra.mxu0 %v203
  %v415 = vpop.f32.mrf.mxu0
  %v416 = vadd.f32 0.0, %v415
  %v417 = vpop.f32.mrf.mxu0
  %v418 = vpop.f32.mrf.mxu0
  %v419 = vadd.f32 0.0, %v418
  %v420 = vpop.f32.mrf.mxu0
  %421 = vmatprep.mubr.bf16.mxu0 %v207
  %422 = vmatmul.mubr.bf16.gmra.mxu0 %v206
  %v423 = vpop.f32.mrf.mxu0
  %v424 = vadd.f32 0.0, %v423
  %v425 = vpop.f32.mrf.mxu0
  %v426 = vpop.f32.mrf.mxu0
  %v427 = vadd.f32 0.0, %v426
  %v428 = vpop.f32.mrf.mxu0
  %429 = vmatprep.mubr.bf16.mxu0 %v210
  %430 = vmatmul.mubr.bf16.gmra.mxu0 %v209
  %v431 = vpop.f32.mrf.mxu0
  %v432 = vadd.f32 0.0, %v431
  %v433 = vpop.f32.mrf.mxu0
  %v434 = vpop.f32.mrf.mxu0
  %v435 = vadd.f32 0.0, %v434
  %v436 = vpop.f32.mrf.mxu0
  %437 = vmatprep.mubr.bf16.mxu0 %v213
  %438 = vmatmul.mubr.bf16.gmra.mxu0 %v212
  %v439 = vpop.f32.mrf.mxu0
  %v440 = vadd.f32 0.0, %v439
  %v441 = vpop.f32.mrf.mxu0
  %v442 = vpop.f32.mrf.mxu0
  %v443 = vadd.f32 0.0, %v442
  %v444 = vpop.f32.mrf.mxu0
  %445 = vmatprep.mubr.bf16.mxu0 %v216
  %446 = vmatmul.mubr.bf16.gmra.mxu0 %v215
  %v447 = vpop.f32.mrf.mxu0
  %v448 = vadd.f32 0.0, %v447
  %v449 = vpop.f32.mrf.mxu0
  %v450 = vpop.f32.mrf.mxu0
  %v451 = vadd.f32 0.0, %v450
  %v452 = vpop.f32.mrf.mxu0
  %453 = vmatprep.mubr.bf16.mxu0 %v219
  %454 = vmatmul.mubr.bf16.gmra.mxu0 %v218
  %v455 = vpop.f32.mrf.mxu0
  %v456 = vadd.f32 0.0, %v455
  %v457 = vpop.f32.mrf.mxu0
  %v458 = vpop.f32.mrf.mxu0
  %v459 = vadd.f32 0.0, %v458
  %v460 = vpop.f32.mrf.mxu0
  %461 = vmatprep.mubr.bf16.mxu0 %v222
  %462 = vmatmul.mubr.bf16.gmra.mxu0 %v221
  %v463 = vpop.f32.mrf.mxu0
  %v464 = vadd.f32 0.0, %v463
  %v465 = vpop.f32.mrf.mxu0
  %v466 = vpop.f32.mrf.mxu0
  %v467 = vadd.f32 0.0, %v466
  %v468 = vpop.f32.mrf.mxu0
  %469 = vdwg.mxu0
  %470 = vmatprep.subr.bf16.mxu0 0
  %471 = vmatpush1.bf16.msra.mxu0 0
  %472 = vmatprep.subr.bf16.mxu0 0
  %473 = vmatpush1.bf16.msra.mxu0 0
  %474 = vmatprep.subr.bf16.mxu0 0
  %475 = vmatpush1.bf16.msra.mxu0 0
  %476 = vmatprep.subr.bf16.mxu0 0
  %477 = vmatpush1.bf16.msra.mxu0 0
  %478 = vmatprep.subr.bf16.mxu0 0
  %479 = vmatpush1.bf16.msra.mxu0 0
  %480 = vmatprep.subr.bf16.mxu0 0
  %481 = vmatpush1.bf16.msra.mxu0 0
  %482 = vmatprep.subr.bf16.mxu0 0
  %483 = vmatpush1.bf16.msra.mxu0 %v329
  %484 = vmatprep.subr.bf16.mxu0 0
  %485 = vmatpush1.bf16.msra.mxu0 %v328
  %486 = vmatprep.subr.bf16.mxu0 0
  %487 = vmatpush2.bf16.msra.mxu0 0
  %488 = vmatprep.subr.bf16.mxu0 0
  %489 = vmatpush2.bf16.msra.mxu0 0
  %490 = vmatprep.subr.bf16.mxu0 0
  %491 = vmatpush2.bf16.msra.mxu0 0
  %492 = vmatprep.subr.bf16.mxu0 0
  %493 = vmatpush2.bf16.msra.mxu0 0
  %494 = vmatprep.subr.bf16.mxu0 0
  %495 = vmatpush2.bf16.msra.mxu0 0
  %496 = vmatprep.subr.bf16.mxu0 0
  %497 = vmatpush2.bf16.msra.mxu0 0
  %498 = vmatprep.subr.bf16.mxu0 0
  %499 = vmatpush2.bf16.msra.mxu0 0
  %500 = vmatprep.subr.bf16.mxu0 0
  %501 = vmatpush2.bf16.msra.mxu0 0
  %502 = vmatprep.mubr.bf16.mxu0 0
  %503 = vmatmul.mubr.bf16.gmra.mxu0 %v350
  %v504 = vpop.f32.mrf.mxu0
  %v505 = vadd.f32 %v408, %v504
  %v506 = vpop.f32.mrf.mxu0
  %v507 = vpop.f32.mrf.mxu0
  %v508 = vadd.f32 %v411, %v507
  %v509 = vpop.f32.mrf.mxu0
  %510 = vmatprep.mubr.bf16.mxu0 0
  %511 = vmatmul.mubr.bf16.gmra.mxu0 %v353
  %v512 = vpop.f32.mrf.mxu0
  %v513 = vadd.f32 %v416, %v512
  %v514 = vpop.f32.mrf.mxu0
  %v515 = vpop.f32.mrf.mxu0
  %v516 = vadd.f32 %v419, %v515
  %v517 = vpop.f32.mrf.mxu0
  %518 = vmatprep.mubr.bf16.mxu0 0
  %519 = vmatmul.mubr.bf16.gmra.mxu0 %v356
  %v520 = vpop.f32.mrf.mxu0
  %v521 = vadd.f32 %v424, %v520
  %v522 = vpop.f32.mrf.mxu0
  %v523 = vpop.f32.mrf.mxu0
  %v524 = vadd.f32 %v427, %v523
  %v525 = vpop.f32.mrf.mxu0
  %526 = vmatprep.mubr.bf16.mxu0 0
  %527 = vmatmul.mubr.bf16.gmra.mxu0 %v359
  %v528 = vpop.f32.mrf.mxu0
  %v529 = vadd.f32 %v432, %v528
  %v530 = vpop.f32.mrf.mxu0
  %v531 = vpop.f32.mrf.mxu0
  %v532 = vadd.f32 %v435, %v531
  %v533 = vpop.f32.mrf.mxu0
  %534 = vmatprep.mubr.bf16.mxu0 0
  %535 = vmatmul.mubr.bf16.gmra.mxu0 %v362
  %v536 = vpop.f32.mrf.mxu0
  %v537 = vadd.f32 %v440, %v536
  %v538 = vpop.f32.mrf.mxu0
  %v539 = vpop.f32.mrf.mxu0
  %v540 = vadd.f32 %v443, %v539
  %v541 = vpop.f32.mrf.mxu0
  %542 = vmatprep.mubr.bf16.mxu0 0
  %543 = vmatmul.mubr.bf16.gmra.mxu0 %v365
  %v544 = vpop.f32.mrf.mxu0
  %v545 = vadd.f32 %v448, %v544
  %v546 = vpop.f32.mrf.mxu0
  %v547 = vpop.f32.mrf.mxu0
  %v548 = vadd.f32 %v451, %v547
  %v549 = vpop.f32.mrf.mxu0
  %550 = vmatprep.mubr.bf16.mxu0 0
  %551 = vmatmul.mubr.bf16.gmra.mxu0 %v368
  %v552 = vpop.f32.mrf.mxu0
  %v553 = vadd.f32 %v456, %v552
  %v554 = vpop.f32.mrf.mxu0
  %v555 = vpop.f32.mrf.mxu0
  %v556 = vadd.f32 %v459, %v555
  %v557 = vpop.f32.mrf.mxu0
  %558 = vmatprep.mubr.bf16.mxu0 0
  %559 = vmatmul.mubr.bf16.gmra.mxu0 %v371
  %v560 = vpop.f32.mrf.mxu0
  %v561 = vadd.f32 %v464, %v560
  %v562 = vpop.f32.mrf.mxu0
  %v563 = vpop.f32.mrf.mxu0
  %v564 = vadd.f32 %v467, %v563
  %v565 = vpop.f32.mrf.mxu0
  %566 = vdwg.mxu0
  %v567 = vadd.f32 %v36, %v505
  %v568 = vadd.f32 %v37, %v508
  %v569 = vadd.f32 %v38, %v513
  %v570 = vadd.f32 %v39, %v516
  %v571 = vadd.f32 %v40, %v521
  %v572 = vadd.f32 %v41, %v524
  %v573 = vadd.f32 %v42, %v529
  %v574 = vadd.f32 %v43, %v532
  %v575 = vadd.f32 %v44, %v537
  %v576 = vadd.f32 %v45, %v540
  %v577 = vadd.f32 %v46, %v545
  %v578 = vadd.f32 %v47, %v548
  %v579 = vadd.f32 %v48, %v553
  %v580 = vadd.f32 %v49, %v556
  %v581 = vadd.f32 %v50, %v561
  %v582 = vadd.f32 %v51, %v564
  %vm583 = vcmask 523264
  %584 = vst.msk [vmem:[#allocation2] sm:$0xff] %vm583, %v567
  %585 = vst.msk [vmem:[#allocation2 + $0x8] sm:$0xff] %vm583, %v568
  %586 = vst.msk [vmem:[#allocation2 + $0x10] sm:$0xff] %vm583, %v569
  %587 = vst.msk [vmem:[#allocation2 + $0x18] sm:$0xff] %vm583, %v570
  %588 = vst.msk [vmem:[#allocation2 + $0x20] sm:$0xff] %vm583, %v571
  %589 = vst.msk [vmem:[#allocation2 + $0x28] sm:$0xff] %vm583, %v572
  %590 = vst.msk [vmem:[#allocation2 + $0x30] sm:$0xff] %vm583, %v573
  %591 = vst.msk [vmem:[#allocation2 + $0x38] sm:$0xff] %vm583, %v574
  %592 = vst.msk [vmem:[#allocation2 + $0x40] sm:$0xff] %vm583, %v575
  %593 = vst.msk [vmem:[#allocation2 + $0x48] sm:$0xff] %vm583, %v576
  %594 = vst.msk [vmem:[#allocation2 + $0x50] sm:$0xff] %vm583, %v577
  %595 = vst.msk [vmem:[#allocation2 + $0x58] sm:$0xff] %vm583, %v578
  %596 = vst.msk [vmem:[#allocation2 + $0x60] sm:$0xff] %vm583, %v579
  %597 = vst.msk [vmem:[#allocation2 + $0x68] sm:$0xff] %vm583, %v580
  %598 = vst.msk [vmem:[#allocation2 + $0x70] sm:$0xff] %vm583, %v581
  %599 = vst.msk [vmem:[#allocation2 + $0x78] sm:$0xff] %vm583, %v582
  // Predicated region
  $region18: #{cnn_forward.6} parent=0 // pred_check
    %p600 = pneg %p15
  $region19: #{cnn_forward.6} parent=0 // pred_check_branch
    %602 = sbr.rel (%p600) target = $region21
  $region20: #{cnn_forward.6} parent=0 // pred_region
    %v603 = vld [vmem:[#allocation2] sm:$0xff]
    %v604 = vld [vmem:[#allocation2 + $0x8] sm:$0xff]
    %v605 = vld [vmem:[#allocation2 + $0x10] sm:$0xff]
    %v606 = vld [vmem:[#allocation2 + $0x18] sm:$0xff]
    %v607 = vld [vmem:[#allocation2 + $0x20] sm:$0xff]
    %v608 = vld [vmem:[#allocation2 + $0x28] sm:$0xff]
    %v609 = vld [vmem:[#allocation2 + $0x30] sm:$0xff]
    %v610 = vld [vmem:[#allocation2 + $0x38] sm:$0xff]
    %v611 = vld [vmem:[#allocation2 + $0x40] sm:$0xff]
    %v612 = vld [vmem:[#allocation2 + $0x48] sm:$0xff]
    %v613 = vld [vmem:[#allocation2 + $0x50] sm:$0xff]
    %v614 = vld [vmem:[#allocation2 + $0x58] sm:$0xff]
    %v615 = vld [vmem:[#allocation2 + $0x60] sm:$0xff]
    %v616 = vld [vmem:[#allocation2 + $0x68] sm:$0xff]
    %v617 = vld [vmem:[#allocation2 + $0x70] sm:$0xff]
    %v618 = vld [vmem:[#allocation2 + $0x78] sm:$0xff]
    %v619 = vld [vmem:[%s2] sm:$0x1]
    %v621 = vlaneseq
    %v622 = vshrl.u32 %v621, 7
    %v623 = vsub.s32 0, %v622
    %v624 = vrot.slane %v619, %v623
    %v626 = vadd.f32 %v603, %v624
    %v627 = vadd.f32 %v604, %v624
    %v628 = vadd.f32 %v605, %v624
    %v629 = vadd.f32 %v606, %v624
    %v630 = vadd.f32 %v607, %v624
    %v631 = vadd.f32 %v608, %v624
    %v632 = vadd.f32 %v609, %v624
    %v633 = vadd.f32 %v610, %v624
    %v634 = vadd.f32 %v611, %v624
    %v635 = vadd.f32 %v612, %v624
    %v636 = vadd.f32 %v613, %v624
    %v637 = vadd.f32 %v614, %v624
    %v638 = vadd.f32 %v615, %v624
    %v639 = vadd.f32 %v616, %v624
    %v640 = vadd.f32 %v617, %v624
    %v641 = vadd.f32 %v618, %v624
    %v642 = vmax.f32 %v626, 0.0
    %v643 = vmax.f32 %v627, 0.0
    %v644 = vmax.f32 %v628, 0.0
    %v645 = vmax.f32 %v629, 0.0
    %v646 = vmax.f32 %v630, 0.0
    %v647 = vmax.f32 %v631, 0.0
    %v648 = vmax.f32 %v632, 0.0
    %v649 = vmax.f32 %v633, 0.0
    %v650 = vmax.f32 %v634, 0.0
    %v651 = vmax.f32 %v635, 0.0
    %v652 = vmax.f32 %v636, 0.0
    %v653 = vmax.f32 %v637, 0.0
    %v654 = vmax.f32 %v638, 0.0
    %v655 = vmax.f32 %v639, 0.0
    %v656 = vmax.f32 %v640, 0.0
    %v657 = vmax.f32 %v641, 0.0
    %v658 = vpack.c.bf16 %v643, %v642
    %v659 = vpack.c.bf16 %v645, %v644
    %v660 = vpack.c.bf16 %v647, %v646
    %v661 = vpack.c.bf16 %v649, %v648
    %v662 = vpack.c.bf16 %v651, %v650
    %v663 = vpack.c.bf16 %v653, %v652
    %v664 = vpack.c.bf16 %v655, %v654
    %v665 = vpack.c.bf16 %v657, %v656
    %v674 = vunpack.c.l.b16 %v658
    %v675 = vunpack.c.h.b16 %v658
    %v676 = vunpack.c.l.b16 %v659
    %v677 = vunpack.c.h.b16 %v659
    %v678 = vunpack.c.l.b16 %v660
    %v679 = vunpack.c.h.b16 %v660
    %v680 = vunpack.c.l.b16 %v661
    %v681 = vunpack.c.h.b16 %v661
    %v682 = vunpack.c.l.b16 %v662
    %v683 = vunpack.c.h.b16 %v662
    %v684 = vunpack.c.l.b16 %v663
    %v685 = vunpack.c.h.b16 %v663
    %v686 = vunpack.c.l.b16 %v664
    %v687 = vunpack.c.h.b16 %v664
    %v688 = vunpack.c.l.b16 %v665
    %v689 = vunpack.c.h.b16 %v665
    %v690 = vpack.c.b16 %v674, %v674
    %v691 = vpack.c.b16 %v675, %v675
    %v692 = vpack.c.b16 %v676, %v676
    %v693 = vpack.c.b16 %v677, %v677
    %v694 = vpack.c.b16 %v678, %v678
    %v695 = vpack.c.b16 %v679, %v679
    %v696 = vpack.c.b16 %v680, %v680
    %v697 = vpack.c.b16 %v681, %v681
    %v698 = vpack.c.b16 %v682, %v682
    %v699 = vpack.c.b16 %v683, %v683
    %v700 = vpack.c.b16 %v684, %v684
    %v701 = vpack.c.b16 %v685, %v685
    %v702 = vpack.c.b16 %v686, %v686
    %v703 = vpack.c.b16 %v687, %v687
    %v704 = vpack.c.b16 %v688, %v688
    %v705 = vpack.c.b16 %v689, %v689
    %vm722 = vcmask 519168
    %723 = vst.msk [vmem:[%s3] sm:$0xf] %vm722, %v690
    %724 = vst.msk [vmem:[%s3 + $0x4] sm:$0xf] %vm722, %v691
    %725 = vst.msk [vmem:[%s3 + $0x8] sm:$0xf] %vm722, %v692
    %726 = vst.msk [vmem:[%s3 + $0xc] sm:$0xf] %vm722, %v693
    %727 = vst.msk [vmem:[%s3 + $0x10] sm:$0xf] %vm722, %v694
    %728 = vst.msk [vmem:[%s3 + $0x14] sm:$0xf] %vm722, %v695
    %729 = vst.msk [vmem:[%s3 + $0x18] sm:$0xf] %vm722, %v696
    %730 = vst.msk [vmem:[%s3 + $0x1c] sm:$0xf] %vm722, %v697
    %731 = vst.msk [vmem:[%s3 + $0x20] sm:$0xf] %vm722, %v698
    %732 = vst.msk [vmem:[%s3 + $0x24] sm:$0xf] %vm722, %v699
    %733 = vst.msk [vmem:[%s3 + $0x28] sm:$0xf] %vm722, %v700
    %734 = vst.msk [vmem:[%s3 + $0x2c] sm:$0xf] %vm722, %v701
    %735 = vst.msk [vmem:[%s3 + $0x30] sm:$0xf] %vm722, %v702
    %736 = vst.msk [vmem:[%s3 + $0x34] sm:$0xf] %vm722, %v703
    %737 = vst.msk [vmem:[%s3 + $0x38] sm:$0xf] %vm722, %v704
    %738 = vst.msk [vmem:[%s3 + $0x3c] sm:$0xf] %vm722, %v705
  $region21: #{cnn_forward.6} parent=0 // pred_fallthru
    _
  // Predicated region
  $region22: #{cnn_forward.6} parent=0 // pred_check
    _
  $region23: #{cnn_forward.6} parent=0 // pred_check_branch
    %740 = sbr.rel (0) target = $region25
  $region24: #{cnn_forward.6} parent=0 // pred_region
    _
  $region25: #{cnn_forward.6} parent=0 // pred_fallthru
    _
  // Predicated region
  $region26: #{cnn_forward.6} parent=0 // pred_check
    _
  $region27: #{cnn_forward.6} parent=0 // pred_check_branch
    %742 = sbr.rel (0) target = $region29
  $region28: #{cnn_forward.6} parent=0 // pred_region
    _
  $region29: #{cnn_forward.6} parent=0 // pred_fallthru
    _

// kernel: cnn_forward.7
$region0: #{cnn_forward.7}
  #allocation0 [shape = 'u32[]', space=smem, size = 0x4, offset = 0x4, fixed_abs, tag = 'smem constant byte address 0x4 - core index']
  #allocation1 [shape = 'u32[144,128]{1,0:T(1,128)}', space=vmem, size = 0x12000, scoped, tag = 'internal scratch']
  #allocation2 [shape = 'f32[2,256]{1,0:T(2,128)}', space=vmem, size = 0x800, scoped, tag = 'scratch operand']
  %s0 = inlined_call_operand.vmem [shape: bf16[2,4096], index: 0, kind: input, shape index: {}]
  %s1 = inlined_call_operand.vmem [shape: bf16[4096,256], index: 1, kind: input, shape index: {}]
  %s2 = inlined_call_operand.vmem [shape: f32[1,256], index: 2, kind: input, shape index: {}]
  %s3 = inlined_call_operand.vmem [shape: bf16[256,128], index: 3, kind: input, shape index: {}]
  %s4 = inlined_call_operand.vmem [shape: f32[1,128], index: 4, kind: input, shape index: {}]
  %s5 = inlined_call_operand.hbm [shape: f32[2,128], index: 5, kind: output, shape index: {}]
  %s6 = sld [smem:[#allocation0]]
  $region61: #{cnn_forward.7} parent=0
    _
  %s8 = ssub.s32 1, %s6
  %s9 = scalar_select 0, %s8, %s6
  $region1: #{cnn_forward.7} parent=0
    #allocation3 [shape = 'u8[1024]{0}', space=vmem, size = 0x400, scoped, tag = 'output window, operand 0, single buffered']
    #allocation4 [shape = 's32[2]{0}', space=sflag, size = 0x8, scoped, tag = 'scoped memory for cnn_forward.7']
    %10 = vsyncpa [#allocation4], 0
    loop: start=0, step=1, limit=4
    $region2: #{cnn_forward.7} parent=1 // loop_pre_header
      _
    $region3: #{cnn_forward.7} parent=1 // loop_header
      %s12 = sphi 0, %s16
      %p13 = scmp.ge.s32.totalorder %s12, 4
      %s19 = sphi 0, %s31
      %s20 = sphi 0, %s27
      %s21 = sphi 0, %s19
      %s22 = sphi 0, %s20
      %s23 = sphi 0, %s21
      %s24 = sphi 0, %s22
      %s36 = sphi 0, %s38
      %s39 = sphi 0, %s36
      %s40 = sphi 0, %s39
      %s56 = sphi 0, %s40
      %s62 = sphi 0, %s64
      %s65 = sphi 0, %s62
      %s66 = sphi 0, %s65
      %s82 = sphi 0, %s66
      %s86 = sphi 0, %s86
      %s88 = sphi 0, %s86
      %s89 = sphi 0, %s88
      %s103 = sphi 0, %s89
      %s107 = sphi 0, %s107
      %s109 = sphi 0, %s107
      %s110 = sphi 0, %s109
      %s124 = sphi 0, %s110
      %s128 = sphi 0, %s128
      %s130 = sphi 0, %s128
      %s131 = sphi 0, %s130
      %s145 = sphi 0, %s131
      %s151 = sphi 0, %s153
      %s154 = sphi 0, %s151
      %s155 = sphi 0, %s154
      %s171 = sphi 0, %s155
    $region4: #{cnn_forward.7} parent=1 // loop_header_branch
      %15 = sbr.rel (%p13) target = $region8
    $region5: #{cnn_forward.7} parent=1 // loop_body
      %s17 = ssub.s32 %s12, 1
      %s18 = ssub.s32 %s12, 2
      %s25 = sadd.s32 1, %s20
      %p26 = scmp.ge.s32.totalorder %s25, 2
      %s27 = scalar_select %p26, 0, %s25
      %s28 = sadd.s32 1, %s19
      %s29 = scalar_select %p26, %s28, %s19
      %p30 = scmp.ge.s32.totalorder %s29, 1
      %s31 = scalar_select %p30, 0, %s29
      %s32 = ssub.s32 %s19, %s31
      %s33 = ssub.s32 %s20, %s27
      %s34 = sor.u32 %s32, %s33
      %p35 = scmp.eq.s32.totalorder %s34, 0
      %s37 = sadd.s32 %s36, 1
      %s38 = scalar_select %p35, %s36, %s37
      %p41 = pneg %p35
      %p42 = scmp.eq.s32.totalorder %s12, 1
      %p43 = por %p41, %p42
      %p44 = scmp.ne.s32.totalorder %s36, %s39
      %p45 = scmp.eq.s32.totalorder %s12, 0
      %p46 = por %p44, %p45
      %p47 = scmp.ne.s32.totalorder %s36, %s39
      %p48 = scmp.eq.s32.totalorder %s17, 1
      %p49 = por %p47, %p48
      %p50 = scmp.ne.s32.totalorder %s39, %s40
      %p51 = scmp.eq.s32.totalorder %s17, 0
      %p52 = por %p50, %p51
      %p53 = scmp.ne.s32.totalorder %s39, %s40
      %p54 = scmp.eq.s32.totalorder %s18, 1
      %p55 = por %p53, %p54
      %p57 = scmp.ne.s32.totalorder %s40, %s56
      %p58 = scmp.eq.s32.totalorder %s18, 0
      %p59 = por %p57, %p58
      %s60 = ssub.s32 %s20, %s27
      %p61 = scmp.eq.s32.totalorder %s60, 0
      %s63 = sadd.s32 %s62, 1
      %s64 = scalar_select %p61, %s62, %s63
      %p67 = pneg %p61
      %p68 = scmp.eq.s32.totalorder %s12, 1
      %p69 = por %p67, %p68
      %p70 = scmp.ne.s32.totalorder %s62, %s65
      %p71 = scmp.eq.s32.totalorder %s12, 0
      %p72 = por %p70, %p71
      %p73 = scmp.ne.s32.totalorder %s62, %s65
      %p74 = scmp.eq.s32.totalorder %s17, 1
      %p75 = por %p73, %p74
      %p76 = scmp.ne.s32.totalorder %s65, %s66
      %p77 = scmp.eq.s32.totalorder %s17, 0
      %p78 = por %p76, %p77
      %p79 = scmp.ne.s32.totalorder %s65, %s66
      %p80 = scmp.eq.s32.totalorder %s18, 1
      %p81 = por %p79, %p80
      %p83 = scmp.ne.s32.totalorder %s66, %s82
      %p84 = scmp.eq.s32.totalorder %s18, 0
      %p85 = por %p83, %p84
      %s87 = sadd.s32 %s86, 1
      %p90 = scmp.eq.s32.totalorder %s12, 1
      %p91 = scmp.ne.s32.totalorder %s86, %s88
      %p92 = scmp.eq.s32.totalorder %s12, 0
      %p93 = por %p91, %p92
      %p94 = scmp.ne.s32.totalorder %s86, %s88
      %p95 = scmp.eq.s32.totalorder %s17, 1
      %p96 = por %p94, %p95
      %p97 = scmp.ne.s32.totalorder %s88, %s89
      %p98 = scmp.eq.s32.totalorder %s17, 0
      %p99 = por %p97, %p98
      %p100 = scmp.ne.s32.totalorder %s88, %s89
      %p101 = scmp.eq.s32.totalorder %s18, 1
      %p102 = por %p100, %p101
      %p104 = scmp.ne.s32.totalorder %s89, %s103
      %p105 = scmp.eq.s32.totalorder %s18, 0
      %p106 = por %p104, %p105
      %s108 = sadd.s32 %s107, 1
      %p111 = scmp.eq.s32.totalorder %s12, 1
      %p112 = scmp.ne.s32.totalorder %s107, %s109
      %p113 = scmp.eq.s32.totalorder %s12, 0
      %p114 = por %p112, %p113
      %p115 = scmp.ne.s32.totalorder %s107, %s109
      %p116 = scmp.eq.s32.totalorder %s17, 1
      %p117 = por %p115, %p116
      %p118 = scmp.ne.s32.totalorder %s109, %s110
      %p119 = scmp.eq.s32.totalorder %s17, 0
      %p120 = por %p118, %p119
      %p121 = scmp.ne.s32.totalorder %s109, %s110
      %p122 = scmp.eq.s32.totalorder %s18, 1
      %p123 = por %p121, %p122
      %p125 = scmp.ne.s32.totalorder %s110, %s124
      %p126 = scmp.eq.s32.totalorder %s18, 0
      %p127 = por %p125, %p126
      %s129 = sadd.s32 %s128, 1
      %p132 = scmp.eq.s32.totalorder %s12, 1
      %p133 = scmp.ne.s32.totalorder %s128, %s130
      %p134 = scmp.eq.s32.totalorder %s12, 0
      %p135 = por %p133, %p134
      %p136 = scmp.ne.s32.totalorder %s128, %s130
      %p137 = scmp.eq.s32.totalorder %s17, 1
      %p138 = por %p136, %p137
      %p139 = scmp.ne.s32.totalorder %s130, %s131
      %p140 = scmp.eq.s32.totalorder %s17, 0
      %p141 = por %p139, %p140
      %p142 = scmp.ne.s32.totalorder %s130, %s131
      %p143 = scmp.eq.s32.totalorder %s18, 1
      %p144 = por %p142, %p143
      %p146 = scmp.ne.s32.totalorder %s131, %s145
      %p147 = scmp.eq.s32.totalorder %s18, 0
      %p148 = por %p146, %p147
      %s149 = ssub.s32 %s19, %s31
      %p150 = scmp.eq.s32.totalorder %s149, 0
      %s152 = sadd.s32 %s151, 1
      %s153 = scalar_select %p150, %s151, %s152
      %p156 = pneg %p150
      %p157 = scmp.eq.s32.totalorder %s12, 1
      %p158 = por %p156, %p157
      %p159 = scmp.ne.s32.totalorder %s151, %s154
      %p160 = scmp.eq.s32.totalorder %s12, 0
      %p161 = por %p159, %p160
      %p162 = scmp.ne.s32.totalorder %s151, %s154
      %p163 = scmp.eq.s32.totalorder %s17, 1
      %p164 = por %p162, %p163
      %p165 = scmp.ne.s32.totalorder %s154, %s155
      %p166 = scmp.eq.s32.totalorder %s17, 0
      %p167 = por %p165, %p166
      %p168 = scmp.ne.s32.totalorder %s154, %s155
      %p169 = scmp.eq.s32.totalorder %s18, 1
      %p170 = por %p168, %p169
      %p172 = scmp.ne.s32.totalorder %s155, %s171
      %p173 = scmp.eq.s32.totalorder %s18, 0
      %p174 = por %p172, %p173
      %p175 = scmp.le.s32.totalorder 1, %s12
      %p176 = scmp.lt.s32.totalorder %s12, 3
      %p177 = pnand %p175, %p176
      %p178 = pneg %p177
      // Predicated region
      $region9: #{cnn_forward.7} parent=5 // pred_check
        _
      $region10: #{cnn_forward.7} parent=5 // pred_check_branch
        %180 = sbr.rel (%p177) target = $region12
      $region11: #{cnn_forward.7} parent=5 // pred_region
        %s181 = ssub.s32 %s12, 1
        // Predicated region
        $region13: #{cnn_forward.7} parent=11 // pred_check
          %p182 = pneg %p99
        $region14: #{cnn_forward.7} parent=11 // pred_check_branch
          %184 = sbr.rel (%p182) target = $region16
        $region15: #{cnn_forward.7} parent=11 // pred_region
          _
        $region16: #{cnn_forward.7} parent=11 // pred_fallthru
          _
        // Predicated region
        $region17: #{cnn_forward.7} parent=11 // pred_check
          %p185 = pneg %p120
        $region18: #{cnn_forward.7} parent=11 // pred_check_branch
          %187 = sbr.rel (%p185) target = $region20
        $region19: #{cnn_forward.7} parent=11 // pred_region
          _
        $region20: #{cnn_forward.7} parent=11 // pred_fallthru
          _
        // Predicated region
        $region21: #{cnn_forward.7} parent=11 // pred_check
          %p188 = pneg %p141
        $region22: #{cnn_forward.7} parent=11 // pred_check_branch
          %190 = sbr.rel (%p188) target = $region24
        $region23: #{cnn_forward.7} parent=11 // pred_region
          _
        $region24: #{cnn_forward.7} parent=11 // pred_fallthru
          _
      $region12: #{cnn_forward.7} parent=5 // pred_fallthru
        _
      %p191 = scmp.lt.s32.totalorder %s12, 2
      // Predicated region
      $region25: #{cnn_forward.7} parent=5 // pred_check
        %p192 = pneg %p191
      $region26: #{cnn_forward.7} parent=5 // pred_check_branch
        %194 = sbr.rel (%p192) target = $region28
      $region27: #{cnn_forward.7} parent=5 // pred_region
        // Predicated region
        $region29: #{cnn_forward.7} parent=27 // pred_check
          %p195 = pneg %p46
        $region30: #{cnn_forward.7} parent=27 // pred_check_branch
          %197 = sbr.rel (%p195) target = $region32
        $region31: #{cnn_forward.7} parent=27 // pred_region
          %s198 = smul.u32 16, %s20
          %p199 = scmp.lt.s32.totalorder %s19, 0
          %s200 = scalar_select %p199, %s19, 0
          %p201 = scmp.lt.s32.totalorder %s198, 31
          %s202 = scalar_select %p201, %s198, 31
          %s203 = smul.addr %s200, 32
          %s204 = sadd.s32 %s202, %s203
          %s205 = scalar_lea.vmem %s0, %s204
          %s206 = smul.u32 16, %s20
        $region32: #{cnn_forward.7} parent=27 // pred_fallthru
          _
        // Predicated region
        $region33: #{cnn_forward.7} parent=27 // pred_check
          %p207 = pneg %p72
        $region34: #{cnn_forward.7} parent=27 // pred_check_branch
          %209 = sbr.rel (%p207) target = $region36
        $region35: #{cnn_forward.7} parent=27 // pred_region
          %s210 = smul.u32 256, %s20
          %p211 = scmp.lt.s32.totalorder %s210, 511
          %s212 = scalar_select %p211, %s210, 511
          %s213 = smul.addr %s212, 2
          %s214 = smul.addr %s213, 4
          %s215 = scalar_lea.vmem %s1, %s214
          %s216 = smul.u32 256, %s20
        $region36: #{cnn_forward.7} parent=27 // pred_fallthru
          _
      $region28: #{cnn_forward.7} parent=5 // pred_fallthru
        _
      %p217 = scmp.le.s32.totalorder 1, %s12
      %p218 = scmp.lt.s32.totalorder %s12, 3
      %p219 = pnand %p217, %p218
      %p220 = pneg %p219
      // Predicated region
      $region37: #{cnn_forward.7} parent=5 // pred_check
        _
      $region38: #{cnn_forward.7} parent=5 // pred_check_branch
        %222 = sbr.rel (%p219) target = $region40
      $region39: #{cnn_forward.7} parent=5 // pred_region
        %s223 = ssub.s32 %s12, 1
        %s224 = smul.u32 16, %s22
        %p225 = scmp.lt.s32.totalorder %s21, 0
        %s226 = scalar_select %p225, %s21, 0
        %p227 = scmp.lt.s32.totalorder %s224, 31
        %s228 = scalar_select %p227, %s224, 31
        %s229 = smul.addr %s226, 32
        %s230 = sadd.s32 %s228, %s229
        %s231 = scalar_lea.vmem %s0, %s230
        %p232 = pneg %p52
        %p233 = pneg %p49
        %s234 = smul.u32 256, %s22
        %p235 = scmp.lt.s32.totalorder %s234, 511
        %s236 = scalar_select %p235, %s234, 511
        %s237 = smul.addr %s236, 2
        %s238 = smul.addr %s237, 4
        %s239 = scalar_lea.vmem %s1, %s238
        %p240 = pneg %p78
        %p241 = pneg %p75
        %p242 = pneg %p99
        %p243 = pneg %p96
        %p244 = pneg %p120
        %p245 = pneg %p117
        %p246 = pneg %p141
        %p247 = pneg %p138
        %p248 = pneg %p167
        %p249 = pneg %p164
        %s250 = smul.u32 16, %s22
        %p251 = scmp.lt.s32.totalorder %s21, 0
        %s252 = scalar_select %p251, %s21, 0
        %p253 = scmp.lt.s32.totalorder %s250, 31
        %s254 = scalar_select %p253, %s250, 31
        %s255 = smul.addr %s252, 32
        %s256 = sadd.s32 %s254, %s255
        %s257 = scalar_lea.vmem %s0, %s256
        %s258 = smul.u32 16, %s22
        %s259 = smul.u32 256, %s22
        %p260 = scmp.lt.s32.totalorder %s259, 511
        %s261 = scalar_select %p260, %s259, 511
        %s262 = smul.addr %s261, 2
        %s263 = smul.addr %s262, 4
        %s264 = scalar_lea.vmem %s1, %s263
        %s265 = smul.u32 256, %s22
        %p267 = scmp.eq.s32.totalorder %s22, 0
        // Predicated region
        $region41: #{cnn_forward.7} parent=39 // pred_check
          %p268 = pneg %p267
        $region42: #{cnn_forward.7} parent=39 // pred_check_branch
          %270 = sbr.rel (%p268) target = $region44
        $region43: #{cnn_forward.7} parent=39 // pred_region
          %271 = vst [vmem:[#allocation2] sm:$0xf] 0.0
        $region44: #{cnn_forward.7} parent=39 // pred_fallthru
          _
        %v272 = vld [vmem:[#allocation2] sm:$0xf]
        %v273 = vld [vmem:[%s257] sm:$0xff]
        %v274 = vld [vmem:[%s257 + $0x8] sm:$0xff]
        %v275 = vld [vmem:[%s264] sm:$0xff]
        %v276 = vld [vmem:[%s264 + $0x8] sm:$0xff]
        %v277 = vld [vmem:[%s264 + $0x10] sm:$0xff]
        %v278 = vld [vmem:[%s264 + $0x18] sm:$0xff]
        %v279 = vld [vmem:[%s264 + $0x20] sm:$0xff]
        %v280 = vld [vmem:[%s264 + $0x28] sm:$0xff]
        %v281 = vld [vmem:[%s264 + $0x30] sm:$0xff]
        %v282 = vld [vmem:[%s264 + $0x38] sm:$0xff]
        %v283 = vld [vmem:[%s264 + $0x40] sm:$0xff]
        %v284 = vld [vmem:[%s264 + $0x48] sm:$0xff]
        %v285 = vld [vmem:[%s264 + $0x50] sm:$0xff]
        %v286 = vld [vmem:[%s264 + $0x58] sm:$0xff]
        %v287 = vld [vmem:[%s264 + $0x60] sm:$0xff]
        %v288 = vld [vmem:[%s264 + $0x68] sm:$0xff]
        %v289 = vld [vmem:[%s264 + $0x70] sm:$0xff]
        %v290 = vld [vmem:[%s264 + $0x78] sm:$0xff]
        %v291 = vld [vmem:[%s264 + $0x80] sm:$0xff]
        %v292 = vld [vmem:[%s264 + $0x88] sm:$0xff]
        %v293 = vld [vmem:[%s264 + $0x90] sm:$0xff]
        %v294 = vld [vmem:[%s264 + $0x98] sm:$0xff]
        %v295 = vld [vmem:[%s264 + $0xa0] sm:$0xff]
        %v296 = vld [vmem:[%s264 + $0xa8] sm:$0xff]
        %v297 = vld [vmem:[%s264 + $0xb0] sm:$0xff]
        %v298 = vld [vmem:[%s264 + $0xb8] sm:$0xff]
        %v299 = vld [vmem:[%s264 + $0xc0] sm:$0xff]
        %v300 = vld [vmem:[%s264 + $0xc8] sm:$0xff]
        %v301 = vld [vmem:[%s264 + $0xd0] sm:$0xff]
        %v302 = vld [vmem:[%s264 + $0xd8] sm:$0xff]
        %v303 = vld [vmem:[%s264 + $0xe0] sm:$0xff]
        %v304 = vld [vmem:[%s264 + $0xe8] sm:$0xff]
        %v305 = vld [vmem:[%s264 + $0xf0] sm:$0xff]
        %v306 = vld [vmem:[%s264 + $0xf8] sm:$0xff]
        %v307 = vld [vmem:[%s264 + $0x100] sm:$0xff]
        %v308 = vld [vmem:[%s264 + $0x108] sm:$0xff]
        %v309 = vld [vmem:[%s264 + $0x110] sm:$0xff]
        %v310 = vld [vmem:[%s264 + $0x118] sm:$0xff]
        %v311 = vld [vmem:[%s264 + $0x120] sm:$0xff]
        %v312 = vld [vmem:[%s264 + $0x128] sm:$0xff]
        %v313 = vld [vmem:[%s264 + $0x130] sm:$0xff]
        %v314 = vld [vmem:[%s264 + $0x138] sm:$0xff]
        %v315 = vld [vmem:[%s264 + $0x140] sm:$0xff]
        %v316 = vld [vmem:[%s264 + $0x148] sm:$0xff]
        %v317 = vld [vmem:[%s264 + $0x150] sm:$0xff]
        %v318 = vld [vmem:[%s264 + $0x158] sm:$0xff]
        %v319 = vld [vmem:[%s264 + $0x160] sm:$0xff]
        %v320 = vld [vmem:[%s264 + $0x168] sm:$0xff]
        %v321 = vld [vmem:[%s264 + $0x170] sm:$0xff]
        %v322 = vld [vmem:[%s264 + $0x178] sm:$0xff]
        %v323 = vld [vmem:[%s264 + $0x180] sm:$0xff]
        %v324 = vld [vmem:[%s264 + $0x188] sm:$0xff]
        %v325 = vld [vmem:[%s264 + $0x190] sm:$0xff]
        %v326 = vld [vmem:[%s264 + $0x198] sm:$0xff]
        %v327 = vld [vmem:[%s264 + $0x1a0] sm:$0xff]
        %v328 = vld [vmem:[%s264 + $0x1a8] sm:$0xff]
        %v329 = vld [vmem:[%s264 + $0x1b0] sm:$0xff]
        %v330 = vld [vmem:[%s264 + $0x1b8] sm:$0xff]
        %v331 = vld [vmem:[%s264 + $0x1c0] sm:$0xff]
        %v332 = vld [vmem:[%s264 + $0x1c8] sm:$0xff]
        %v333 = vld [vmem:[%s264 + $0x1d0] sm:$0xff]
        %v334 = vld [vmem:[%s264 + $0x1d8] sm:$0xff]
        %v335 = vld [vmem:[%s264 + $0x1e0] sm:$0xff]
        %v336 = vld [vmem:[%s264 + $0x1e8] sm:$0xff]
        %v337 = vld [vmem:[%s264 + $0x1f0] sm:$0xff]
        %v338 = vld [vmem:[%s264 + $0x1f8] sm:$0xff]
        %v339 = vld [vmem:[%s264 + $0x200] sm:$0xff]
        %v340 = vld [vmem:[%s264 + $0x208] sm:$0xff]
        %v341 = vld [vmem:[%s264 + $0x210] sm:$0xff]
        %v342 = vld [vmem:[%s264 + $0x218] sm:$0xff]
        %v343 = vld [vmem:[%s264 + $0x220] sm:$0xff]
        %v344 = vld [vmem:[%s264 + $0x228] sm:$0xff]
        %v345 = vld [vmem:[%s264 + $0x230] sm:$0xff]
        %v346 = vld [vmem:[%s264 + $0x238] sm:$0xff]
        %v347 = vld [vmem:[%s264 + $0x240] sm:$0xff]
        %v348 = vld [vmem:[%s264 + $0x248] sm:$0xff]
        %v349 = vld [vmem:[%s264 + $0x250] sm:$0xff]
        %v350 = vld [vmem:[%s264 + $0x258] sm:$0xff]
        %v351 = vld [vmem:[%s264 + $0x260] sm:$0xff]
        %v352 = vld [vmem:[%s264 + $0x268] sm:$0xff]
        %v353 = vld [vmem:[%s264 + $0x270] sm:$0xff]
        %v354 = vld [vmem:[%s264 + $0x278] sm:$0xff]
        %v355 = vld [vmem:[%s264 + $0x280] sm:$0xff]
        %v356 = vld [vmem:[%s264 + $0x288] sm:$0xff]
        %v357 = vld [vmem:[%s264 + $0x290] sm:$0xff]
        %v358 = vld [vmem:[%s264 + $0x298] sm:$0xff]
        %v359 = vld [vmem:[%s264 + $0x2a0] sm:$0xff]
        %v360 = vld [vmem:[%s264 + $0x2a8] sm:$0xff]
        %v361 = vld [vmem:[%s264 + $0x2b0] sm:$0xff]
        %v362 = vld [vmem:[%s264 + $0x2b8] sm:$0xff]
        %v363 = vld [vmem:[%s264 + $0x2c0] sm:$0xff]
        %v364 = vld [vmem:[%s264 + $0x2c8] sm:$0xff]
        %v365 = vld [vmem:[%s264 + $0x2d0] sm:$0xff]
        %v366 = vld [vmem:[%s264 + $0x2d8] sm:$0xff]
        %v367 = vld [vmem:[%s264 + $0x2e0] sm:$0xff]
        %v368 = vld [vmem:[%s264 + $0x2e8] sm:$0xff]
        %v369 = vld [vmem:[%s264 + $0x2f0] sm:$0xff]
        %v370 = vld [vmem:[%s264 + $0x2f8] sm:$0xff]
        %v371 = vld [vmem:[%s264 + $0x300] sm:$0xff]
        %v372 = vld [vmem:[%s264 + $0x308] sm:$0xff]
        %v373 = vld [vmem:[%s264 + $0x310] sm:$0xff]
        %v374 = vld [vmem:[%s264 + $0x318] sm:$0xff]
        %v375 = vld [vmem:[%s264 + $0x320] sm:$0xff]
        %v376 = vld [vmem:[%s264 + $0x328] sm:$0xff]
        %v377 = vld [vmem:[%s264 + $0x330] sm:$0xff]
        %v378 = vld [vmem:[%s264 + $0x338] sm:$0xff]
        %v379 = vld [vmem:[%s264 + $0x340] sm:$0xff]
        %v380 = vld [vmem:[%s264 + $0x348] sm:$0xff]
        %v381 = vld [vmem:[%s264 + $0x350] sm:$0xff]
        %v382 = vld [vmem:[%s264 + $0x358] sm:$0xff]
        %v383 = vld [vmem:[%s264 + $0x360] sm:$0xff]
        %v384 = vld [vmem:[%s264 + $0x368] sm:$0xff]
        %v385 = vld [vmem:[%s264 + $0x370] sm:$0xff]
        %v386 = vld [vmem:[%s264 + $0x378] sm:$0xff]
        %v387 = vld [vmem:[%s264 + $0x380] sm:$0xff]
        %v388 = vld [vmem:[%s264 + $0x388] sm:$0xff]
        %v389 = vld [vmem:[%s264 + $0x390] sm:$0xff]
        %v390 = vld [vmem:[%s264 + $0x398] sm:$0xff]
        %v391 = vld [vmem:[%s264 + $0x3a0] sm:$0xff]
        %v392 = vld [vmem:[%s264 + $0x3a8] sm:$0xff]
        %v393 = vld [vmem:[%s264 + $0x3b0] sm:$0xff]
        %v394 = vld [vmem:[%s264 + $0x3b8] sm:$0xff]
        %v395 = vld [vmem:[%s264 + $0x3c0] sm:$0xff]
        %v396 = vld [vmem:[%s264 + $0x3c8] sm:$0xff]
        %v397 = vld [vmem:[%s264 + $0x3d0] sm:$0xff]
        %v398 = vld [vmem:[%s264 + $0x3d8] sm:$0xff]
        %v399 = vld [vmem:[%s264 + $0x3e0] sm:$0xff]
        %v400 = vld [vmem:[%s264 + $0x3e8] sm:$0xff]
        %v401 = vld [vmem:[%s264 + $0x3f0] sm:$0xff]
        %v402 = vld [vmem:[%s264 + $0x3f8] sm:$0xff]
        %v403 = vld [vmem:[%s264 + $0x400] sm:$0xff]
        %v404 = vld [vmem:[%s264 + $0x408] sm:$0xff]
        %v405 = vld [vmem:[%s264 + $0x410] sm:$0xff]
        %v406 = vld [vmem:[%s264 + $0x418] sm:$0xff]
        %v407 = vld [vmem:[%s264 + $0x420] sm:$0xff]
        %v408 = vld [vmem:[%s264 + $0x428] sm:$0xff]
        %v409 = vld [vmem:[%s264 + $0x430] sm:$0xff]
        %v410 = vld [vmem:[%s264 + $0x438] sm:$0xff]
        %v411 = vld [vmem:[%s264 + $0x440] sm:$0xff]
        %v412 = vld [vmem:[%s264 + $0x448] sm:$0xff]
        %v413 = vld [vmem:[%s264 + $0x450] sm:$0xff]
        %v414 = vld [vmem:[%s264 + $0x458] sm:$0xff]
        %v415 = vld [vmem:[%s264 + $0x460] sm:$0xff]
        %v416 = vld [vmem:[%s264 + $0x468] sm:$0xff]
        %v417 = vld [vmem:[%s264 + $0x470] sm:$0xff]
        %v418 = vld [vmem:[%s264 + $0x478] sm:$0xff]
        %v419 = vld [vmem:[%s264 + $0x480] sm:$0xff]
        %v420 = vld [vmem:[%s264 + $0x488] sm:$0xff]
        %v421 = vld [vmem:[%s264 + $0x490] sm:$0xff]
        %v422 = vld [vmem:[%s264 + $0x498] sm:$0xff]
        %v423 = vld [vmem:[%s264 + $0x4a0] sm:$0xff]
        %v424 = vld [vmem:[%s264 + $0x4a8] sm:$0xff]
        %v425 = vld [vmem:[%s264 + $0x4b0] sm:$0xff]
        %v426 = vld [vmem:[%s264 + $0x4b8] sm:$0xff]
        %v427 = vld [vmem:[%s264 + $0x4c0] sm:$0xff]
        %v428 = vld [vmem:[%s264 + $0x4c8] sm:$0xff]
        %v429 = vld [vmem:[%s264 + $0x4d0] sm:$0xff]
        %v430 = vld [vmem:[%s264 + $0x4d8] sm:$0xff]
        %v431 = vld [vmem:[%s264 + $0x4e0] sm:$0xff]
        %v432 = vld [vmem:[%s264 + $0x4e8] sm:$0xff]
        %v433 = vld [vmem:[%s264 + $0x4f0] sm:$0xff]
        %v434 = vld [vmem:[%s264 + $0x4f8] sm:$0xff]
        %v435 = vld [vmem:[%s264 + $0x500] sm:$0xff]
        %v436 = vld [vmem:[%s264 + $0x508] sm:$0xff]
        %v437 = vld [vmem:[%s264 + $0x510] sm:$0xff]
        %v438 = vld [vmem:[%s264 + $0x518] sm:$0xff]
        %v439 = vld [vmem:[%s264 + $0x520] sm:$0xff]
        %v440 = vld [vmem:[%s264 + $0x528] sm:$0xff]
        %v441 = vld [vmem:[%s264 + $0x530] sm:$0xff]
        %v442 = vld [vmem:[%s264 + $0x538] sm:$0xff]
        %v443 = vld [vmem:[%s264 + $0x540] sm:$0xff]
        %v444 = vld [vmem:[%s264 + $0x548] sm:$0xff]
        %v445 = vld [vmem:[%s264 + $0x550] sm:$0xff]
        %v446 = vld [vmem:[%s264 + $0x558] sm:$0xff]
        %v447 = vld [vmem:[%s264 + $0x560] sm:$0xff]
        %v448 = vld [vmem:[%s264 + $0x568] sm:$0xff]
        %v449 = vld [vmem:[%s264 + $0x570] sm:$0xff]
        %v450 = vld [vmem:[%s264 + $0x578] sm:$0xff]
        %v451 = vld [vmem:[%s264 + $0x580] sm:$0xff]
        %v452 = vld [vmem:[%s264 + $0x588] sm:$0xff]
        %v453 = vld [vmem:[%s264 + $0x590] sm:$0xff]
        %v454 = vld [vmem:[%s264 + $0x598] sm:$0xff]
        %v455 = vld [vmem:[%s264 + $0x5a0] sm:$0xff]
        %v456 = vld [vmem:[%s264 + $0x5a8] sm:$0xff]
        %v457 = vld [vmem:[%s264 + $0x5b0] sm:$0xff]
        %v458 = vld [vmem:[%s264 + $0x5b8] sm:$0xff]
        %v459 = vld [vmem:[%s264 + $0x5c0] sm:$0xff]
        %v460 = vld [vmem:[%s264 + $0x5c8] sm:$0xff]
        %v461 = vld [vmem:[%s264 + $0x5d0] sm:$0xff]
        %v462 = vld [vmem:[%s264 + $0x5d8] sm:$0xff]
        %v463 = vld [vmem:[%s264 + $0x5e0] sm:$0xff]
        %v464 = vld [vmem:[%s264 + $0x5e8] sm:$0xff]
        %v465 = vld [vmem:[%s264 + $0x5f0] sm:$0xff]
        %v466 = vld [vmem:[%s264 + $0x5f8] sm:$0xff]
        %v467 = vld [vmem:[%s264 + $0x600] sm:$0xff]
        %v468 = vld [vmem:[%s264 + $0x608] sm:$0xff]
        %v469 = vld [vmem:[%s264 + $0x610] sm:$0xff]
        %v470 = vld [vmem:[%s264 + $0x618] sm:$0xff]
        %v471 = vld [vmem:[%s264 + $0x620] sm:$0xff]
        %v472 = vld [vmem:[%s264 + $0x628] sm:$0xff]
        %v473 = vld [vmem:[%s264 + $0x630] sm:$0xff]
        %v474 = vld [vmem:[%s264 + $0x638] sm:$0xff]
        %v475 = vld [vmem:[%s264 + $0x640] sm:$0xff]
        %v476 = vld [vmem:[%s264 + $0x648] sm:$0xff]
        %v477 = vld [vmem:[%s264 + $0x650] sm:$0xff]
        %v478 = vld [vmem:[%s264 + $0x658] sm:$0xff]
        %v479 = vld [vmem:[%s264 + $0x660] sm:$0xff]
        %v480 = vld [vmem:[%s264 + $0x668] sm:$0xff]
        %v481 = vld [vmem:[%s264 + $0x670] sm:$0xff]
        %v482 = vld [vmem:[%s264 + $0x678] sm:$0xff]
        %v483 = vld [vmem:[%s264 + $0x680] sm:$0xff]
        %v484 = vld [vmem:[%s264 + $0x688] sm:$0xff]
        %v485 = vld [vmem:[%s264 + $0x690] sm:$0xff]
        %v486 = vld [vmem:[%s264 + $0x698] sm:$0xff]
        %v487 = vld [vmem:[%s264 + $0x6a0] sm:$0xff]
        %v488 = vld [vmem:[%s264 + $0x6a8] sm:$0xff]
        %v489 = vld [vmem:[%s264 + $0x6b0] sm:$0xff]
        %v490 = vld [vmem:[%s264 + $0x6b8] sm:$0xff]
        %v491 = vld [vmem:[%s264 + $0x6c0] sm:$0xff]
        %v492 = vld [vmem:[%s264 + $0x6c8] sm:$0xff]
        %v493 = vld [vmem:[%s264 + $0x6d0] sm:$0xff]
        %v494 = vld [vmem:[%s264 + $0x6d8] sm:$0xff]
        %v495 = vld [vmem:[%s264 + $0x6e0] sm:$0xff]
        %v496 = vld [vmem:[%s264 + $0x6e8] sm:$0xff]
        %v497 = vld [vmem:[%s264 + $0x6f0] sm:$0xff]
        %v498 = vld [vmem:[%s264 + $0x6f8] sm:$0xff]
        %v499 = vld [vmem:[%s264 + $0x700] sm:$0xff]
        %v500 = vld [vmem:[%s264 + $0x708] sm:$0xff]
        %v501 = vld [vmem:[%s264 + $0x710] sm:$0xff]
        %v502 = vld [vmem:[%s264 + $0x718] sm:$0xff]
        %v503 = vld [vmem:[%s264 + $0x720] sm:$0xff]
        %v504 = vld [vmem:[%s264 + $0x728] sm:$0xff]
        %v505 = vld [vmem:[%s264 + $0x730] sm:$0xff]
        %v506 = vld [vmem:[%s264 + $0x738] sm:$0xff]
        %v507 = vld [vmem:[%s264 + $0x740] sm:$0xff]
        %v508 = vld [vmem:[%s264 + $0x748] sm:$0xff]
        %v509 = vld [vmem:[%s264 + $0x750] sm:$0xff]
        %v510 = vld [vmem:[%s264 + $0x758] sm:$0xff]
        %v511 = vld [vmem:[%s264 + $0x760] sm:$0xff]
        %v512 = vld [vmem:[%s264 + $0x768] sm:$0xff]
        %v513 = vld [vmem:[%s264 + $0x770] sm:$0xff]
        %v514 = vld [vmem:[%s264 + $0x778] sm:$0xff]
        %v515 = vld [vmem:[%s264 + $0x780] sm:$0xff]
        %v516 = vld [vmem:[%s264 + $0x788] sm:$0xff]
        %v517 = vld [vmem:[%s264 + $0x790] sm:$0xff]
        %v518 = vld [vmem:[%s264 + $0x798] sm:$0xff]
        %v519 = vld [vmem:[%s264 + $0x7a0] sm:$0xff]
        %v520 = vld [vmem:[%s264 + $0x7a8] sm:$0xff]
        %v521 = vld [vmem:[%s264 + $0x7b0] sm:$0xff]
        %v522 = vld [vmem:[%s264 + $0x7b8] sm:$0xff]
        %v523 = vld [vmem:[%s264 + $0x7c0] sm:$0xff]
        %v524 = vld [vmem:[%s264 + $0x7c8] sm:$0xff]
        %v525 = vld [vmem:[%s264 + $0x7d0] sm:$0xff]
        %v526 = vld [vmem:[%s264 + $0x7d8] sm:$0xff]
        %v527 = vld [vmem:[%s264 + $0x7e0] sm:$0xff]
        %v528 = vld [vmem:[%s264 + $0x7e8] sm:$0xff]
        %v529 = vld [vmem:[%s264 + $0x7f0] sm:$0xff]
        %v530 = vld [vmem:[%s264 + $0x7f8] sm:$0xff]
        %v533 = vcombine.high %v273, %v273
        %v535 = vunpack.c.l.s4 1966171168
        %v536 = vunpack.c.0.s8 %v535
        %v537 = vlaneseq
        %v538 = vshrl.u32 %v537, 7
        %v539 = vsub.s32 %v536, %v538
        %v540 = vrot.slane %v273, %v539
        %v542 = vunpack.c.l.s4 1966171168
        %v543 = vunpack.c.0.s8 %v542
        %v544 = vlaneseq
        %v545 = vshrl.u32 %v544, 7
        %v546 = vsub.s32 %v543, %v545
        %v547 = vrot.slane %v533, %v546
        %v548 = vcombine.high %v540, %v540
        %v549 = vcombine.high %v547, %v547
        %v551 = vunpack.c.l.s4 1966171168
        %v552 = vunpack.c.0.s8 %v551
        %v553 = vlaneseq
        %v554 = vshrl.u32 %v553, 7
        %v555 = vsub.s32 %v552, %v554
        %v556 = vrot.slane %v540, %v555
        %v558 = vunpack.c.l.s4 1966171168
        %v559 = vunpack.c.0.s8 %v558
        %v560 = vlaneseq
        %v561 = vshrl.u32 %v560, 7
        %v562 = vsub.s32 %v559, %v561
        %v563 = vrot.slane %v547, %v562
        %v565 = vunpack.c.l.s4 1966171168
        %v566 = vunpack.c.0.s8 %v565
        %v567 = vlaneseq
        %v568 = vshrl.u32 %v567, 7
        %v569 = vsub.s32 %v566, %v568
        %v570 = vrot.slane %v548, %v569
        %v572 = vunpack.c.l.s4 1966171168
        %v573 = vunpack.c.0.s8 %v572
        %v574 = vlaneseq
        %v575 = vshrl.u32 %v574, 7
        %v576 = vsub.s32 %v573, %v575
        %v577 = vrot.slane %v549, %v576
        %v578 = vcombine.high %v556, %v556
        %v579 = vcombine.high %v563, %v563
        %v580 = vcombine.high %v570, %v570
        %v581 = vcombine.high %v577, %v577
        %v582 = vcombine.high %v274, %v274
        %v584 = vunpack.c.l.s4 1966171168
        %v585 = vunpack.c.0.s8 %v584
        %v586 = vlaneseq
        %v587 = vshrl.u32 %v586, 7
        %v588 = vsub.s32 %v585, %v587
        %v589 = vrot.slane %v274, %v588
        %v591 = vunpack.c.l.s4 1966171168
        %v592 = vunpack.c.0.s8 %v591
        %v593 = vlaneseq
        %v594 = vshrl.u32 %v593, 7
        %v595 = vsub.s32 %v592, %v594
        %v596 = vrot.slane %v582, %v595
        %v597 = vcombine.high %v589, %v589
        %v598 = vcombine.high %v596, %v596
        %v600 = vunpack.c.l.s4 1966171168
        %v601 = vunpack.c.0.s8 %v600
        %v602 = vlaneseq
        %v603 = vshrl.u32 %v602, 7
        %v604 = vsub.s32 %v601, %v603
        %v605 = vrot.slane %v589, %v604
        %v607 = vunpack.c.l.s4 1966171168
        %v608 = vunpack.c.0.s8 %v607
        %v609 = vlaneseq
        %v610 = vshrl.u32 %v609, 7
        %v611 = vsub.s32 %v608, %v610
        %v612 = vrot.slane %v596, %v611
        %v614 = vunpack.c.l.s4 1966171168
        %v615 = vunpack.c.0.s8 %v614
        %v616 = vlaneseq
        %v617 = vshrl.u32 %v616, 7
        %v618 = vsub.s32 %v615, %v617
        %v619 = vrot.slane %v597, %v618
        %v621 = vunpack.c.l.s4 1966171168
        %v622 = vunpack.c.0.s8 %v621
        %v623 = vlaneseq
        %v624 = vshrl.u32 %v623, 7
        %v625 = vsub.s32 %v622, %v624
        %v626 = vrot.slane %v598, %v625
        %v627 = vcombine.high %v605, %v605
        %v628 = vcombine.high %v612, %v612
        %v629 = vcombine.high %v619, %v619
        %v630 = vcombine.high %v626, %v626
        %v903 = vunpack.c.l.b16 %v275
        %v904 = vunpack.c.h.b16 %v275
        %v905 = vunpack.c.l.b16 %v276
        %v906 = vunpack.c.h.b16 %v276
        %v907 = vunpack.c.l.b16 %v277
        %v908 = vunpack.c.h.b16 %v277
        %v909 = vunpack.c.l.b16 %v278
        %v910 = vunpack.c.h.b16 %v278
        %v911 = vunpack.c.l.b16 %v279
        %v912 = vunpack.c.h.b16 %v279
        %v913 = vunpack.c.l.b16 %v280
        %v914 = vunpack.c.h.b16 %v280
        %v915 = vunpack.c.l.b16 %v281
        %v916 = vunpack.c.h.b16 %v281
        %v917 = vunpack.c.l.b16 %v282
        %v918 = vunpack.c.h.b16 %v282
        %v919 = vunpack.c.l.b16 %v283
        %v920 = vunpack.c.h.b16 %v283
        %v921 = vunpack.c.l.b16 %v284
        %v922 = vunpack.c.h.b16 %v284
        %v923 = vunpack.c.l.b16 %v285
        %v924 = vunpack.c.h.b16 %v285
        %v925 = vunpack.c.l.b16 %v286
        %v926 = vunpack.c.h.b16 %v286
        %v927 = vunpack.c.l.b16 %v287
        %v928 = vunpack.c.h.b16 %v287
        %v929 = vunpack.c.l.b16 %v288
        %v930 = vunpack.c.h.b16 %v288
        %v931 = vunpack.c.l.b16 %v289
        %v932 = vunpack.c.h.b16 %v289
        %v933 = vunpack.c.l.b16 %v290
        %v934 = vunpack.c.h.b16 %v290
        %v935 = vunpack.c.l.b16 %v291
        %v936 = vunpack.c.h.b16 %v291
        %v937 = vunpack.c.l.b16 %v292
        %v938 = vunpack.c.h.b16 %v292
        %v939 = vunpack.c.l.b16 %v293
        %v940 = vunpack.c.h.b16 %v293
        %v941 = vunpack.c.l.b16 %v294
        %v942 = vunpack.c.h.b16 %v294
        %v943 = vunpack.c.l.b16 %v295
        %v944 = vunpack.c.h.b16 %v295
        %v945 = vunpack.c.l.b16 %v296
        %v946 = vunpack.c.h.b16 %v296
        %v947 = vunpack.c.l.b16 %v297
        %v948 = vunpack.c.h.b16 %v297
        %v949 = vunpack.c.l.b16 %v298
        %v950 = vunpack.c.h.b16 %v298
        %v951 = vunpack.c.l.b16 %v299
        %v952 = vunpack.c.h.b16 %v299
        %v953 = vunpack.c.l.b16 %v300
        %v954 = vunpack.c.h.b16 %v300
        %v955 = vunpack.c.l.b16 %v301
        %v956 = vunpack.c.h.b16 %v301
        %v957 = vunpack.c.l.b16 %v302
        %v958 = vunpack.c.h.b16 %v302
        %v959 = vunpack.c.l.b16 %v303
        %v960 = vunpack.c.h.b16 %v303
        %v961 = vunpack.c.l.b16 %v304
        %v962 = vunpack.c.h.b16 %v304
        %v963 = vunpack.c.l.b16 %v305
        %v964 = vunpack.c.h.b16 %v305
        %v965 = vunpack.c.l.b16 %v306
        %v966 = vunpack.c.h.b16 %v306
        %v967 = vunpack.c.l.b16 %v307
        %v968 = vunpack.c.h.b16 %v307
        %v969 = vunpack.c.l.b16 %v308
        %v970 = vunpack.c.h.b16 %v308
        %v971 = vunpack.c.l.b16 %v309
        %v972 = vunpack.c.h.b16 %v309
        %v973 = vunpack.c.l.b16 %v310
        %v974 = vunpack.c.h.b16 %v310
        %v975 = vunpack.c.l.b16 %v311
        %v976 = vunpack.c.h.b16 %v311
        %v977 = vunpack.c.l.b16 %v312
        %v978 = vunpack.c.h.b16 %v312
        %v979 = vunpack.c.l.b16 %v313
        %v980 = vunpack.c.h.b16 %v313
        %v981 = vunpack.c.l.b16 %v314
        %v982 = vunpack.c.h.b16 %v314
        %v983 = vunpack.c.l.b16 %v315
        %v984 = vunpack.c.h.b16 %v315
        %v985 = vunpack.c.l.b16 %v316
        %v986 = vunpack.c.h.b16 %v316
        %v987 = vunpack.c.l.b16 %v317
        %v988 = vunpack.c.h.b16 %v317
        %v989 = vunpack.c.l.b16 %v318
        %v990 = vunpack.c.h.b16 %v318
        %v991 = vunpack.c.l.b16 %v319
        %v992 = vunpack.c.h.b16 %v319
        %v993 = vunpack.c.l.b16 %v320
        %v994 = vunpack.c.h.b16 %v320
        %v995 = vunpack.c.l.b16 %v321
        %v996 = vunpack.c.h.b16 %v321
        %v997 = vunpack.c.l.b16 %v322
        %v998 = vunpack.c.h.b16 %v322
        %v999 = vunpack.c.l.b16 %v323
        %v1000 = vunpack.c.h.b16 %v323
        %v1001 = vunpack.c.l.b16 %v324
        %v1002 = vunpack.c.h.b16 %v324
        %v1003 = vunpack.c.l.b16 %v325
        %v1004 = vunpack.c.h.b16 %v325
        %v1005 = vunpack.c.l.b16 %v326
        %v1006 = vunpack.c.h.b16 %v326
        %v1007 = vunpack.c.l.b16 %v327
        %v1008 = vunpack.c.h.b16 %v327
        %v1009 = vunpack.c.l.b16 %v328
        %v1010 = vunpack.c.h.b16 %v328
        %v1011 = vunpack.c.l.b16 %v329
        %v1012 = vunpack.c.h.b16 %v329
        %v1013 = vunpack.c.l.b16 %v330
        %v1014 = vunpack.c.h.b16 %v330
        %v1015 = vunpack.c.l.b16 %v331
        %v1016 = vunpack.c.h.b16 %v331
        %v1017 = vunpack.c.l.b16 %v332
        %v1018 = vunpack.c.h.b16 %v332
        %v1019 = vunpack.c.l.b16 %v333
        %v1020 = vunpack.c.h.b16 %v333
        %v1021 = vunpack.c.l.b16 %v334
        %v1022 = vunpack.c.h.b16 %v334
        %v1023 = vunpack.c.l.b16 %v335
        %v1024 = vunpack.c.h.b16 %v335
        %v1025 = vunpack.c.l.b16 %v336
        %v1026 = vunpack.c.h.b16 %v336
        %v1027 = vunpack.c.l.b16 %v337
        %v1028 = vunpack.c.h.b16 %v337
        %v1029 = vunpack.c.l.b16 %v338
        %v1030 = vunpack.c.h.b16 %v338
        %v1031 = vunpack.c.l.b16 %v339
        %v1032 = vunpack.c.h.b16 %v339
        %v1033 = vunpack.c.l.b16 %v340
        %v1034 = vunpack.c.h.b16 %v340
        %v1035 = vunpack.c.l.b16 %v341
        %v1036 = vunpack.c.h.b16 %v341
        %v1037 = vunpack.c.l.b16 %v342
        %v1038 = vunpack.c.h.b16 %v342
        %v1039 = vunpack.c.l.b16 %v343
        %v1040 = vunpack.c.h.b16 %v343
        %v1041 = vunpack.c.l.b16 %v344
        %v1042 = vunpack.c.h.b16 %v344
        %v1043 = vunpack.c.l.b16 %v345
        %v1044 = vunpack.c.h.b16 %v345
        %v1045 = vunpack.c.l.b16 %v346
        %v1046 = vunpack.c.h.b16 %v346
        %v1047 = vunpack.c.l.b16 %v347
        %v1048 = vunpack.c.h.b16 %v347
        %v1049 = vunpack.c.l.b16 %v348
        %v1050 = vunpack.c.h.b16 %v348
        %v1051 = vunpack.c.l.b16 %v349
        %v1052 = vunpack.c.h.b16 %v349
        %v1053 = vunpack.c.l.b16 %v350
        %v1054 = vunpack.c.h.b16 %v350
        %v1055 = vunpack.c.l.b16 %v351
        %v1056 = vunpack.c.h.b16 %v351
        %v1057 = vunpack.c.l.b16 %v352
        %v1058 = vunpack.c.h.b16 %v352
        %v1059 = vunpack.c.l.b16 %v353
        %v1060 = vunpack.c.h.b16 %v353
        %v1061 = vunpack.c.l.b16 %v354
        %v1062 = vunpack.c.h.b16 %v354
        %v1063 = vunpack.c.l.b16 %v355
        %v1064 = vunpack.c.h.b16 %v355
        %v1065 = vunpack.c.l.b16 %v356
        %v1066 = vunpack.c.h.b16 %v356
        %v1067 = vunpack.c.l.b16 %v357
        %v1068 = vunpack.c.h.b16 %v357
        %v1069 = vunpack.c.l.b16 %v358
        %v1070 = vunpack.c.h.b16 %v358
        %v1071 = vunpack.c.l.b16 %v359
        %v1072 = vunpack.c.h.b16 %v359
        %v1073 = vunpack.c.l.b16 %v360
        %v1074 = vunpack.c.h.b16 %v360
        %v1075 = vunpack.c.l.b16 %v361
        %v1076 = vunpack.c.h.b16 %v361
        %v1077 = vunpack.c.l.b16 %v362
        %v1078 = vunpack.c.h.b16 %v362
        %v1079 = vunpack.c.l.b16 %v363
        %v1080 = vunpack.c.h.b16 %v363
        %v1081 = vunpack.c.l.b16 %v364
        %v1082 = vunpack.c.h.b16 %v364
        %v1083 = vunpack.c.l.b16 %v365
        %v1084 = vunpack.c.h.b16 %v365
        %v1085 = vunpack.c.l.b16 %v366
        %v1086 = vunpack.c.h.b16 %v366
        %v1087 = vunpack.c.l.b16 %v367
        %v1088 = vunpack.c.h.b16 %v367
        %v1089 = vunpack.c.l.b16 %v368
        %v1090 = vunpack.c.h.b16 %v368
        %v1091 = vunpack.c.l.b16 %v369
        %v1092 = vunpack.c.h.b16 %v369
        %v1093 = vunpack.c.l.b16 %v370
        %v1094 = vunpack.c.h.b16 %v370
        %v1095 = vunpack.c.l.b16 %v371
        %v1096 = vunpack.c.h.b16 %v371
        %v1097 = vunpack.c.l.b16 %v372
        %v1098 = vunpack.c.h.b16 %v372
        %v1099 = vunpack.c.l.b16 %v373
        %v1100 = vunpack.c.h.b16 %v373
        %v1101 = vunpack.c.l.b16 %v374
        %v1102 = vunpack.c.h.b16 %v374
        %v1103 = vunpack.c.l.b16 %v375
        %v1104 = vunpack.c.h.b16 %v375
        %v1105 = vunpack.c.l.b16 %v376
        %v1106 = vunpack.c.h.b16 %v376
        %v1107 = vunpack.c.l.b16 %v377
        %v1108 = vunpack.c.h.b16 %v377
        %v1109 = vunpack.c.l.b16 %v378
        %v1110 = vunpack.c.h.b16 %v378
        %v1111 = vunpack.c.l.b16 %v379
        %v1112 = vunpack.c.h.b16 %v379
        %v1113 = vunpack.c.l.b16 %v380
        %v1114 = vunpack.c.h.b16 %v380
        %v1115 = vunpack.c.l.b16 %v381
        %v1116 = vunpack.c.h.b16 %v381
        %v1117 = vunpack.c.l.b16 %v382
        %v1118 = vunpack.c.h.b16 %v382
        %v1119 = vunpack.c.l.b16 %v383
        %v1120 = vunpack.c.h.b16 %v383
        %v1121 = vunpack.c.l.b16 %v384
        %v1122 = vunpack.c.h.b16 %v384
        %v1123 = vunpack.c.l.b16 %v385
        %v1124 = vunpack.c.h.b16 %v385
        %v1125 = vunpack.c.l.b16 %v386
        %v1126 = vunpack.c.h.b16 %v386
        %v1127 = vunpack.c.l.b16 %v387
        %v1128 = vunpack.c.h.b16 %v387
        %v1129 = vunpack.c.l.b16 %v388
        %v1130 = vunpack.c.h.b16 %v388
        %v1131 = vunpack.c.l.b16 %v389
        %v1132 = vunpack.c.h.b16 %v389
        %v1133 = vunpack.c.l.b16 %v390
        %v1134 = vunpack.c.h.b16 %v390
        %v1135 = vunpack.c.l.b16 %v391
        %v1136 = vunpack.c.h.b16 %v391
        %v1137 = vunpack.c.l.b16 %v392
        %v1138 = vunpack.c.h.b16 %v392
        %v1139 = vunpack.c.l.b16 %v393
        %v1140 = vunpack.c.h.b16 %v393
        %v1141 = vunpack.c.l.b16 %v394
        %v1142 = vunpack.c.h.b16 %v394
        %v1143 = vunpack.c.l.b16 %v395
        %v1144 = vunpack.c.h.b16 %v395
        %v1145 = vunpack.c.l.b16 %v396
        %v1146 = vunpack.c.h.b16 %v396
        %v1147 = vunpack.c.l.b16 %v397
        %v1148 = vunpack.c.h.b16 %v397
        %v1149 = vunpack.c.l.b16 %v398
        %v1150 = vunpack.c.h.b16 %v398
        %v1151 = vunpack.c.l.b16 %v399
        %v1152 = vunpack.c.h.b16 %v399
        %v1153 = vunpack.c.l.b16 %v400
        %v1154 = vunpack.c.h.b16 %v400
        %v1155 = vunpack.c.l.b16 %v401
        %v1156 = vunpack.c.h.b16 %v401
        %v1157 = vunpack.c.l.b16 %v402
        %v1158 = vunpack.c.h.b16 %v402
        %v1159 = vunpack.c.l.b16 %v403
        %v1160 = vunpack.c.h.b16 %v403
        %v1161 = vunpack.c.l.b16 %v404
        %v1162 = vunpack.c.h.b16 %v404
        %v1163 = vunpack.c.l.b16 %v405
        %v1164 = vunpack.c.h.b16 %v405
        %v1165 = vunpack.c.l.b16 %v406
        %v1166 = vunpack.c.h.b16 %v406
        %v1167 = vunpack.c.l.b16 %v407
        %v1168 = vunpack.c.h.b16 %v407
        %v1169 = vunpack.c.l.b16 %v408
        %v1170 = vunpack.c.h.b16 %v408
        %v1171 = vunpack.c.l.b16 %v409
        %v1172 = vunpack.c.h.b16 %v409
        %v1173 = vunpack.c.l.b16 %v410
        %v1174 = vunpack.c.h.b16 %v410
        %v1175 = vunpack.c.l.b16 %v411
        %v1176 = vunpack.c.h.b16 %v411
        %v1177 = vunpack.c.l.b16 %v412
        %v1178 = vunpack.c.h.b16 %v412
        %v1179 = vunpack.c.l.b16 %v413
        %v1180 = vunpack.c.h.b16 %v413
        %v1181 = vunpack.c.l.b16 %v414
        %v1182 = vunpack.c.h.b16 %v414
        %v1183 = vunpack.c.l.b16 %v415
        %v1184 = vunpack.c.h.b16 %v415
        %v1185 = vunpack.c.l.b16 %v416
        %v1186 = vunpack.c.h.b16 %v416
        %v1187 = vunpack.c.l.b16 %v417
        %v1188 = vunpack.c.h.b16 %v417
        %v1189 = vunpack.c.l.b16 %v418
        %v1190 = vunpack.c.h.b16 %v418
        %v1191 = vunpack.c.l.b16 %v419
        %v1192 = vunpack.c.h.b16 %v419
        %v1193 = vunpack.c.l.b16 %v420
        %v1194 = vunpack.c.h.b16 %v420
        %v1195 = vunpack.c.l.b16 %v421
        %v1196 = vunpack.c.h.b16 %v421
        %v1197 = vunpack.c.l.b16 %v422
        %v1198 = vunpack.c.h.b16 %v422
        %v1199 = vunpack.c.l.b16 %v423
        %v1200 = vunpack.c.h.b16 %v423
        %v1201 = vunpack.c.l.b16 %v424
        %v1202 = vunpack.c.h.b16 %v424
        %v1203 = vunpack.c.l.b16 %v425
        %v1204 = vunpack.c.h.b16 %v425
        %v1205 = vunpack.c.l.b16 %v426
        %v1206 = vunpack.c.h.b16 %v426
        %v1207 = vunpack.c.l.b16 %v427
        %v1208 = vunpack.c.h.b16 %v427
        %v1209 = vunpack.c.l.b16 %v428
        %v1210 = vunpack.c.h.b16 %v428
        %v1211 = vunpack.c.l.b16 %v429
        %v1212 = vunpack.c.h.b16 %v429
        %v1213 = vunpack.c.l.b16 %v430
        %v1214 = vunpack.c.h.b16 %v430
        %v1215 = vunpack.c.l.b16 %v431
        %v1216 = vunpack.c.h.b16 %v431
        %v1217 = vunpack.c.l.b16 %v432
        %v1218 = vunpack.c.h.b16 %v432
        %v1219 = vunpack.c.l.b16 %v433
        %v1220 = vunpack.c.h.b16 %v433
        %v1221 = vunpack.c.l.b16 %v434
        %v1222 = vunpack.c.h.b16 %v434
        %v1223 = vunpack.c.l.b16 %v435
        %v1224 = vunpack.c.h.b16 %v435
        %v1225 = vunpack.c.l.b16 %v436
        %v1226 = vunpack.c.h.b16 %v436
        %v1227 = vunpack.c.l.b16 %v437
        %v1228 = vunpack.c.h.b16 %v437
        %v1229 = vunpack.c.l.b16 %v438
        %v1230 = vunpack.c.h.b16 %v438
        %v1231 = vunpack.c.l.b16 %v439
        %v1232 = vunpack.c.h.b16 %v439
        %v1233 = vunpack.c.l.b16 %v440
        %v1234 = vunpack.c.h.b16 %v440
        %v1235 = vunpack.c.l.b16 %v441
        %v1236 = vunpack.c.h.b16 %v441
        %v1237 = vunpack.c.l.b16 %v442
        %v1238 = vunpack.c.h.b16 %v442
        %v1239 = vunpack.c.l.b16 %v443
        %v1240 = vunpack.c.h.b16 %v443
        %v1241 = vunpack.c.l.b16 %v444
        %v1242 = vunpack.c.h.b16 %v444
        %v1243 = vunpack.c.l.b16 %v445
        %v1244 = vunpack.c.h.b16 %v445
        %v1245 = vunpack.c.l.b16 %v446
        %v1246 = vunpack.c.h.b16 %v446
        %v1247 = vunpack.c.l.b16 %v447
        %v1248 = vunpack.c.h.b16 %v447
        %v1249 = vunpack.c.l.b16 %v448
        %v1250 = vunpack.c.h.b16 %v448
        %v1251 = vunpack.c.l.b16 %v449
        %v1252 = vunpack.c.h.b16 %v449
        %v1253 = vunpack.c.l.b16 %v450
        %v1254 = vunpack.c.h.b16 %v450
        %v1255 = vunpack.c.l.b16 %v451
        %v1256 = vunpack.c.h.b16 %v451
        %v1257 = vunpack.c.l.b16 %v452
        %v1258 = vunpack.c.h.b16 %v452
        %v1259 = vunpack.c.l.b16 %v453
        %v1260 = vunpack.c.h.b16 %v453
        %v1261 = vunpack.c.l.b16 %v454
        %v1262 = vunpack.c.h.b16 %v454
        %v1263 = vunpack.c.l.b16 %v455
        %v1264 = vunpack.c.h.b16 %v455
        %v1265 = vunpack.c.l.b16 %v456
        %v1266 = vunpack.c.h.b16 %v456
        %v1267 = vunpack.c.l.b16 %v457
        %v1268 = vunpack.c.h.b16 %v457
        %v1269 = vunpack.c.l.b16 %v458
        %v1270 = vunpack.c.h.b16 %v458
        %v1271 = vunpack.c.l.b16 %v459
        %v1272 = vunpack.c.h.b16 %v459
        %v1273 = vunpack.c.l.b16 %v460
        %v1274 = vunpack.c.h.b16 %v460
        %v1275 = vunpack.c.l.b16 %v461
        %v1276 = vunpack.c.h.b16 %v461
        %v1277 = vunpack.c.l.b16 %v462
        %v1278 = vunpack.c.h.b16 %v462
        %v1279 = vunpack.c.l.b16 %v463
        %v1280 = vunpack.c.h.b16 %v463
        %v1281 = vunpack.c.l.b16 %v464
        %v1282 = vunpack.c.h.b16 %v464
        %v1283 = vunpack.c.l.b16 %v465
        %v1284 = vunpack.c.h.b16 %v465
        %v1285 = vunpack.c.l.b16 %v466
        %v1286 = vunpack.c.h.b16 %v466
        %v1287 = vunpack.c.l.b16 %v467
        %v1288 = vunpack.c.h.b16 %v467
        %v1289 = vunpack.c.l.b16 %v468
        %v1290 = vunpack.c.h.b16 %v468
        %v1291 = vunpack.c.l.b16 %v469
        %v1292 = vunpack.c.h.b16 %v469
        %v1293 = vunpack.c.l.b16 %v470
        %v1294 = vunpack.c.h.b16 %v470
        %v1295 = vunpack.c.l.b16 %v471
        %v1296 = vunpack.c.h.b16 %v471
        %v1297 = vunpack.c.l.b16 %v472
        %v1298 = vunpack.c.h.b16 %v472
        %v1299 = vunpack.c.l.b16 %v473
        %v1300 = vunpack.c.h.b16 %v473
        %v1301 = vunpack.c.l.b16 %v474
        %v1302 = vunpack.c.h.b16 %v474
        %v1303 = vunpack.c.l.b16 %v475
        %v1304 = vunpack.c.h.b16 %v475
        %v1305 = vunpack.c.l.b16 %v476
        %v1306 = vunpack.c.h.b16 %v476
        %v1307 = vunpack.c.l.b16 %v477
        %v1308 = vunpack.c.h.b16 %v477
        %v1309 = vunpack.c.l.b16 %v478
        %v1310 = vunpack.c.h.b16 %v478
        %v1311 = vunpack.c.l.b16 %v479
        %v1312 = vunpack.c.h.b16 %v479
        %v1313 = vunpack.c.l.b16 %v480
        %v1314 = vunpack.c.h.b16 %v480
        %v1315 = vunpack.c.l.b16 %v481
        %v1316 = vunpack.c.h.b16 %v481
        %v1317 = vunpack.c.l.b16 %v482
        %v1318 = vunpack.c.h.b16 %v482
        %v1319 = vunpack.c.l.b16 %v483
        %v1320 = vunpack.c.h.b16 %v483
        %v1321 = vunpack.c.l.b16 %v484
        %v1322 = vunpack.c.h.b16 %v484
        %v1323 = vunpack.c.l.b16 %v485
        %v1324 = vunpack.c.h.b16 %v485
        %v1325 = vunpack.c.l.b16 %v486
        %v1326 = vunpack.c.h.b16 %v486
        %v1327 = vunpack.c.l.b16 %v487
        %v1328 = vunpack.c.h.b16 %v487
        %v1329 = vunpack.c.l.b16 %v488
        %v1330 = vunpack.c.h.b16 %v488
        %v1331 = vunpack.c.l.b16 %v489
        %v1332 = vunpack.c.h.b16 %v489
        %v1333 = vunpack.c.l.b16 %v490
        %v1334 = vunpack.c.h.b16 %v490
        %v1335 = vunpack.c.l.b16 %v491
        %v1336 = vunpack.c.h.b16 %v491
        %v1337 = vunpack.c.l.b16 %v492
        %v1338 = vunpack.c.h.b16 %v492
        %v1339 = vunpack.c.l.b16 %v493
        %v1340 = vunpack.c.h.b16 %v493
        %v1341 = vunpack.c.l.b16 %v494
        %v1342 = vunpack.c.h.b16 %v494
        %v1343 = vunpack.c.l.b16 %v495
        %v1344 = vunpack.c.h.b16 %v495
        %v1345 = vunpack.c.l.b16 %v496
        %v1346 = vunpack.c.h.b16 %v496
        %v1347 = vunpack.c.l.b16 %v497
        %v1348 = vunpack.c.h.b16 %v497
        %v1349 = vunpack.c.l.b16 %v498
        %v1350 = vunpack.c.h.b16 %v498
        %v1351 = vunpack.c.l.b16 %v499
        %v1352 = vunpack.c.h.b16 %v499
        %v1353 = vunpack.c.l.b16 %v500
        %v1354 = vunpack.c.h.b16 %v500
        %v1355 = vunpack.c.l.b16 %v501
        %v1356 = vunpack.c.h.b16 %v501
        %v1357 = vunpack.c.l.b16 %v502
        %v1358 = vunpack.c.h.b16 %v502
        %v1359 = vunpack.c.l.b16 %v503
        %v1360 = vunpack.c.h.b16 %v503
        %v1361 = vunpack.c.l.b16 %v504
        %v1362 = vunpack.c.h.b16 %v504
        %v1363 = vunpack.c.l.b16 %v505
        %v1364 = vunpack.c.h.b16 %v505
        %v1365 = vunpack.c.l.b16 %v506
        %v1366 = vunpack.c.h.b16 %v506
        %v1367 = vunpack.c.l.b16 %v507
        %v1368 = vunpack.c.h.b16 %v507
        %v1369 = vunpack.c.l.b16 %v508
        %v1370 = vunpack.c.h.b16 %v508
        %v1371 = vunpack.c.l.b16 %v509
        %v1372 = vunpack.c.h.b16 %v509
        %v1373 = vunpack.c.l.b16 %v510
        %v1374 = vunpack.c.h.b16 %v510
        %v1375 = vunpack.c.l.b16 %v511
        %v1376 = vunpack.c.h.b16 %v511
        %v1377 = vunpack.c.l.b16 %v512
        %v1378 = vunpack.c.h.b16 %v512
        %v1379 = vunpack.c.l.b16 %v513
        %v1380 = vunpack.c.h.b16 %v513
        %v1381 = vunpack.c.l.b16 %v514
        %v1382 = vunpack.c.h.b16 %v514
        %v1383 = vunpack.c.l.b16 %v515
        %v1384 = vunpack.c.h.b16 %v515
        %v1385 = vunpack.c.l.b16 %v516
        %v1386 = vunpack.c.h.b16 %v516
        %v1387 = vunpack.c.l.b16 %v517
        %v1388 = vunpack.c.h.b16 %v517
        %v1389 = vunpack.c.l.b16 %v518
        %v1390 = vunpack.c.h.b16 %v518
        %v1391 = vunpack.c.l.b16 %v519
        %v1392 = vunpack.c.h.b16 %v519
        %v1393 = vunpack.c.l.b16 %v520
        %v1394 = vunpack.c.h.b16 %v520
        %v1395 = vunpack.c.l.b16 %v521
        %v1396 = vunpack.c.h.b16 %v521
        %v1397 = vunpack.c.l.b16 %v522
        %v1398 = vunpack.c.h.b16 %v522
        %v1399 = vunpack.c.l.b16 %v523
        %v1400 = vunpack.c.h.b16 %v523
        %v1401 = vunpack.c.l.b16 %v524
        %v1402 = vunpack.c.h.b16 %v524
        %v1403 = vunpack.c.l.b16 %v525
        %v1404 = vunpack.c.h.b16 %v525
        %v1405 = vunpack.c.l.b16 %v526
        %v1406 = vunpack.c.h.b16 %v526
        %v1407 = vunpack.c.l.b16 %v527
        %v1408 = vunpack.c.h.b16 %v527
        %v1409 = vunpack.c.l.b16 %v528
        %v1410 = vunpack.c.h.b16 %v528
        %v1411 = vunpack.c.l.b16 %v529
        %v1412 = vunpack.c.h.b16 %v529
        %v1413 = vunpack.c.l.b16 %v530
        %v1414 = vunpack.c.h.b16 %v530
        %v1415 = vpack.c.b16 %v905, %v903
        %v1416 = vpack.c.b16 %v906, %v904
        %v1417 = vpack.c.b16 %v909, %v907
        %v1418 = vpack.c.b16 %v910, %v908
        %v1419 = vpack.c.b16 %v913, %v911
        %v1420 = vpack.c.b16 %v914, %v912
        %v1421 = vpack.c.b16 %v917, %v915
        %v1422 = vpack.c.b16 %v918, %v916
        %v1423 = vpack.c.b16 %v921, %v919
        %v1424 = vpack.c.b16 %v922, %v920
        %v1425 = vpack.c.b16 %v925, %v923
        %v1426 = vpack.c.b16 %v926, %v924
        %v1427 = vpack.c.b16 %v929, %v927
        %v1428 = vpack.c.b16 %v930, %v928
        %v1429 = vpack.c.b16 %v933, %v931
        %v1430 = vpack.c.b16 %v934, %v932
        %v1431 = vpack.c.b16 %v937, %v935
        %v1432 = vpack.c.b16 %v938, %v936
        %v1433 = vpack.c.b16 %v941, %v939
        %v1434 = vpack.c.b16 %v942, %v940
        %v1435 = vpack.c.b16 %v945, %v943
        %v1436 = vpack.c.b16 %v946, %v944
        %v1437 = vpack.c.b16 %v949, %v947
        %v1438 = vpack.c.b16 %v950, %v948
        %v1439 = vpack.c.b16 %v953, %v951
        %v1440 = vpack.c.b16 %v954, %v952
        %v1441 = vpack.c.b16 %v957, %v955
        %v1442 = vpack.c.b16 %v958, %v956
        %v1443 = vpack.c.b16 %v961, %v959
        %v1444 = vpack.c.b16 %v962, %v960
        %v1445 = vpack.c.b16 %v965, %v963
        %v1446 = vpack.c.b16 %v966, %v964
        %v1447 = vpack.c.b16 %v969, %v967
        %v1448 = vpack.c.b16 %v970, %v968
        %v1449 = vpack.c.b16 %v973, %v971
        %v1450 = vpack.c.b16 %v974, %v972
        %v1451 = vpack.c.b16 %v977, %v975
        %v1452 = vpack.c.b16 %v978, %v976
        %v1453 = vpack.c.b16 %v981, %v979
        %v1454 = vpack.c.b16 %v982, %v980
        %v1455 = vpack.c.b16 %v985, %v983
        %v1456 = vpack.c.b16 %v986, %v984
        %v1457 = vpack.c.b16 %v989, %v987
        %v1458 = vpack.c.b16 %v990, %v988
        %v1459 = vpack.c.b16 %v993, %v991
        %v1460 = vpack.c.b16 %v994, %v992
        %v1461 = vpack.c.b16 %v997, %v995
        %v1462 = vpack.c.b16 %v998, %v996
        %v1463 = vpack.c.b16 %v1001, %v999
        %v1464 = vpack.c.b16 %v1002, %v1000
        %v1465 = vpack.c.b16 %v1005, %v1003
        %v1466 = vpack.c.b16 %v1006, %v1004
        %v1467 = vpack.c.b16 %v1009, %v1007
        %v1468 = vpack.c.b16 %v1010, %v1008
        %v1469 = vpack.c.b16 %v1013, %v1011
        %v1470 = vpack.c.b16 %v1014, %v1012
        %v1471 = vpack.c.b16 %v1017, %v1015
        %v1472 = vpack.c.b16 %v1018, %v1016
        %v1473 = vpack.c.b16 %v1021, %v1019
        %v1474 = vpack.c.b16 %v1022, %v1020
        %v1475 = vpack.c.b16 %v1025, %v1023
        %v1476 = vpack.c.b16 %v1026, %v1024
        %v1477 = vpack.c.b16 %v1029, %v1027
        %v1478 = vpack.c.b16 %v1030, %v1028
        %v1479 = vpack.c.b16 %v1033, %v1031
        %v1480 = vpack.c.b16 %v1034, %v1032
        %v1481 = vpack.c.b16 %v1037, %v1035
        %v1482 = vpack.c.b16 %v1038, %v1036
        %v1483 = vpack.c.b16 %v1041, %v1039
        %v1484 = vpack.c.b16 %v1042, %v1040
        %v1485 = vpack.c.b16 %v1045, %v1043
        %v1486 = vpack.c.b16 %v1046, %v1044
        %v1487 = vpack.c.b16 %v1049, %v1047
        %v1488 = vpack.c.b16 %v1050, %v1048
        %v1489 = vpack.c.b16 %v1053, %v1051
        %v1490 = vpack.c.b16 %v1054, %v1052
        %v1491 = vpack.c.b16 %v1057, %v1055
        %v1492 = vpack.c.b16 %v1058, %v1056
        %v1493 = vpack.c.b16 %v1061, %v1059
        %v1494 = vpack.c.b16 %v1062, %v1060
        %v1495 = vpack.c.b16 %v1065, %v1063
        %v1496 = vpack.c.b16 %v1066, %v1064
        %v1497 = vpack.c.b16 %v1069, %v1067
        %v1498 = vpack.c.b16 %v1070, %v1068
        %v1499 = vpack.c.b16 %v1073, %v1071
        %v1500 = vpack.c.b16 %v1074, %v1072
        %v1501 = vpack.c.b16 %v1077, %v1075
        %v1502 = vpack.c.b16 %v1078, %v1076
        %v1503 = vpack.c.b16 %v1081, %v1079
        %v1504 = vpack.c.b16 %v1082, %v1080
        %v1505 = vpack.c.b16 %v1085, %v1083
        %v1506 = vpack.c.b16 %v1086, %v1084
        %v1507 = vpack.c.b16 %v1089, %v1087
        %v1508 = vpack.c.b16 %v1090, %v1088
        %v1509 = vpack.c.b16 %v1093, %v1091
        %v1510 = vpack.c.b16 %v1094, %v1092
        %v1511 = vpack.c.b16 %v1097, %v1095
        %v1512 = vpack.c.b16 %v1098, %v1096
        %v1513 = vpack.c.b16 %v1101, %v1099
        %v1514 = vpack.c.b16 %v1102, %v1100
        %v1515 = vpack.c.b16 %v1105, %v1103
        %v1516 = vpack.c.b16 %v1106, %v1104
        %v1517 = vpack.c.b16 %v1109, %v1107
        %v1518 = vpack.c.b16 %v1110, %v1108
        %v1519 = vpack.c.b16 %v1113, %v1111
        %v1520 = vpack.c.b16 %v1114, %v1112
        %v1521 = vpack.c.b16 %v1117, %v1115
        %v1522 = vpack.c.b16 %v1118, %v1116
        %v1523 = vpack.c.b16 %v1121, %v1119
        %v1524 = vpack.c.b16 %v1122, %v1120
        %v1525 = vpack.c.b16 %v1125, %v1123
        %v1526 = vpack.c.b16 %v1126, %v1124
        %v1527 = vpack.c.b16 %v1129, %v1127
        %v1528 = vpack.c.b16 %v1130, %v1128
        %v1529 = vpack.c.b16 %v1133, %v1131
        %v1530 = vpack.c.b16 %v1134, %v1132
        %v1531 = vpack.c.b16 %v1137, %v1135
        %v1532 = vpack.c.b16 %v1138, %v1136
        %v1533 = vpack.c.b16 %v1141, %v1139
        %v1534 = vpack.c.b16 %v1142, %v1140
        %v1535 = vpack.c.b16 %v1145, %v1143
        %v1536 = vpack.c.b16 %v1146, %v1144
        %v1537 = vpack.c.b16 %v1149, %v1147
        %v1538 = vpack.c.b16 %v1150, %v1148
        %v1539 = vpack.c.b16 %v1153, %v1151
        %v1540 = vpack.c.b16 %v1154, %v1152
        %v1541 = vpack.c.b16 %v1157, %v1155
        %v1542 = vpack.c.b16 %v1158, %v1156
        %v1543 = vpack.c.b16 %v1161, %v1159
        %v1544 = vpack.c.b16 %v1162, %v1160
        %v1545 = vpack.c.b16 %v1165, %v1163
        %v1546 = vpack.c.b16 %v1166, %v1164
        %v1547 = vpack.c.b16 %v1169, %v1167
        %v1548 = vpack.c.b16 %v1170, %v1168
        %v1549 = vpack.c.b16 %v1173, %v1171
        %v1550 = vpack.c.b16 %v1174, %v1172
        %v1551 = vpack.c.b16 %v1177, %v1175
        %v1552 = vpack.c.b16 %v1178, %v1176
        %v1553 = vpack.c.b16 %v1181, %v1179
        %v1554 = vpack.c.b16 %v1182, %v1180
        %v1555 = vpack.c.b16 %v1185, %v1183
        %v1556 = vpack.c.b16 %v1186, %v1184
        %v1557 = vpack.c.b16 %v1189, %v1187
        %v1558 = vpack.c.b16 %v1190, %v1188
        %v1559 = vpack.c.b16 %v1193, %v1191
        %v1560 = vpack.c.b16 %v1194, %v1192
        %v1561 = vpack.c.b16 %v1197, %v1195
        %v1562 = vpack.c.b16 %v1198, %v1196
        %v1563 = vpack.c.b16 %v1201, %v1199
        %v1564 = vpack.c.b16 %v1202, %v1200
        %v1565 = vpack.c.b16 %v1205, %v1203
        %v1566 = vpack.c.b16 %v1206, %v1204
        %v1567 = vpack.c.b16 %v1209, %v1207
        %v1568 = vpack.c.b16 %v1210, %v1208
        %v1569 = vpack.c.b16 %v1213, %v1211
        %v1570 = vpack.c.b16 %v1214, %v1212
        %v1571 = vpack.c.b16 %v1217, %v1215
        %v1572 = vpack.c.b16 %v1218, %v1216
        %v1573 = vpack.c.b16 %v1221, %v1219
        %v1574 = vpack.c.b16 %v1222, %v1220
        %v1575 = vpack.c.b16 %v1225, %v1223
        %v1576 = vpack.c.b16 %v1226, %v1224
        %v1577 = vpack.c.b16 %v1229, %v1227
        %v1578 = vpack.c.b16 %v1230, %v1228
        %v1579 = vpack.c.b16 %v1233, %v1231
        %v1580 = vpack.c.b16 %v1234, %v1232
        %v1581 = vpack.c.b16 %v1237, %v1235
        %v1582 = vpack.c.b16 %v1238, %v1236
        %v1583 = vpack.c.b16 %v1241, %v1239
        %v1584 = vpack.c.b16 %v1242, %v1240
        %v1585 = vpack.c.b16 %v1245, %v1243
        %v1586 = vpack.c.b16 %v1246, %v1244
        %v1587 = vpack.c.b16 %v1249, %v1247
        %v1588 = vpack.c.b16 %v1250, %v1248
        %v1589 = vpack.c.b16 %v1253, %v1251
        %v1590 = vpack.c.b16 %v1254, %v1252
        %v1591 = vpack.c.b16 %v1257, %v1255
        %v1592 = vpack.c.b16 %v1258, %v1256
        %v1593 = vpack.c.b16 %v1261, %v1259
        %v1594 = vpack.c.b16 %v1262, %v1260
        %v1595 = vpack.c.b16 %v1265, %v1263
        %v1596 = vpack.c.b16 %v1266, %v1264
        %v1597 = vpack.c.b16 %v1269, %v1267
        %v1598 = vpack.c.b16 %v1270, %v1268
        %v1599 = vpack.c.b16 %v1273, %v1271
        %v1600 = vpack.c.b16 %v1274, %v1272
        %v1601 = vpack.c.b16 %v1277, %v1275
        %v1602 = vpack.c.b16 %v1278, %v1276
        %v1603 = vpack.c.b16 %v1281, %v1279
        %v1604 = vpack.c.b16 %v1282, %v1280
        %v1605 = vpack.c.b16 %v1285, %v1283
        %v1606 = vpack.c.b16 %v1286, %v1284
        %v1607 = vpack.c.b16 %v1289, %v1287
        %v1608 = vpack.c.b16 %v1290, %v1288
        %v1609 = vpack.c.b16 %v1293, %v1291
        %v1610 = vpack.c.b16 %v1294, %v1292
        %v1611 = vpack.c.b16 %v1297, %v1295
        %v1612 = vpack.c.b16 %v1298, %v1296
        %v1613 = vpack.c.b16 %v1301, %v1299
        %v1614 = vpack.c.b16 %v1302, %v1300
        %v1615 = vpack.c.b16 %v1305, %v1303
        %v1616 = vpack.c.b16 %v1306, %v1304
        %v1617 = vpack.c.b16 %v1309, %v1307
        %v1618 = vpack.c.b16 %v1310, %v1308
        %v1619 = vpack.c.b16 %v1313, %v1311
        %v1620 = vpack.c.b16 %v1314, %v1312
        %v1621 = vpack.c.b16 %v1317, %v1315
        %v1622 = vpack.c.b16 %v1318, %v1316
        %v1623 = vpack.c.b16 %v1321, %v1319
        %v1624 = vpack.c.b16 %v1322, %v1320
        %v1625 = vpack.c.b16 %v1325, %v1323
        %v1626 = vpack.c.b16 %v1326, %v1324
        %v1627 = vpack.c.b16 %v1329, %v1327
        %v1628 = vpack.c.b16 %v1330, %v1328
        %v1629 = vpack.c.b16 %v1333, %v1331
        %v1630 = vpack.c.b16 %v1334, %v1332
        %v1631 = vpack.c.b16 %v1337, %v1335
        %v1632 = vpack.c.b16 %v1338, %v1336
        %v1633 = vpack.c.b16 %v1341, %v1339
        %v1634 = vpack.c.b16 %v1342, %v1340
        %v1635 = vpack.c.b16 %v1345, %v1343
        %v1636 = vpack.c.b16 %v1346, %v1344
        %v1637 = vpack.c.b16 %v1349, %v1347
        %v1638 = vpack.c.b16 %v1350, %v1348
        %v1639 = vpack.c.b16 %v1353, %v1351
        %v1640 = vpack.c.b16 %v1354, %v1352
        %v1641 = vpack.c.b16 %v1357, %v1355
        %v1642 = vpack.c.b16 %v1358, %v1356
        %v1643 = vpack.c.b16 %v1361, %v1359
        %v1644 = vpack.c.b16 %v1362, %v1360
        %v1645 = vpack.c.b16 %v1365, %v1363
        %v1646 = vpack.c.b16 %v1366, %v1364
        %v1647 = vpack.c.b16 %v1369, %v1367
        %v1648 = vpack.c.b16 %v1370, %v1368
        %v1649 = vpack.c.b16 %v1373, %v1371
        %v1650 = vpack.c.b16 %v1374, %v1372
        %v1651 = vpack.c.b16 %v1377, %v1375
        %v1652 = vpack.c.b16 %v1378, %v1376
        %v1653 = vpack.c.b16 %v1381, %v1379
        %v1654 = vpack.c.b16 %v1382, %v1380
        %v1655 = vpack.c.b16 %v1385, %v1383
        %v1656 = vpack.c.b16 %v1386, %v1384
        %v1657 = vpack.c.b16 %v1389, %v1387
        %v1658 = vpack.c.b16 %v1390, %v1388
        %v1659 = vpack.c.b16 %v1393, %v1391
        %v1660 = vpack.c.b16 %v1394, %v1392
        %v1661 = vpack.c.b16 %v1397, %v1395
        %v1662 = vpack.c.b16 %v1398, %v1396
        %v1663 = vpack.c.b16 %v1401, %v1399
        %v1664 = vpack.c.b16 %v1402, %v1400
        %v1665 = vpack.c.b16 %v1405, %v1403
        %v1666 = vpack.c.b16 %v1406, %v1404
        %v1667 = vpack.c.b16 %v1409, %v1407
        %v1668 = vpack.c.b16 %v1410, %v1408
        %v1669 = vpack.c.b16 %v1413, %v1411
        %v1670 = vpack.c.b16 %v1414, %v1412
        %1927 = vmatprep.subr.bf16.mxu0 %v1430
        %1928 = vmatpush1.bf16.msra.mxu0 %v1429
        %1929 = vmatprep.subr.bf16.mxu0 %v1428
        %1930 = vmatpush1.bf16.msra.mxu0 %v1427
        %1931 = vmatprep.subr.bf16.mxu0 %v1426
        %1932 = vmatpush1.bf16.msra.mxu0 %v1425
        %1933 = vmatprep.subr.bf16.mxu0 %v1424
        %1934 = vmatpush1.bf16.msra.mxu0 %v1423
        %1935 = vmatprep.subr.bf16.mxu0 %v1422
        %1936 = vmatpush1.bf16.msra.mxu0 %v1421
        %1937 = vmatprep.subr.bf16.mxu0 %v1420
        %1938 = vmatpush1.bf16.msra.mxu0 %v1419
        %1939 = vmatprep.subr.bf16.mxu0 %v1418
        %1940 = vmatpush1.bf16.msra.mxu0 %v1417
        %1941 = vmatprep.subr.bf16.mxu0 %v1416
        %1942 = vmatpush1.bf16.msra.mxu0 %v1415
        %1943 = vmatprep.subr.bf16.mxu0 %v1446
        %1944 = vmatpush2.bf16.msra.mxu0 %v1445
        %1945 = vmatprep.subr.bf16.mxu0 %v1444
        %1946 = vmatpush2.bf16.msra.mxu0 %v1443
        %1947 = vmatprep.subr.bf16.mxu0 %v1442
        %1948 = vmatpush2.bf16.msra.mxu0 %v1441
        %1949 = vmatprep.subr.bf16.mxu0 %v1440
        %1950 = vmatpush2.bf16.msra.mxu0 %v1439
        %1951 = vmatprep.subr.bf16.mxu0 %v1438
        %1952 = vmatpush2.bf16.msra.mxu0 %v1437
        %1953 = vmatprep.subr.bf16.mxu0 %v1436
        %1954 = vmatpush2.bf16.msra.mxu0 %v1435
        %1955 = vmatprep.subr.bf16.mxu0 %v1434
        %1956 = vmatpush2.bf16.msra.mxu0 %v1433
        %1957 = vmatprep.subr.bf16.mxu0 %v1432
        %1958 = vmatpush2.bf16.msra.mxu0 %v1431
        %1959 = vmatprep.mubr.bf16.mxu0 %v570
        %1960 = vmatmul.mubr.bf16.gmra.mxu0 %v556
        %v1961 = vpop.f32.mrf.mxu0
        %v1962 = vadd.f32 0.0, %v1961
        %v1963 = vpop.f32.mrf.mxu0
        %v1964 = vadd.f32 0.0, %v1963
        %v1965 = vpop.f32.mrf.mxu0
        %v1966 = vpop.f32.mrf.mxu0
        %1967 = vdwg.mxu0
        %1968 = vmatprep.subr.bf16.mxu0 %v1462
        %1969 = vmatpush1.bf16.msra.mxu0 %v1461
        %1970 = vmatprep.subr.bf16.mxu0 %v1460
        %1971 = vmatpush1.bf16.msra.mxu0 %v1459
        %1972 = vmatprep.subr.bf16.mxu0 %v1458
        %1973 = vmatpush1.bf16.msra.mxu0 %v1457
        %1974 = vmatprep.subr.bf16.mxu0 %v1456
        %1975 = vmatpush1.bf16.msra.mxu0 %v1455
        %1976 = vmatprep.subr.bf16.mxu0 %v1454
        %1977 = vmatpush1.bf16.msra.mxu0 %v1453
        %1978 = vmatprep.subr.bf16.mxu0 %v1452
        %1979 = vmatpush1.bf16.msra.mxu0 %v1451
        %1980 = vmatprep.subr.bf16.mxu0 %v1450
        %1981 = vmatpush1.bf16.msra.mxu0 %v1449
        %1982 = vmatprep.subr.bf16.mxu0 %v1448
        %1983 = vmatpush1.bf16.msra.mxu0 %v1447
        %1984 = vmatprep.subr.bf16.mxu0 %v1478
        %1985 = vmatpush2.bf16.msra.mxu0 %v1477
        %1986 = vmatprep.subr.bf16.mxu0 %v1476
        %1987 = vmatpush2.bf16.msra.mxu0 %v1475
        %1988 = vmatprep.subr.bf16.mxu0 %v1474
        %1989 = vmatpush2.bf16.msra.mxu0 %v1473
        %1990 = vmatprep.subr.bf16.mxu0 %v1472
        %1991 = vmatpush2.bf16.msra.mxu0 %v1471
        %1992 = vmatprep.subr.bf16.mxu0 %v1470
        %1993 = vmatpush2.bf16.msra.mxu0 %v1469
        %1994 = vmatprep.subr.bf16.mxu0 %v1468
        %1995 = vmatpush2.bf16.msra.mxu0 %v1467
        %1996 = vmatprep.subr.bf16.mxu0 %v1466
        %1997 = vmatpush2.bf16.msra.mxu0 %v1465
        %1998 = vmatprep.subr.bf16.mxu0 %v1464
        %1999 = vmatpush2.bf16.msra.mxu0 %v1463
        %2000 = vmatprep.mubr.bf16.mxu0 %v580
        %2001 = vmatmul.mubr.bf16.gmra.mxu0 %v578
        %v2002 = vpop.f32.mrf.mxu0
        %v2003 = vadd.f32 %v1962, %v2002
        %v2004 = vpop.f32.mrf.mxu0
        %v2005 = vadd.f32 %v1964, %v2004
        %v2006 = vpop.f32.mrf.mxu0
        %v2007 = vpop.f32.mrf.mxu0
        %2008 = vdwg.mxu0
        %2009 = vmatprep.subr.bf16.mxu0 %v1494
        %2010 = vmatpush1.bf16.msra.mxu0 %v1493
        %2011 = vmatprep.subr.bf16.mxu0 %v1492
        %2012 = vmatpush1.bf16.msra.mxu0 %v1491
        %2013 = vmatprep.subr.bf16.mxu0 %v1490
        %2014 = vmatpush1.bf16.msra.mxu0 %v1489
        %2015 = vmatprep.subr.bf16.mxu0 %v1488
        %2016 = vmatpush1.bf16.msra.mxu0 %v1487
        %2017 = vmatprep.subr.bf16.mxu0 %v1486
        %2018 = vmatpush1.bf16.msra.mxu0 %v1485
        %2019 = vmatprep.subr.bf16.mxu0 %v1484
        %2020 = vmatpush1.bf16.msra.mxu0 %v1483
        %2021 = vmatprep.subr.bf16.mxu0 %v1482
        %2022 = vmatpush1.bf16.msra.mxu0 %v1481
        %2023 = vmatprep.subr.bf16.mxu0 %v1480
        %2024 = vmatpush1.bf16.msra.mxu0 %v1479
        %2025 = vmatprep.subr.bf16.mxu0 %v1510
        %2026 = vmatpush2.bf16.msra.mxu0 %v1509
        %2027 = vmatprep.subr.bf16.mxu0 %v1508
        %2028 = vmatpush2.bf16.msra.mxu0 %v1507
        %2029 = vmatprep.subr.bf16.mxu0 %v1506
        %2030 = vmatpush2.bf16.msra.mxu0 %v1505
        %2031 = vmatprep.subr.bf16.mxu0 %v1504
        %2032 = vmatpush2.bf16.msra.mxu0 %v1503
        %2033 = vmatprep.subr.bf16.mxu0 %v1502
        %2034 = vmatpush2.bf16.msra.mxu0 %v1501
        %2035 = vmatprep.subr.bf16.mxu0 %v1500
        %2036 = vmatpush2.bf16.msra.mxu0 %v1499
        %2037 = vmatprep.subr.bf16.mxu0 %v1498
        %2038 = vmatpush2.bf16.msra.mxu0 %v1497
        %2039 = vmatprep.subr.bf16.mxu0 %v1496
        %2040 = vmatpush2.bf16.msra.mxu0 %v1495
        %2041 = vmatprep.mubr.bf16.mxu0 %v577
        %2042 = vmatmul.mubr.bf16.gmra.mxu0 %v563
        %v2043 = vpop.f32.mrf.mxu0
        %v2044 = vadd.f32 %v2003, %v2043
        %v2045 = vpop.f32.mrf.mxu0
        %v2046 = vadd.f32 %v2005, %v2045
        %v2047 = vpop.f32.mrf.mxu0
        %v2048 = vpop.f32.mrf.mxu0
        %2049 = vdwg.mxu0
        %2050 = vmatprep.subr.bf16.mxu0 %v1526
        %2051 = vmatpush1.bf16.msra.mxu0 %v1525
        %2052 = vmatprep.subr.bf16.mxu0 %v1524
        %2053 = vmatpush1.bf16.msra.mxu0 %v1523
        %2054 = vmatprep.subr.bf16.mxu0 %v1522
        %2055 = vmatpush1.bf16.msra.mxu0 %v1521
        %2056 = vmatprep.subr.bf16.mxu0 %v1520
        %2057 = vmatpush1.bf16.msra.mxu0 %v1519
        %2058 = vmatprep.subr.bf16.mxu0 %v1518
        %2059 = vmatpush1.bf16.msra.mxu0 %v1517
        %2060 = vmatprep.subr.bf16.mxu0 %v1516
        %2061 = vmatpush1.bf16.msra.mxu0 %v1515
        %2062 = vmatprep.subr.bf16.mxu0 %v1514
        %2063 = vmatpush1.bf16.msra.mxu0 %v1513
        %2064 = vmatprep.subr.bf16.mxu0 %v1512
        %2065 = vmatpush1.bf16.msra.mxu0 %v1511
        %2066 = vmatprep.subr.bf16.mxu0 %v1542
        %2067 = vmatpush2.bf16.msra.mxu0 %v1541
        %2068 = vmatprep.subr.bf16.mxu0 %v1540
        %2069 = vmatpush2.bf16.msra.mxu0 %v1539
        %2070 = vmatprep.subr.bf16.mxu0 %v1538
        %2071 = vmatpush2.bf16.msra.mxu0 %v1537
        %2072 = vmatprep.subr.bf16.mxu0 %v1536
        %2073 = vmatpush2.bf16.msra.mxu0 %v1535
        %2074 = vmatprep.subr.bf16.mxu0 %v1534
        %2075 = vmatpush2.bf16.msra.mxu0 %v1533
        %2076 = vmatprep.subr.bf16.mxu0 %v1532
        %2077 = vmatpush2.bf16.msra.mxu0 %v1531
        %2078 = vmatprep.subr.bf16.mxu0 %v1530
        %2079 = vmatpush2.bf16.msra.mxu0 %v1529
        %2080 = vmatprep.subr.bf16.mxu0 %v1528
        %2081 = vmatpush2.bf16.msra.mxu0 %v1527
        %2082 = vmatprep.mubr.bf16.mxu0 %v581
        %2083 = vmatmul.mubr.bf16.gmra.mxu0 %v579
        %v2084 = vpop.f32.mrf.mxu0
        %v2085 = vadd.f32 %v2044, %v2084
        %v2086 = vpop.f32.mrf.mxu0
        %v2087 = vadd.f32 %v2046, %v2086
        %v2088 = vpop.f32.mrf.mxu0
        %v2089 = vpop.f32.mrf.mxu0
        %2090 = vdwg.mxu0
        %2091 = vmatprep.subr.bf16.mxu0 %v1558
        %2092 = vmatpush1.bf16.msra.mxu0 %v1557
        %2093 = vmatprep.subr.bf16.mxu0 %v1556
        %2094 = vmatpush1.bf16.msra.mxu0 %v1555
        %2095 = vmatprep.subr.bf16.mxu0 %v1554
        %2096 = vmatpush1.bf16.msra.mxu0 %v1553
        %2097 = vmatprep.subr.bf16.mxu0 %v1552
        %2098 = vmatpush1.bf16.msra.mxu0 %v1551
        %2099 = vmatprep.subr.bf16.mxu0 %v1550
        %2100 = vmatpush1.bf16.msra.mxu0 %v1549
        %2101 = vmatprep.subr.bf16.mxu0 %v1548
        %2102 = vmatpush1.bf16.msra.mxu0 %v1547
        %2103 = vmatprep.subr.bf16.mxu0 %v1546
        %2104 = vmatpush1.bf16.msra.mxu0 %v1545
        %2105 = vmatprep.subr.bf16.mxu0 %v1544
        %2106 = vmatpush1.bf16.msra.mxu0 %v1543
        %2107 = vmatprep.subr.bf16.mxu0 %v1574
        %2108 = vmatpush2.bf16.msra.mxu0 %v1573
        %2109 = vmatprep.subr.bf16.mxu0 %v1572
        %2110 = vmatpush2.bf16.msra.mxu0 %v1571
        %2111 = vmatprep.subr.bf16.mxu0 %v1570
        %2112 = vmatpush2.bf16.msra.mxu0 %v1569
        %2113 = vmatprep.subr.bf16.mxu0 %v1568
        %2114 = vmatpush2.bf16.msra.mxu0 %v1567
        %2115 = vmatprep.subr.bf16.mxu0 %v1566
        %2116 = vmatpush2.bf16.msra.mxu0 %v1565
        %2117 = vmatprep.subr.bf16.mxu0 %v1564
        %2118 = vmatpush2.bf16.msra.mxu0 %v1563
        %2119 = vmatprep.subr.bf16.mxu0 %v1562
        %2120 = vmatpush2.bf16.msra.mxu0 %v1561
        %2121 = vmatprep.subr.bf16.mxu0 %v1560
        %2122 = vmatpush2.bf16.msra.mxu0 %v1559
        %2123 = vmatprep.mubr.bf16.mxu0 %v619
        %2124 = vmatmul.mubr.bf16.gmra.mxu0 %v605
        %v2125 = vpop.f32.mrf.mxu0
        %v2126 = vadd.f32 %v2085, %v2125
        %v2127 = vpop.f32.mrf.mxu0
        %v2128 = vadd.f32 %v2087, %v2127
        %v2129 = vpop.f32.mrf.mxu0
        %v2130 = vpop.f32.mrf.mxu0
        %2131 = vdwg.mxu0
        %2132 = vmatprep.subr.bf16.mxu0 %v1590
        %2133 = vmatpush1.bf16.msra.mxu0 %v1589
        %2134 = vmatprep.subr.bf16.mxu0 %v1588
        %2135 = vmatpush1.bf16.msra.mxu0 %v1587
        %2136 = vmatprep.subr.bf16.mxu0 %v1586
        %2137 = vmatpush1.bf16.msra.mxu0 %v1585
        %2138 = vmatprep.subr.bf16.mxu0 %v1584
        %2139 = vmatpush1.bf16.msra.mxu0 %v1583
        %2140 = vmatprep.subr.bf16.mxu0 %v1582
        %2141 = vmatpush1.bf16.msra.mxu0 %v1581
        %2142 = vmatprep.subr.bf16.mxu0 %v1580
        %2143 = vmatpush1.bf16.msra.mxu0 %v1579
        %2144 = vmatprep.subr.bf16.mxu0 %v1578
        %2145 = vmatpush1.bf16.msra.mxu0 %v1577
        %2146 = vmatprep.subr.bf16.mxu0 %v1576
        %2147 = vmatpush1.bf16.msra.mxu0 %v1575
        %2148 = vmatprep.subr.bf16.mxu0 %v1606
        %2149 = vmatpush2.bf16.msra.mxu0 %v1605
        %2150 = vmatprep.subr.bf16.mxu0 %v1604
        %2151 = vmatpush2.bf16.msra.mxu0 %v1603
        %2152 = vmatprep.subr.bf16.mxu0 %v1602
        %2153 = vmatpush2.bf16.msra.mxu0 %v1601
        %2154 = vmatprep.subr.bf16.mxu0 %v1600
        %2155 = vmatpush2.bf16.msra.mxu0 %v1599
        %2156 = vmatprep.subr.bf16.mxu0 %v1598
        %2157 = vmatpush2.bf16.msra.mxu0 %v1597
        %2158 = vmatprep.subr.bf16.mxu0 %v1596
        %2159 = vmatpush2.bf16.msra.mxu0 %v1595
        %2160 = vmatprep.subr.bf16.mxu0 %v1594
        %2161 = vmatpush2.bf16.msra.mxu0 %v1593
        %2162 = vmatprep.subr.bf16.mxu0 %v1592
        %2163 = vmatpush2.bf16.msra.mxu0 %v1591
        %2164 = vmatprep.mubr.bf16.mxu0 %v629
        %2165 = vmatmul.mubr.bf16.gmra.mxu0 %v627
        %v2166 = vpop.f32.mrf.mxu0
        %v2167 = vadd.f32 %v2126, %v2166
        %v2168 = vpop.f32.mrf.mxu0
        %v2169 = vadd.f32 %v2128, %v2168
        %v2170 = vpop.f32.mrf.mxu0
        %v2171 = vpop.f32.mrf.mxu0
        %2172 = vdwg.mxu0
        %2173 = vmatprep.subr.bf16.mxu0 %v1622
        %2174 = vmatpush1.bf16.msra.mxu0 %v1621
        %2175 = vmatprep.subr.bf16.mxu0 %v1620
        %2176 = vmatpush1.bf16.msra.mxu0 %v1619
        %2177 = vmatprep.subr.bf16.mxu0 %v1618
        %2178 = vmatpush1.bf16.msra.mxu0 %v1617
        %2179 = vmatprep.subr.bf16.mxu0 %v1616
        %2180 = vmatpush1.bf16.msra.mxu0 %v1615
        %2181 = vmatprep.subr.bf16.mxu0 %v1614
        %2182 = vmatpush1.bf16.msra.mxu0 %v1613
        %2183 = vmatprep.subr.bf16.mxu0 %v1612
        %2184 = vmatpush1.bf16.msra.mxu0 %v1611
        %2185 = vmatprep.subr.bf16.mxu0 %v1610
        %2186 = vmatpush1.bf16.msra.mxu0 %v1609
        %2187 = vmatprep.subr.bf16.mxu0 %v1608
        %2188 = vmatpush1.bf16.msra.mxu0 %v1607
        %2189 = vmatprep.subr.bf16.mxu0 %v1638
        %2190 = vmatpush2.bf16.msra.mxu0 %v1637
        %2191 = vmatprep.subr.bf16.mxu0 %v1636
        %2192 = vmatpush2.bf16.msra.mxu0 %v1635
        %2193 = vmatprep.subr.bf16.mxu0 %v1634
        %2194 = vmatpush2.bf16.msra.mxu0 %v1633
        %2195 = vmatprep.subr.bf16.mxu0 %v1632
        %2196 = vmatpush2.bf16.msra.mxu0 %v1631
        %2197 = vmatprep.subr.bf16.mxu0 %v1630
        %2198 = vmatpush2.bf16.msra.mxu0 %v1629
        %2199 = vmatprep.subr.bf16.mxu0 %v1628
        %2200 = vmatpush2.bf16.msra.mxu0 %v1627
        %2201 = vmatprep.subr.bf16.mxu0 %v1626
        %2202 = vmatpush2.bf16.msra.mxu0 %v1625
        %2203 = vmatprep.subr.bf16.mxu0 %v1624
        %2204 = vmatpush2.bf16.msra.mxu0 %v1623
        %2205 = vmatprep.mubr.bf16.mxu0 %v626
        %2206 = vmatmul.mubr.bf16.gmra.mxu0 %v612
        %v2207 = vpop.f32.mrf.mxu0
        %v2208 = vadd.f32 %v2167, %v2207
        %v2209 = vpop.f32.mrf.mxu0
        %v2210 = vadd.f32 %v2169, %v2209
        %v2211 = vpop.f32.mrf.mxu0
        %v2212 = vpop.f32.mrf.mxu0
        %2213 = vdwg.mxu0
        %2214 = vmatprep.subr.bf16.mxu0 %v1654
        %2215 = vmatpush1.bf16.msra.mxu0 %v1653
        %2216 = vmatprep.subr.bf16.mxu0 %v1652
        %2217 = vmatpush1.bf16.msra.mxu0 %v1651
        %2218 = vmatprep.subr.bf16.mxu0 %v1650
        %2219 = vmatpush1.bf16.msra.mxu0 %v1649
        %2220 = vmatprep.subr.bf16.mxu0 %v1648
        %2221 = vmatpush1.bf16.msra.mxu0 %v1647
        %2222 = vmatprep.subr.bf16.mxu0 %v1646
        %2223 = vmatpush1.bf16.msra.mxu0 %v1645
        %2224 = vmatprep.subr.bf16.mxu0 %v1644
        %2225 = vmatpush1.bf16.msra.mxu0 %v1643
        %2226 = vmatprep.subr.bf16.mxu0 %v1642
        %2227 = vmatpush1.bf16.msra.mxu0 %v1641
        %2228 = vmatprep.subr.bf16.mxu0 %v1640
        %2229 = vmatpush1.bf16.msra.mxu0 %v1639
        %2230 = vmatprep.subr.bf16.mxu0 %v1670
        %2231 = vmatpush2.bf16.msra.mxu0 %v1669
        %2232 = vmatprep.subr.bf16.mxu0 %v1668
        %2233 = vmatpush2.bf16.msra.mxu0 %v1667
        %2234 = vmatprep.subr.bf16.mxu0 %v1666
        %2235 = vmatpush2.bf16.msra.mxu0 %v1665
        %2236 = vmatprep.subr.bf16.mxu0 %v1664
        %2237 = vmatpush2.bf16.msra.mxu0 %v1663
        %2238 = vmatprep.subr.bf16.mxu0 %v1662
        %2239 = vmatpush2.bf16.msra.mxu0 %v1661
        %2240 = vmatprep.subr.bf16.mxu0 %v1660
        %2241 = vmatpush2.bf16.msra.mxu0 %v1659
        %2242 = vmatprep.subr.bf16.mxu0 %v1658
        %2243 = vmatpush2.bf16.msra.mxu0 %v1657
        %2244 = vmatprep.subr.bf16.mxu0 %v1656
        %2245 = vmatpush2.bf16.msra.mxu0 %v1655
        %2246 = vmatprep.mubr.bf16.mxu0 %v630
        %2247 = vmatmul.mubr.bf16.gmra.mxu0 %v628
        %v2248 = vpop.f32.mrf.mxu0
        %v2249 = vadd.f32 %v2208, %v2248
        %v2250 = vpop.f32.mrf.mxu0
        %v2251 = vadd.f32 %v2210, %v2250
        %v2252 = vpop.f32.mrf.mxu0
        %v2253 = vpop.f32.mrf.mxu0
        %2254 = vdwg.mxu0
        %v2257 = vcombine.low %v2249, %v2251
        %v2259 = vunpack.c.l.s4 1983009808
        %v2260 = vunpack.c.0.s8 %v2259
        %v2261 = vlaneseq
        %v2262 = vshrl.u32 %v2261, 7
        %v2263 = vsub.s32 %v2260, %v2262
        %v2264 = vrot.slane %v2257, %v2263
        %v2266 = vadd.f32 %v272, %v2264
        %2267 = vst [vmem:[#allocation2] sm:$0xf] %v2266
        %p2268 = scmp.eq.s32.totalorder %s22, 1
        // Predicated region
        $region45: #{cnn_forward.7} parent=39 // pred_check
          %p2269 = pneg %p2268
        $region46: #{cnn_forward.7} parent=39 // pred_check_branch
          %2271 = sbr.rel (%p2269) target = $region48
        $region47: #{cnn_forward.7} parent=39 // pred_region
          %v2272 = vld [vmem:[#allocation2] sm:$0xf]
          %v2273 = vld [vmem:[%s2] sm:$0x3]
          %v2275 = vlaneseq
          %v2276 = vshrl.u32 %v2275, 7
          %v2277 = vsub.s32 0, %v2276
          %v2278 = vrot.slane %v2273, %v2277
          %v2279 = vlaneseq
          %v2280 = vshrl.u32 %v2279, 7
          %v2281 = vsub.s32 1, %v2280
          %v2282 = vrot.slane %v2273, %v2281
          %v2283 = vcombine.low %v2278, %v2282
          %v2285 = vunpack.c.l.s4 1983009808
          %v2286 = vunpack.c.0.s8 %v2285
          %v2287 = vlaneseq
          %v2288 = vshrl.u32 %v2287, 7
          %v2289 = vsub.s32 %v2286, %v2288
          %v2290 = vrot.slane %v2283, %v2289
          %v2292 = vadd.f32 %v2272, %v2290
          %v2293 = vmax.f32 %v2292, 0.0
          %v2296 = vunpack.c.l.s4 1983009808
          %v2297 = vunpack.c.0.s8 %v2296
          %v2298 = vlaneseq
          %v2299 = vshrl.u32 %v2298, 7
          %v2300 = vsub.s32 %v2297, %v2299
          %v2301 = vrot.slane %v2293, %v2300
          %v2302 = vcombine.high %v2301, %v2301
          %v2305 = vpack.c.bf16 %v2301, %v2301
          %v2306 = vpack.c.bf16 %v2302, %v2302
          %v2307 = vld [vmem:[%s3] sm:$0xf]
          %v2308 = vld [vmem:[%s3 + $0x4] sm:$0xf]
          %v2309 = vld [vmem:[%s3 + $0x8] sm:$0xf]
          %v2310 = vld [vmem:[%s3 + $0xc] sm:$0xf]
          %v2311 = vld [vmem:[%s3 + $0x10] sm:$0xf]
          %v2312 = vld [vmem:[%s3 + $0x14] sm:$0xf]
          %v2313 = vld [vmem:[%s3 + $0x18] sm:$0xf]
          %v2314 = vld [vmem:[%s3 + $0x1c] sm:$0xf]
          %v2315 = vld [vmem:[%s3 + $0x20] sm:$0xf]
          %v2316 = vld [vmem:[%s3 + $0x24] sm:$0xf]
          %v2317 = vld [vmem:[%s3 + $0x28] sm:$0xf]
          %v2318 = vld [vmem:[%s3 + $0x2c] sm:$0xf]
          %v2319 = vld [vmem:[%s3 + $0x30] sm:$0xf]
          %v2320 = vld [vmem:[%s3 + $0x34] sm:$0xf]
          %v2321 = vld [vmem:[%s3 + $0x38] sm:$0xf]
          %v2322 = vld [vmem:[%s3 + $0x3c] sm:$0xf]
          %v2323 = vld [vmem:[%s3 + $0x40] sm:$0xf]
          %v2324 = vld [vmem:[%s3 + $0x44] sm:$0xf]
          %v2325 = vld [vmem:[%s3 + $0x48] sm:$0xf]
          %v2326 = vld [vmem:[%s3 + $0x4c] sm:$0xf]
          %v2327 = vld [vmem:[%s3 + $0x50] sm:$0xf]
          %v2328 = vld [vmem:[%s3 + $0x54] sm:$0xf]
          %v2329 = vld [vmem:[%s3 + $0x58] sm:$0xf]
          %v2330 = vld [vmem:[%s3 + $0x5c] sm:$0xf]
          %v2331 = vld [vmem:[%s3 + $0x60] sm:$0xf]
          %v2332 = vld [vmem:[%s3 + $0x64] sm:$0xf]
          %v2333 = vld [vmem:[%s3 + $0x68] sm:$0xf]
          %v2334 = vld [vmem:[%s3 + $0x6c] sm:$0xf]
          %v2335 = vld [vmem:[%s3 + $0x70] sm:$0xf]
          %v2336 = vld [vmem:[%s3 + $0x74] sm:$0xf]
          %v2337 = vld [vmem:[%s3 + $0x78] sm:$0xf]
          %v2338 = vld [vmem:[%s3 + $0x7c] sm:$0xf]
          %v2339 = vld [vmem:[%s4] sm:$0x1]
          %v2341 = vlaneseq
          %v2342 = vshrl.u32 %v2341, 7
          %v2343 = vsub.s32 0, %v2342
          %v2344 = vrot.slane %v2339, %v2343
          %v2378 = vunpack.c.l.b16 %v2307
          %v2379 = vunpack.c.l.b16 %v2308
          %v2380 = vunpack.c.l.b16 %v2309
          %v2381 = vunpack.c.l.b16 %v2310
          %v2382 = vunpack.c.l.b16 %v2311
          %v2383 = vunpack.c.l.b16 %v2312
          %v2384 = vunpack.c.l.b16 %v2313
          %v2385 = vunpack.c.l.b16 %v2314
          %v2386 = vunpack.c.l.b16 %v2315
          %v2387 = vunpack.c.l.b16 %v2316
          %v2388 = vunpack.c.l.b16 %v2317
          %v2389 = vunpack.c.l.b16 %v2318
          %v2390 = vunpack.c.l.b16 %v2319
          %v2391 = vunpack.c.l.b16 %v2320
          %v2392 = vunpack.c.l.b16 %v2321
          %v2393 = vunpack.c.l.b16 %v2322
          %v2394 = vunpack.c.l.b16 %v2323
          %v2395 = vunpack.c.l.b16 %v2324
          %v2396 = vunpack.c.l.b16 %v2325
          %v2397 = vunpack.c.l.b16 %v2326
          %v2398 = vunpack.c.l.b16 %v2327
          %v2399 = vunpack.c.l.b16 %v2328
          %v2400 = vunpack.c.l.b16 %v2329
          %v2401 = vunpack.c.l.b16 %v2330
          %v2402 = vunpack.c.l.b16 %v2331
          %v2403 = vunpack.c.l.b16 %v2332
          %v2404 = vunpack.c.l.b16 %v2333
          %v2405 = vunpack.c.l.b16 %v2334
          %v2406 = vunpack.c.l.b16 %v2335
          %v2407 = vunpack.c.l.b16 %v2336
          %v2408 = vunpack.c.l.b16 %v2337
          %v2409 = vunpack.c.l.b16 %v2338
          %v2410 = vpack.c.b16 %v2379, %v2378
          %v2411 = vpack.c.b16 %v2381, %v2380
          %v2412 = vpack.c.b16 %v2383, %v2382
          %v2413 = vpack.c.b16 %v2385, %v2384
          %v2414 = vpack.c.b16 %v2387, %v2386
          %v2415 = vpack.c.b16 %v2389, %v2388
          %v2416 = vpack.c.b16 %v2391, %v2390
          %v2417 = vpack.c.b16 %v2393, %v2392
          %v2418 = vpack.c.b16 %v2395, %v2394
          %v2419 = vpack.c.b16 %v2397, %v2396
          %v2420 = vpack.c.b16 %v2399, %v2398
          %v2421 = vpack.c.b16 %v2401, %v2400
          %v2422 = vpack.c.b16 %v2403, %v2402
          %v2423 = vpack.c.b16 %v2405, %v2404
          %v2424 = vpack.c.b16 %v2407, %v2406
          %v2425 = vpack.c.b16 %v2409, %v2408
          %2442 = vmatprep.subr.bf16.mxu0 0
          %2443 = vmatpush1.bf16.msra.mxu0 %v2417
          %2444 = vmatprep.subr.bf16.mxu0 0
          %2445 = vmatpush1.bf16.msra.mxu0 %v2416
          %2446 = vmatprep.subr.bf16.mxu0 0
          %2447 = vmatpush1.bf16.msra.mxu0 %v2415
          %2448 = vmatprep.subr.bf16.mxu0 0
          %2449 = vmatpush1.bf16.msra.mxu0 %v2414
          %2450 = vmatprep.subr.bf16.mxu0 0
          %2451 = vmatpush1.bf16.msra.mxu0 %v2413
          %2452 = vmatprep.subr.bf16.mxu0 0
          %2453 = vmatpush1.bf16.msra.mxu0 %v2412
          %2454 = vmatprep.subr.bf16.mxu0 0
          %2455 = vmatpush1.bf16.msra.mxu0 %v2411
          %2456 = vmatprep.subr.bf16.mxu0 0
          %2457 = vmatpush1.bf16.msra.mxu0 %v2410
          %2458 = vmatprep.subr.bf16.mxu0 0
          %2459 = vmatpush2.bf16.msra.mxu0 %v2425
          %2460 = vmatprep.subr.bf16.mxu0 0
          %2461 = vmatpush2.bf16.msra.mxu0 %v2424
          %2462 = vmatprep.subr.bf16.mxu0 0
          %2463 = vmatpush2.bf16.msra.mxu0 %v2423
          %2464 = vmatprep.subr.bf16.mxu0 0
          %2465 = vmatpush2.bf16.msra.mxu0 %v2422
          %2466 = vmatprep.subr.bf16.mxu0 0
          %2467 = vmatpush2.bf16.msra.mxu0 %v2421
          %2468 = vmatprep.subr.bf16.mxu0 0
          %2469 = vmatpush2.bf16.msra.mxu0 %v2420
          %2470 = vmatprep.subr.bf16.mxu0 0
          %2471 = vmatpush2.bf16.msra.mxu0 %v2419
          %2472 = vmatprep.subr.bf16.mxu0 0
          %2473 = vmatpush2.bf16.msra.mxu0 %v2418
          %2474 = vmatprep.mubr.bf16.mxu0 %v2306
          %2475 = vmatmul.mubr.bf16.gmra.mxu0 %v2305
          %v2476 = vpop.f32.mrf.mxu0
          %v2477 = vadd.f32 %v2344, %v2476
          %v2478 = vpop.f32.mrf.mxu0
          %v2479 = vpop.f32.mrf.mxu0
          %v2480 = vpop.f32.mrf.mxu0
          %2481 = vdwg.mxu0
          %v2482 = vtanh.pop %v2477
          %2483 = vst [vmem:[#allocation3] sm:$0x3] %v2482
        $region48: #{cnn_forward.7} parent=39 // pred_fallthru
          _
        // Predicated region
        $region49: #{cnn_forward.7} parent=39 // pred_check
          %p2484 = pneg %p164
        $region50: #{cnn_forward.7} parent=39 // pred_check_branch
          %2486 = sbr.rel (%p2484) target = $region52
        $region51: #{cnn_forward.7} parent=39 // pred_region
          %s2488 = ssub.s32 32, 32
          %2489 = vsyncadd [#allocation4], %s2488
          %s2490 = smul.addr %s21, 32
          %s2491 = scalar_lea.hbm %s5, %s2490
          %s2493 = sshll.u32 [#allocation3], 4
          %s2494 = int_to_ptr.vmem [resolvable:$true] %s2493
          %2496 = dma.vmem_to_hbm [thread:$0]  %s2494, 32, %s2491, [#allocation4]
        $region52: #{cnn_forward.7} parent=39 // pred_fallthru
          _
        // Predicated region
        $region53: #{cnn_forward.7} parent=39 // pred_check
          %p2497 = pneg %p164
        $region54: #{cnn_forward.7} parent=39 // pred_check_branch
          %2499 = sbr.rel (%p2497) target = $region56
        $region55: #{cnn_forward.7} parent=39 // pred_region
          %2500 = dma.done [#allocation4], 32
        $region56: #{cnn_forward.7} parent=39 // pred_fallthru
          _
      $region40: #{cnn_forward.7} parent=5 // pred_fallthru
        _
      %p2501 = scmp.le.s32.totalorder 2, %s12
      // Predicated region
      $region57: #{cnn_forward.7} parent=5 // pred_check
        %p2502 = pneg %p2501
      $region58: #{cnn_forward.7} parent=5 // pred_check_branch
        %2504 = sbr.rel (%p2502) target = $region60
      $region59: #{cnn_forward.7} parent=5 // pred_region
        %s2505 = ssub.s32 %s12, 2
      $region60: #{cnn_forward.7} parent=5 // pred_fallthru
        _
    $region6: #{cnn_forward.7} parent=1 // loop_footer
      %s16 = sadd.s32 1, %s12
    $region7: #{cnn_forward.7} parent=1 // loop_footer_branch
      %11 = sbr.rel target = $region3
    $region8: #{cnn_forward.7} parent=1 // loop_exit
      _
    %2506 = vsyncpa [#allocation4], 1
    %s2507 = scalar_lea.sflag [#allocation4], 1
    %2508 = vsyncpa %s2507, 1

</llo_original>
